<compile_context>
chip_gen: v5e
topology: v5e:2x2
jax: 0.10.0
libtpu: 0.0.40
codegen_flags: <defaults>
</compile_context>

<pallas_src>
import functools

import jax
import jax.numpy as jnp
from jax.experimental import pallas as pl
from jax.experimental.pallas import tpu as pltpu


def _round_up(x, m):
    return (x + m - 1) // m * m


# ----------------------------------------------------------------------------
# Fused kernel: conv3x3(+bias,ReLU) -> masked GAP -> fc(32->512) -> L2 normalize
#               -> single concatenated heads matmul.  One grid step per image.
# ----------------------------------------------------------------------------
def _fused_kernel(x_ref, mask_ref, wk_ref, bconv_ref, wfc_ref, bfc_ref,
                  wh_ref, bh_ref, feat_ref, head_ref, acc_ref, *, wp, n_rows):
    # ---- conv as 9 shifted-slice matmuls over the padded NHWC-flat image ----
    # x_ref block: (1, n_in, C) with n_in >= (H+2)*(W+2)+2 zero-padded rows.
    # Output row j corresponds to padded position (h = j // wp, w = j % wp);
    # neighbour (kh, kw) of that pixel sits at flat row j + kh*wp + kw.
    acc_ref[...] = jnp.zeros_like(acc_ref)
    for kh in range(3):
        for kw in range(3):
            o = kh * 3 + kw
            xs = x_ref[0, pl.ds(kh * wp + kw, n_rows), :]          # (n_rows, C)
            acc_ref[...] += jnp.dot(xs, wk_ref[o],
                                    preferred_element_type=jnp.float32)

    conv = jnp.maximum(acc_ref[...] + bconv_ref[...], 0.0)         # (n_rows, Cout)

    # ---- masked global average pool -----------------------------------------
    # mask carries the 1/(H*W) scale and zeroes the padded columns (w >= W).
    pooled = jnp.sum(conv * mask_ref[...], axis=0, keepdims=True)  # (1, Cout)

    # ---- backbone fc 32 -> 512 ----------------------------------------------
    feat = jnp.dot(pooled, wfc_ref[...],
                   preferred_element_type=jnp.float32) + bfc_ref[...]   # (1, D)

    # ---- F.normalize(dim=1): feat / max(||feat||, 1e-12), via rsqrt (EUP) ----
    ss = jnp.sum(feat * feat, axis=1, keepdims=True)
    fn = feat * jax.lax.rsqrt(jnp.maximum(ss, 1e-24))

    feat_ref[0] = fn                                               # (1, D)

    # ---- single lane-dense matmul for all heads (top | pseudo | clusters) ---
    head_ref[0] = jnp.dot(fn, wh_ref[...],
                          preferred_element_type=jnp.float32) + bh_ref[...]


# ----------------------------------------------------------------------------
# pallas_call wrapper
# ----------------------------------------------------------------------------
def _fused_forward(xf, mask, wk, b_conv, w_fc, b_fc, w_heads, b_heads,
                   *, wp, n_rows):
    B, n_in, C = xf.shape
    Cout = wk.shape[-1]
    D = w_fc.shape[1]
    P = w_heads.shape[1]

    kernel = functools.partial(_fused_kernel, wp=wp, n_rows=n_rows)

    feat3, head3 = pl.pallas_call(
        kernel,
        out_shape=(jax.ShapeDtypeStruct((B, 1, D), jnp.float32),
                   jax.ShapeDtypeStruct((B, 1, P), jnp.float32)),
        grid=(B,),
        in_specs=[
            pl.BlockSpec((1, n_in, C), lambda b: (b, 0, 0)),      # padded image
            pl.BlockSpec((n_rows, 1), lambda b: (0, 0)),          # GAP mask/scale
            pl.BlockSpec((9, C, Cout), lambda b: (0, 0, 0)),      # conv weights
            pl.BlockSpec((1, Cout), lambda b: (0, 0)),            # conv bias
            pl.BlockSpec((Cout, D), lambda b: (0, 0)),            # fc weight
            pl.BlockSpec((1, D), lambda b: (0, 0)),               # fc bias
            pl.BlockSpec((D, P), lambda b: (0, 0)),               # concat head W
            pl.BlockSpec((1, P), lambda b: (0, 0)),               # concat head b
        ],
        out_specs=(pl.BlockSpec((1, 1, D), lambda b: (b, 0, 0)),
                   pl.BlockSpec((1, 1, P), lambda b: (b, 0, 0))),
        scratch_shapes=[pltpu.VMEM((n_rows, Cout), jnp.float32)],  # conv accum
        compiler_params=pltpu.CompilerParams(
            dimension_semantics=("parallel",),        # batch axis: v7x 2-TC split
            vmem_limit_bytes=32 * 1024 * 1024),
    )(xf, mask, wk, b_conv, w_fc, b_fc, w_heads, b_heads)

    return feat3[:, 0, :], head3[:, 0, :]


# ----------------------------------------------------------------------------
# Input / parameter packing (cheap layout work only — no 9x im2col in HBM)
# ----------------------------------------------------------------------------
def _pack_inputs(x):
    B, C, H, W = x.shape
    Hp, Wp = H + 2, W + 2
    n_rows = H * Wp                               # conv output rows computed
    n_in = _round_up(Hp * Wp + 2, 8)              # padded flat input rows
    x_nhwc = jnp.transpose(x, (0, 2, 3, 1))
    xp = jnp.pad(x_nhwc, ((0, 0), (1, 1), (1, 1), (0, 0)))
    xf = xp.reshape(B, Hp * Wp, C)
    xf = jnp.pad(xf, ((0, 0), (0, n_in - Hp * Wp), (0, 0)))
    wp_idx = jnp.arange(n_rows, dtype=jnp.int32) % Wp
    mask = jnp.where(wp_idx < W, 1.0 / (H * W), 0.0).astype(jnp.float32)[:, None]
    return xf, mask, Wp, n_rows


def clustering_model_forward(params, x, flag, is_main, forward_pass="default"):
    if forward_pass != "default":
        raise ValueError("Only forward_pass='default' is implemented in Pallas.")
    # NOTE: flag / is_main must be concrete Python bools (not traced values).
    B, C, H, W = x.shape
    xf, mask, wp, n_rows = _pack_inputs(x)

    # conv weights -> (kh*3+kw, Cin, Cout) so wk[o] is a (C, Cout) MXU operand
    w_conv = params["w_conv"]                     # (Cout, C, 3, 3) PyTorch layout
    Cout = w_conv.shape[0]
    wk = jnp.transpose(w_conv, (2, 3, 1, 0)).reshape(9, C, Cout)
    b_conv = params["b_conv"].reshape(1, Cout)
    w_fc = params["w_fc"]                         # (32, 512)
    b_fc = params["b_fc"].reshape(1, -1)
    D = w_fc.shape[1]

    # concatenate all heads into one lane-dense (D, pad128(10+100+nheads*K)) matrix
    w_cl = params["w_cluster"]                    # (nheads, D, K)
    b_cl = params["b_cluster"]                    # (nheads, K)
    nheads, _, K = w_cl.shape
    w_cl2 = jnp.transpose(w_cl, (1, 0, 2)).reshape(D, nheads * K)
    w_heads = jnp.concatenate([params["w_top"], params["w_pseudo"], w_cl2], axis=1)
    b_heads = jnp.concatenate(
        [params["b_top"], params["b_pseudo"], b_cl.reshape(-1)])
    n_cols = w_heads.shape[1]                     # 10 + 100 + nheads*K
    P = _round_up(n_cols, 128)
    w_heads = jnp.pad(w_heads, ((0, 0), (0, P - n_cols)))
    b_heads = jnp.pad(b_heads, (0, P - n_cols)).reshape(1, P)

    feats, head = _fused_forward(xf, mask, wk, b_conv, w_fc, b_fc,
                                 w_heads, b_heads, wp=wp, n_rows=n_rows)

    # slice the padded head output back into the module's outputs
    y = head[:, 0:10]
    pseudo_y = head[:, 10:110]
    base = 110
    if flag:
        return (pseudo_y, y)
    elif is_main:
        return [head[:, base + h * K: base + (h + 1) * K] for h in range(nheads)]
    else:
        return feats


# ----------------------------------------------------------------------------
# Deterministic parameter init (PyTorch-default-like uniform)
# ----------------------------------------------------------------------------
def init_params(key, c_in=4, c_conv=32, backbone_dim=512, nclusters=10, nheads=2):
    keys = jax.random.split(key, 12)

    def uni(k, shape, fan_in):
        bound = 1.0 / jnp.sqrt(fan_in)
        return jax.random.uniform(k, shape, jnp.float32, -bound, bound)

    return {
        "w_conv":    uni(keys[0], (c_conv, c_in, 3, 3), c_in * 9),
        "b_conv":    uni(keys[1], (c_conv,), c_in * 9),
        "w_fc":      uni(keys[2], (c_conv, backbone_dim), c_conv),
        "b_fc":      uni(keys[3], (backbone_dim,), c_conv),
        "w_top":     uni(keys[4], (backbone_dim, 10), backbone_dim),
        "b_top":     uni(keys[5], (10,), backbone_dim),
        "w_pseudo":  uni(keys[6], (backbone_dim, 100), backbone_dim),
        "b_pseudo":  uni(keys[7], (100,), backbone_dim),
        "w_cluster": uni(keys[8], (nheads, backbone_dim, nclusters), backbone_dim),
        "b_cluster": uni(keys[9], (nheads, nclusters), backbone_dim),
    }


# ----------------------------------------------------------------------------
# Pure-jnp reference (for a sanity check)
# ----------------------------------------------------------------------------
def _reference(params, x):
    conv = jax.lax.conv_general_dilated(
        x, params["w_conv"], (1, 1), "SAME",
        dimension_numbers=("NCHW", "OIHW", "NCHW"))
    conv = jnp.maximum(conv + params["b_conv"][None, :, None, None], 0.0)
    feat = conv.mean(axis=(2, 3)) @ params["w_fc"] + params["b_fc"]
    fn = feat / jnp.maximum(jnp.linalg.norm(feat, axis=1, keepdims=True), 1e-12)
    y = fn @ params["w_top"] + params["b_top"]
    py = fn @ params["w_pseudo"] + params["b_pseudo"]
    cl = (jnp.einsum("bd,hdk->hbk", fn, params["w_cluster"])
          + params["b_cluster"][:, None, :])
    return fn, y, py, cl


if __name__ == "__main__":
    key = jax.random.PRNGKey(0)
    pkey, xkey = jax.random.split(key)

    B, C, H, W = 2, 4, 16, 16
    nclusters, nheads = 10, 2
    params = init_params(pkey, c_in=C, nclusters=nclusters, nheads=nheads)
    x = jax.random.normal(xkey, (B, C, H, W), jnp.float32)

    # flag=True branch -> (pseudo_y, y)
    pseudo_y, y = clustering_model_forward(params, x, flag=True, is_main=False)
    pseudo_y, y = jax.block_until_ready((pseudo_y, y))

    # flag=False, is_main=True branch -> list of cluster-head outputs
    cluster_out = jax.block_until_ready(
        clustering_model_forward(params, x, flag=False, is_main=True))

    # flag=False, is_main=False branch -> normalized features
    feats = jax.block_until_ready(
        clustering_model_forward(params, x, flag=False, is_main=False))

    # numerical sanity check vs. pure-JAX reference
    fn_r, y_r, py_r, cl_r = _reference(params, x)
    assert jnp.allclose(y, y_r, rtol=1e-4, atol=1e-4), "y mismatch"
    assert jnp.allclose(pseudo_y, py_r, rtol=1e-4, atol=1e-4), "pseudo_y mismatch"
    assert jnp.allclose(feats, fn_r, rtol=1e-4, atol=1e-4), "features mismatch"
    for h in range(nheads):
        assert jnp.allclose(cluster_out[h], cl_r[h], rtol=1e-4, atol=1e-4), \
            f"cluster head {h} mismatch"

    print("KERNEL_OK")
</pallas_src>

<mosaic_0001>
module attributes {stable_mosaic.version = 11 : i64} {
  func.func @_fused_kernel(%arg0: i32, %arg1: memref<1x328x4xf32, #tpu.memory_space<vmem>>, %arg2: memref<288x1xf32, #tpu.memory_space<vmem>>, %arg3: memref<9x4x32xf32, #tpu.memory_space<vmem>>, %arg4: memref<1x32xf32, #tpu.memory_space<vmem>>, %arg5: memref<32x512xf32, #tpu.memory_space<vmem>>, %arg6: memref<1x512xf32, #tpu.memory_space<vmem>>, %arg7: memref<512x256xf32, #tpu.memory_space<vmem>>, %arg8: memref<1x256xf32, #tpu.memory_space<vmem>>, %arg9: memref<1x1x512xf32, #tpu.memory_space<vmem>>, %arg10: memref<1x1x256xf32, #tpu.memory_space<vmem>>, %arg11: memref<288x32xf32, #tpu.memory_space<vmem>>) attributes {dimension_semantics = [#tpu.dimension_semantics<parallel>], iteration_bounds = array<i64: 2>, scalar_prefetch = 0 : i64, scratch_operands = 1 : i64, tpu.core_type = #tpu.core_type<tc>, window_params = [{transform_indices = @transform_0, window_bounds = array<i64: 1, 328, 4>}, {pipeline_mode = #tpu.pipeline_mode<synchronous>, transform_indices = @transform_1, window_bounds = array<i64: 288, 1>}, {pipeline_mode = #tpu.pipeline_mode<synchronous>, transform_indices = @transform_2, window_bounds = array<i64: 9, 4, 32>}, {pipeline_mode = #tpu.pipeline_mode<synchronous>, transform_indices = @transform_3, window_bounds = array<i64: 1, 32>}, {pipeline_mode = #tpu.pipeline_mode<synchronous>, transform_indices = @transform_4, window_bounds = array<i64: 32, 512>}, {pipeline_mode = #tpu.pipeline_mode<synchronous>, transform_indices = @transform_5, window_bounds = array<i64: 1, 512>}, {pipeline_mode = #tpu.pipeline_mode<synchronous>, transform_indices = @transform_6, window_bounds = array<i64: 512, 256>}, {pipeline_mode = #tpu.pipeline_mode<synchronous>, transform_indices = @transform_7, window_bounds = array<i64: 1, 256>}, {transform_indices = @transform_8, window_bounds = array<i64: 1, 1, 512>}, {transform_indices = @transform_9, window_bounds = array<i64: 1, 1, 256>}]} {
    %cst = arith.constant 0.000000e+00 : f32
    %0 = vector.broadcast %cst : f32 to vector<288x32xf32>
    %c0 = arith.constant 0 : index
    %c0_0 = arith.constant 0 : index
    %1 = vector.load %arg11[%c0, %c0_0] : memref<288x32xf32, #tpu.memory_space<vmem>>, vector<288x32xf32>
    tpu.vector_store %arg11[%c0, %c0_0], %0 {strides = array<i32>} : memref<288x32xf32, #tpu.memory_space<vmem>>, vector<288x32xf32>,
    %c0_1 = arith.constant 0 : index
    %c0_2 = arith.constant 0 : index
    %c0_3 = arith.constant 0 : index
    %2 = vector.load %arg1[%c0_1, %c0_2, %c0_3] : memref<1x328x4xf32, #tpu.memory_space<vmem>>, vector<1x288x4xf32>
    %3 = vector.shape_cast %2 : vector<1x288x4xf32> to vector<288x4xf32>
    %c0_4 = arith.constant 0 : index
    %c0_5 = arith.constant 0 : index
    %4 = vector.load %arg11[%c0_4, %c0_5] : memref<288x32xf32, #tpu.memory_space<vmem>>, vector<288x32xf32>
    %c0_6 = arith.constant 0 : index
    %c0_7 = arith.constant 0 : index
    %c0_8 = arith.constant 0 : index
    %5 = vector.load %arg3[%c0_6, %c0_7, %c0_8] : memref<9x4x32xf32, #tpu.memory_space<vmem>>, vector<1x4x32xf32>
    %6 = vector.shape_cast %5 : vector<1x4x32xf32> to vector<4x32xf32>
    %cst_9 = arith.constant dense<0.000000e+00> : vector<288x32xf32>
    %7 = tpu.matmul %3, %6, %cst_9 {dimension_numbers = #tpu.dot_dimension_numbers<[1], [0], [0], [1], [0, 0, 1, 1], [], []>} : vector<288x4xf32>, vector<4x32xf32>, vector<288x32xf32> -> vector<288x32xf32>
    %8 = arith.addf %4, %7 : vector<288x32xf32>
    %c0_10 = arith.constant 0 : index
    %c0_11 = arith.constant 0 : index
    %9 = vector.load %arg11[%c0_10, %c0_11] : memref<288x32xf32, #tpu.memory_space<vmem>>, vector<288x32xf32>
    tpu.vector_store %arg11[%c0_10, %c0_11], %8 {strides = array<i32>} : memref<288x32xf32, #tpu.memory_space<vmem>>, vector<288x32xf32>,
    %c0_12 = arith.constant 0 : index
    %c1 = arith.constant 1 : index
    %c0_13 = arith.constant 0 : index
    %10 = vector.load %arg1[%c0_12, %c1, %c0_13] : memref<1x328x4xf32, #tpu.memory_space<vmem>>, vector<1x288x4xf32>
    %11 = vector.shape_cast %10 : vector<1x288x4xf32> to vector<288x4xf32>
    %c0_14 = arith.constant 0 : index
    %c0_15 = arith.constant 0 : index
    %12 = vector.load %arg11[%c0_14, %c0_15] : memref<288x32xf32, #tpu.memory_space<vmem>>, vector<288x32xf32>
    %c1_16 = arith.constant 1 : index
    %c0_17 = arith.constant 0 : index
    %c0_18 = arith.constant 0 : index
    %13 = vector.load %arg3[%c1_16, %c0_17, %c0_18] : memref<9x4x32xf32, #tpu.memory_space<vmem>>, vector<1x4x32xf32>
    %14 = vector.shape_cast %13 : vector<1x4x32xf32> to vector<4x32xf32>
    %cst_19 = arith.constant dense<0.000000e+00> : vector<288x32xf32>
    %15 = tpu.matmul %11, %14, %cst_19 {dimension_numbers = #tpu.dot_dimension_numbers<[1], [0], [0], [1], [0, 0, 1, 1], [], []>} : vector<288x4xf32>, vector<4x32xf32>, vector<288x32xf32> -> vector<288x32xf32>
    %16 = arith.addf %12, %15 : vector<288x32xf32>
    %c0_20 = arith.constant 0 : index
    %c0_21 = arith.constant 0 : index
    %17 = vector.load %arg11[%c0_20, %c0_21] : memref<288x32xf32, #tpu.memory_space<vmem>>, vector<288x32xf32>
    tpu.vector_store %arg11[%c0_20, %c0_21], %16 {strides = array<i32>} : memref<288x32xf32, #tpu.memory_space<vmem>>, vector<288x32xf32>,
    %c0_22 = arith.constant 0 : index
    %c2 = arith.constant 2 : index
    %c0_23 = arith.constant 0 : index
    %18 = vector.load %arg1[%c0_22, %c2, %c0_23] : memref<1x328x4xf32, #tpu.memory_space<vmem>>, vector<1x288x4xf32>
    %19 = vector.shape_cast %18 : vector<1x288x4xf32> to vector<288x4xf32>
    %c0_24 = arith.constant 0 : index
    %c0_25 = arith.constant 0 : index
    %20 = vector.load %arg11[%c0_24, %c0_25] : memref<288x32xf32, #tpu.memory_space<vmem>>, vector<288x32xf32>
    %c2_26 = arith.constant 2 : index
    %c0_27 = arith.constant 0 : index
    %c0_28 = arith.constant 0 : index
    %21 = vector.load %arg3[%c2_26, %c0_27, %c0_28] : memref<9x4x32xf32, #tpu.memory_space<vmem>>, vector<1x4x32xf32>
    %22 = vector.shape_cast %21 : vector<1x4x32xf32> to vector<4x32xf32>
    %cst_29 = arith.constant dense<0.000000e+00> : vector<288x32xf32>
    %23 = tpu.matmul %19, %22, %cst_29 {dimension_numbers = #tpu.dot_dimension_numbers<[1], [0], [0], [1], [0, 0, 1, 1], [], []>} : vector<288x4xf32>, vector<4x32xf32>, vector<288x32xf32> -> vector<288x32xf32>
    %24 = arith.addf %20, %23 : vector<288x32xf32>
    %c0_30 = arith.constant 0 : index
    %c0_31 = arith.constant 0 : index
    %25 = vector.load %arg11[%c0_30, %c0_31] : memref<288x32xf32, #tpu.memory_space<vmem>>, vector<288x32xf32>
    tpu.vector_store %arg11[%c0_30, %c0_31], %24 {strides = array<i32>} : memref<288x32xf32, #tpu.memory_space<vmem>>, vector<288x32xf32>,
    %c0_32 = arith.constant 0 : index
    %c18 = arith.constant 18 : index
    %c0_33 = arith.constant 0 : index
    %26 = vector.load %arg1[%c0_32, %c18, %c0_33] : memref<1x328x4xf32, #tpu.memory_space<vmem>>, vector<1x288x4xf32>
    %27 = vector.shape_cast %26 : vector<1x288x4xf32> to vector<288x4xf32>
    %c0_34 = arith.constant 0 : index
    %c0_35 = arith.constant 0 : index
    %28 = vector.load %arg11[%c0_34, %c0_35] : memref<288x32xf32, #tpu.memory_space<vmem>>, vector<288x32xf32>
    %c3 = arith.constant 3 : index
    %c0_36 = arith.constant 0 : index
    %c0_37 = arith.constant 0 : index
    %29 = vector.load %arg3[%c3, %c0_36, %c0_37] : memref<9x4x32xf32, #tpu.memory_space<vmem>>, vector<1x4x32xf32>
    %30 = vector.shape_cast %29 : vector<1x4x32xf32> to vector<4x32xf32>
    %cst_38 = arith.constant dense<0.000000e+00> : vector<288x32xf32>
    %31 = tpu.matmul %27, %30, %cst_38 {dimension_numbers = #tpu.dot_dimension_numbers<[1], [0], [0], [1], [0, 0, 1, 1], [], []>} : vector<288x4xf32>, vector<4x32xf32>, vector<288x32xf32> -> vector<288x32xf32>
    %32 = arith.addf %28, %31 : vector<288x32xf32>
    %c0_39 = arith.constant 0 : index
    %c0_40 = arith.constant 0 : index
    %33 = vector.load %arg11[%c0_39, %c0_40] : memref<288x32xf32, #tpu.memory_space<vmem>>, vector<288x32xf32>
    tpu.vector_store %arg11[%c0_39, %c0_40], %32 {strides = array<i32>} : memref<288x32xf32, #tpu.memory_space<vmem>>, vector<288x32xf32>,
    %c0_41 = arith.constant 0 : index
    %c19 = arith.constant 19 : index
    %c0_42 = arith.constant 0 : index
    %34 = vector.load %arg1[%c0_41, %c19, %c0_42] : memref<1x328x4xf32, #tpu.memory_space<vmem>>, vector<1x288x4xf32>
    %35 = vector.shape_cast %34 : vector<1x288x4xf32> to vector<288x4xf32>
    %c0_43 = arith.constant 0 : index
    %c0_44 = arith.constant 0 : index
    %36 = vector.load %arg11[%c0_43, %c0_44] : memref<288x32xf32, #tpu.memory_space<vmem>>, vector<288x32xf32>
    %c4 = arith.constant 4 : index
    %c0_45 = arith.constant 0 : index
    %c0_46 = arith.constant 0 : index
    %37 = vector.load %arg3[%c4, %c0_45, %c0_46] : memref<9x4x32xf32, #tpu.memory_space<vmem>>, vector<1x4x32xf32>
    %38 = vector.shape_cast %37 : vector<1x4x32xf32> to vector<4x32xf32>
    %cst_47 = arith.constant dense<0.000000e+00> : vector<288x32xf32>
    %39 = tpu.matmul %35, %38, %cst_47 {dimension_numbers = #tpu.dot_dimension_numbers<[1], [0], [0], [1], [0, 0, 1, 1], [], []>} : vector<288x4xf32>, vector<4x32xf32>, vector<288x32xf32> -> vector<288x32xf32>
    %40 = arith.addf %36, %39 : vector<288x32xf32>
    %c0_48 = arith.constant 0 : index
    %c0_49 = arith.constant 0 : index
    %41 = vector.load %arg11[%c0_48, %c0_49] : memref<288x32xf32, #tpu.memory_space<vmem>>, vector<288x32xf32>
    tpu.vector_store %arg11[%c0_48, %c0_49], %40 {strides = array<i32>} : memref<288x32xf32, #tpu.memory_space<vmem>>, vector<288x32xf32>,
    %c0_50 = arith.constant 0 : index
    %c20 = arith.constant 20 : index
    %c0_51 = arith.constant 0 : index
    %42 = vector.load %arg1[%c0_50, %c20, %c0_51] : memref<1x328x4xf32, #tpu.memory_space<vmem>>, vector<1x288x4xf32>
    %43 = vector.shape_cast %42 : vector<1x288x4xf32> to vector<288x4xf32>
    %c0_52 = arith.constant 0 : index
    %c0_53 = arith.constant 0 : index
    %44 = vector.load %arg11[%c0_52, %c0_53] : memref<288x32xf32, #tpu.memory_space<vmem>>, vector<288x32xf32>
    %c5 = arith.constant 5 : index
    %c0_54 = arith.constant 0 : index
    %c0_55 = arith.constant 0 : index
    %45 = vector.load %arg3[%c5, %c0_54, %c0_55] : memref<9x4x32xf32, #tpu.memory_space<vmem>>, vector<1x4x32xf32>
    %46 = vector.shape_cast %45 : vector<1x4x32xf32> to vector<4x32xf32>
    %cst_56 = arith.constant dense<0.000000e+00> : vector<288x32xf32>
    %47 = tpu.matmul %43, %46, %cst_56 {dimension_numbers = #tpu.dot_dimension_numbers<[1], [0], [0], [1], [0, 0, 1, 1], [], []>} : vector<288x4xf32>, vector<4x32xf32>, vector<288x32xf32> -> vector<288x32xf32>
    %48 = arith.addf %44, %47 : vector<288x32xf32>
    %c0_57 = arith.constant 0 : index
    %c0_58 = arith.constant 0 : index
    %49 = vector.load %arg11[%c0_57, %c0_58] : memref<288x32xf32, #tpu.memory_space<vmem>>, vector<288x32xf32>
    tpu.vector_store %arg11[%c0_57, %c0_58], %48 {strides = array<i32>} : memref<288x32xf32, #tpu.memory_space<vmem>>, vector<288x32xf32>,
    %c0_59 = arith.constant 0 : index
    %c36 = arith.constant 36 : index
    %c0_60 = arith.constant 0 : index
    %50 = vector.load %arg1[%c0_59, %c36, %c0_60] : memref<1x328x4xf32, #tpu.memory_space<vmem>>, vector<1x288x4xf32>
    %51 = vector.shape_cast %50 : vector<1x288x4xf32> to vector<288x4xf32>
    %c0_61 = arith.constant 0 : index
    %c0_62 = arith.constant 0 : index
    %52 = vector.load %arg11[%c0_61, %c0_62] : memref<288x32xf32, #tpu.memory_space<vmem>>, vector<288x32xf32>
    %c6 = arith.constant 6 : index
    %c0_63 = arith.constant 0 : index
    %c0_64 = arith.constant 0 : index
    %53 = vector.load %arg3[%c6, %c0_63, %c0_64] : memref<9x4x32xf32, #tpu.memory_space<vmem>>, vector<1x4x32xf32>
    %54 = vector.shape_cast %53 : vector<1x4x32xf32> to vector<4x32xf32>
    %cst_65 = arith.constant dense<0.000000e+00> : vector<288x32xf32>
    %55 = tpu.matmul %51, %54, %cst_65 {dimension_numbers = #tpu.dot_dimension_numbers<[1], [0], [0], [1], [0, 0, 1, 1], [], []>} : vector<288x4xf32>, vector<4x32xf32>, vector<288x32xf32> -> vector<288x32xf32>
    %56 = arith.addf %52, %55 : vector<288x32xf32>
    %c0_66 = arith.constant 0 : index
    %c0_67 = arith.constant 0 : index
    %57 = vector.load %arg11[%c0_66, %c0_67] : memref<288x32xf32, #tpu.memory_space<vmem>>, vector<288x32xf32>
    tpu.vector_store %arg11[%c0_66, %c0_67], %56 {strides = array<i32>} : memref<288x32xf32, #tpu.memory_space<vmem>>, vector<288x32xf32>,
    %c0_68 = arith.constant 0 : index
    %c37 = arith.constant 37 : index
    %c0_69 = arith.constant 0 : index
    %58 = vector.load %arg1[%c0_68, %c37, %c0_69] : memref<1x328x4xf32, #tpu.memory_space<vmem>>, vector<1x288x4xf32>
    %59 = vector.shape_cast %58 : vector<1x288x4xf32> to vector<288x4xf32>
    %c0_70 = arith.constant 0 : index
    %c0_71 = arith.constant 0 : index
    %60 = vector.load %arg11[%c0_70, %c0_71] : memref<288x32xf32, #tpu.memory_space<vmem>>, vector<288x32xf32>
    %c7 = arith.constant 7 : index
    %c0_72 = arith.constant 0 : index
    %c0_73 = arith.constant 0 : index
    %61 = vector.load %arg3[%c7, %c0_72, %c0_73] : memref<9x4x32xf32, #tpu.memory_space<vmem>>, vector<1x4x32xf32>
    %62 = vector.shape_cast %61 : vector<1x4x32xf32> to vector<4x32xf32>
    %cst_74 = arith.constant dense<0.000000e+00> : vector<288x32xf32>
    %63 = tpu.matmul %59, %62, %cst_74 {dimension_numbers = #tpu.dot_dimension_numbers<[1], [0], [0], [1], [0, 0, 1, 1], [], []>} : vector<288x4xf32>, vector<4x32xf32>, vector<288x32xf32> -> vector<288x32xf32>
    %64 = arith.addf %60, %63 : vector<288x32xf32>
    %c0_75 = arith.constant 0 : index
    %c0_76 = arith.constant 0 : index
    %65 = vector.load %arg11[%c0_75, %c0_76] : memref<288x32xf32, #tpu.memory_space<vmem>>, vector<288x32xf32>
    tpu.vector_store %arg11[%c0_75, %c0_76], %64 {strides = array<i32>} : memref<288x32xf32, #tpu.memory_space<vmem>>, vector<288x32xf32>,
    %c0_77 = arith.constant 0 : index
    %c38 = arith.constant 38 : index
    %c0_78 = arith.constant 0 : index
    %66 = vector.load %arg1[%c0_77, %c38, %c0_78] : memref<1x328x4xf32, #tpu.memory_space<vmem>>, vector<1x288x4xf32>
    %67 = vector.shape_cast %66 : vector<1x288x4xf32> to vector<288x4xf32>
    %c0_79 = arith.constant 0 : index
    %c0_80 = arith.constant 0 : index
    %68 = vector.load %arg11[%c0_79, %c0_80] : memref<288x32xf32, #tpu.memory_space<vmem>>, vector<288x32xf32>
    %c8 = arith.constant 8 : index
    %c0_81 = arith.constant 0 : index
    %c0_82 = arith.constant 0 : index
    %69 = vector.load %arg3[%c8, %c0_81, %c0_82] : memref<9x4x32xf32, #tpu.memory_space<vmem>>, vector<1x4x32xf32>
    %70 = vector.shape_cast %69 : vector<1x4x32xf32> to vector<4x32xf32>
    %cst_83 = arith.constant dense<0.000000e+00> : vector<288x32xf32>
    %71 = tpu.matmul %67, %70, %cst_83 {dimension_numbers = #tpu.dot_dimension_numbers<[1], [0], [0], [1], [0, 0, 1, 1], [], []>} : vector<288x4xf32>, vector<4x32xf32>, vector<288x32xf32> -> vector<288x32xf32>
    %72 = arith.addf %68, %71 : vector<288x32xf32>
    %c0_84 = arith.constant 0 : index
    %c0_85 = arith.constant 0 : index
    %73 = vector.load %arg11[%c0_84, %c0_85] : memref<288x32xf32, #tpu.memory_space<vmem>>, vector<288x32xf32>
    tpu.vector_store %arg11[%c0_84, %c0_85], %72 {strides = array<i32>} : memref<288x32xf32, #tpu.memory_space<vmem>>, vector<288x32xf32>,
    %c0_86 = arith.constant 0 : index
    %c0_87 = arith.constant 0 : index
    %74 = vector.load %arg11[%c0_86, %c0_87] : memref<288x32xf32, #tpu.memory_space<vmem>>, vector<288x32xf32>
    %c0_88 = arith.constant 0 : index
    %c0_89 = arith.constant 0 : index
    %75 = vector.load %arg4[%c0_88, %c0_89] : memref<1x32xf32, #tpu.memory_space<vmem>>, vector<1x32xf32>
    %76 = vector.broadcast %75 : vector<1x32xf32> to vector<288x32xf32>
    %77 = arith.addf %74, %76 : vector<288x32xf32>
    %cst_90 = arith.constant 0.000000e+00 : f32
    %78 = vector.broadcast %cst_90 : f32 to vector<288x32xf32>
    %79 = arith.maximumf %77, %78 : vector<288x32xf32>
    %c0_91 = arith.constant 0 : index
    %c0_92 = arith.constant 0 : index
    %80 = vector.load %arg2[%c0_91, %c0_92] : memref<288x1xf32, #tpu.memory_space<vmem>>, vector<288x1xf32>
    %81 = vector.broadcast %80 : vector<288x1xf32> to vector<288x32xf32>
    %82 = arith.mulf %79, %81 : vector<288x32xf32>
    %cst_93 = arith.constant dense<0.000000e+00> : vector<32xf32>
    %83 = vector.multi_reduction <add>, %82, %cst_93 [0] : vector<288x32xf32> to vector<32xf32>
    %84 = vector.shape_cast %83 : vector<32xf32> to vector<1x32xf32>
    %c0_94 = arith.constant 0 : index
    %c0_95 = arith.constant 0 : index
    %85 = vector.load %arg5[%c0_94, %c0_95] : memref<32x512xf32, #tpu.memory_space<vmem>>, vector<32x512xf32>
    %cst_96 = arith.constant dense<0.000000e+00> : vector<1x512xf32>
    %86 = tpu.matmul %84, %85, %cst_96 {dimension_numbers = #tpu.dot_dimension_numbers<[1], [0], [0], [1], [0, 0, 1, 1], [], []>} : vector<1x32xf32>, vector<32x512xf32>, vector<1x512xf32> -> vector<1x512xf32>
    %c0_97 = arith.constant 0 : index
    %c0_98 = arith.constant 0 : index
    %87 = vector.load %arg6[%c0_97, %c0_98] : memref<1x512xf32, #tpu.memory_space<vmem>>, vector<1x512xf32>
    %88 = arith.addf %86, %87 : vector<1x512xf32>
    %89 = arith.mulf %88, %88 : vector<1x512xf32>
    %cst_99 = arith.constant dense<0.000000e+00> : vector<1xf32>
    %90 = vector.multi_reduction <add>, %89, %cst_99 [1] : vector<1x512xf32> to vector<1xf32>
    %91 = vector.shape_cast %90 : vector<1xf32> to vector<1x1xf32>
    %cst_100 = arith.constant 1.000000e-24 : f32
    %92 = vector.broadcast %cst_100 : f32 to vector<1x1xf32>
    %93 = arith.maximumf %91, %92 : vector<1x1xf32>
    %94 = math.rsqrt %93 : vector<1x1xf32>
    %95 = vector.broadcast %94 : vector<1x1xf32> to vector<1x512xf32>
    %96 = arith.mulf %88, %95 : vector<1x512xf32>
    %c0_101 = arith.constant 0 : index
    %c0_102 = arith.constant 0 : index
    %c0_103 = arith.constant 0 : index
    %97 = vector.load %arg9[%c0_101, %c0_102, %c0_103] : memref<1x1x512xf32, #tpu.memory_space<vmem>>, vector<1x1x512xf32>
    %98 = vector.shape_cast %97 : vector<1x1x512xf32> to vector<1x512xf32>
    %99 = vector.shape_cast %96 : vector<1x512xf32> to vector<1x1x512xf32>
    tpu.vector_store %arg9[%c0_101, %c0_102, %c0_103], %99 {strides = array<i32>} : memref<1x1x512xf32, #tpu.memory_space<vmem>>, vector<1x1x512xf32>,
    %c0_104 = arith.constant 0 : index
    %c0_105 = arith.constant 0 : index
    %100 = vector.load %arg7[%c0_104, %c0_105] : memref<512x256xf32, #tpu.memory_space<vmem>>, vector<512x256xf32>
    %cst_106 = arith.constant dense<0.000000e+00> : vector<1x256xf32>
    %101 = tpu.matmul %96, %100, %cst_106 {dimension_numbers = #tpu.dot_dimension_numbers<[1], [0], [0], [1], [0, 0, 1, 1], [], []>} : vector<1x512xf32>, vector<512x256xf32>, vector<1x256xf32> -> vector<1x256xf32>
    %c0_107 = arith.constant 0 : index
    %c0_108 = arith.constant 0 : index
    %102 = vector.load %arg8[%c0_107, %c0_108] : memref<1x256xf32, #tpu.memory_space<vmem>>, vector<1x256xf32>
    %103 = arith.addf %101, %102 : vector<1x256xf32>
    %c0_109 = arith.constant 0 : index
    %c0_110 = arith.constant 0 : index
    %c0_111 = arith.constant 0 : index
    %104 = vector.load %arg10[%c0_109, %c0_110, %c0_111] : memref<1x1x256xf32, #tpu.memory_space<vmem>>, vector<1x1x256xf32>
    %105 = vector.shape_cast %104 : vector<1x1x256xf32> to vector<1x256xf32>
    %106 = vector.shape_cast %103 : vector<1x256xf32> to vector<1x1x256xf32>
    tpu.vector_store %arg10[%c0_109, %c0_110, %c0_111], %106 {strides = array<i32>} : memref<1x1x256xf32, #tpu.memory_space<vmem>>, vector<1x1x256xf32>,
    return
  }
  func.func @transform_0(%arg0: i32) -> (i32, i32, i32) {
    %c0_i32 = arith.constant 0 : i32
    %c0_i32_0 = arith.constant 0 : i32
    %c0_i32_1 = arith.constant 0 : i32
    return %arg0, %c0_i32, %c0_i32_0 : i32, i32, i32
  }
  func.func @transform_1(%arg0: i32) -> (i32, i32) {
    %c0_i32 = arith.constant 0 : i32
    %c0_i32_0 = arith.constant 0 : i32
    %c0_i32_1 = arith.constant 0 : i32
    return %c0_i32, %c0_i32_0 : i32, i32
  }
  func.func @transform_2(%arg0: i32) -> (i32, i32, i32) {
    %c0_i32 = arith.constant 0 : i32
    %c0_i32_0 = arith.constant 0 : i32
    %c0_i32_1 = arith.constant 0 : i32
    %c0_i32_2 = arith.constant 0 : i32
    return %c0_i32, %c0_i32_0, %c0_i32_1 : i32, i32, i32
  }
  func.func @transform_3(%arg0: i32) -> (i32, i32) {
    %c0_i32 = arith.constant 0 : i32
    %c0_i32_0 = arith.constant 0 : i32
    %c0_i32_1 = arith.constant 0 : i32
    return %c0_i32, %c0_i32_0 : i32, i32
  }
  func.func @transform_4(%arg0: i32) -> (i32, i32) {
    %c0_i32 = arith.constant 0 : i32
    %c0_i32_0 = arith.constant 0 : i32
    %c0_i32_1 = arith.constant 0 : i32
    return %c0_i32, %c0_i32_0 : i32, i32
  }
  func.func @transform_5(%arg0: i32) -> (i32, i32) {
    %c0_i32 = arith.constant 0 : i32
    %c0_i32_0 = arith.constant 0 : i32
    %c0_i32_1 = arith.constant 0 : i32
    return %c0_i32, %c0_i32_0 : i32, i32
  }
  func.func @transform_6(%arg0: i32) -> (i32, i32) {
    %c0_i32 = arith.constant 0 : i32
    %c0_i32_0 = arith.constant 0 : i32
    %c0_i32_1 = arith.constant 0 : i32
    return %c0_i32, %c0_i32_0 : i32, i32
  }
  func.func @transform_7(%arg0: i32) -> (i32, i32) {
    %c0_i32 = arith.constant 0 : i32
    %c0_i32_0 = arith.constant 0 : i32
    %c0_i32_1 = arith.constant 0 : i32
    return %c0_i32, %c0_i32_0 : i32, i32
  }
  func.func @transform_8(%arg0: i32) -> (i32, i32, i32) {
    %c0_i32 = arith.constant 0 : i32
    %c0_i32_0 = arith.constant 0 : i32
    %c0_i32_1 = arith.constant 0 : i32
    return %arg0, %c0_i32, %c0_i32_0 : i32, i32, i32
  }
  func.func @transform_9(%arg0: i32) -> (i32, i32, i32) {
    %c0_i32 = arith.constant 0 : i32
    %c0_i32_0 = arith.constant 0 : i32
    %c0_i32_1 = arith.constant 0 : i32
    return %arg0, %c0_i32, %c0_i32_0 : i32, i32, i32
  }
}

</mosaic_0001>

<llo_original>
// kernel: tpu_custom_call.1
$region0: #{tpu_custom_call.1}
  #allocation0 [shape = 'u32[]', space=smem, size = 0x4, offset = 0x4, fixed_abs, tag = 'smem constant byte address 0x4 - core index']
  #allocation1 [shape = 'u32[72,128]{1,0:T(1,128)}', space=vmem, size = 0x9000, scoped, tag = 'internal scratch']
  #allocation2 [shape = 'f32[288,32]{1,0:T(8,128)}', space=vmem, size = 0x24000, scoped, tag = 'scratch operand']
  %s0 = inlined_call_operand.vmem [shape: f32[2,328,4], index: 0, kind: input, shape index: {}]
  %s1 = inlined_call_operand.vmem [shape: f32[288,1], index: 1, kind: input, shape index: {}]
  %s2 = inlined_call_operand.vmem [shape: f32[9,4,32], index: 2, kind: input, shape index: {}]
  %s3 = inlined_call_operand.vmem [shape: f32[1,32], index: 3, kind: input, shape index: {}]
  %s4 = inlined_call_operand.vmem [shape: f32[32,512], index: 4, kind: input, shape index: {}]
  %s5 = inlined_call_operand.vmem [shape: f32[1,512], index: 5, kind: input, shape index: {}]
  %s6 = inlined_call_operand.hbm [shape: f32[512,256], index: 6, kind: input, shape index: {}]
  %s7 = inlined_call_operand.vmem [shape: f32[1,256], index: 7, kind: input, shape index: {}]
  %s8 = inlined_call_operand.hbm [shape: f32[2,1,512], index: 8, kind: output, shape index: {0}]
  %s9 = inlined_call_operand.hbm [shape: f32[2,1,256], index: 9, kind: output, shape index: {1}]
  %10 = xla_tuple %s8, %s9
  %s11 = sld [smem:[#allocation0]]
  $region77: #{tpu_custom_call.1} parent=0
    _
  %s13 = ssub.s32 1, %s11
  %s14 = scalar_select 0, %s13, %s11
  $region1: #{tpu_custom_call.1} parent=0
    #allocation3 [shape = 'u8[524288]{0}', space=vmem, size = 0x80000, scoped, tag = 'input window, operand 6, single buffered']
    #allocation4 [shape = 's32[2]{0}', space=sflag, size = 0x8, scoped, tag = 'scoped memory for tpu_custom_call.1']
    #allocation5 [shape = 's32[2]{0}', space=sflag, size = 0x8, scoped, tag = 'scoped memory for tpu_custom_call.1']
    #allocation6 [shape = 'u8[4096]{0}', space=vmem, size = 0x1000, scoped, tag = 'output window, operand 0']
    #allocation7 [shape = 'u8[2048]{0}', space=vmem, size = 0x800, scoped, tag = 'output window, operand 1']
    #allocation8 [shape = 's32[2]{0}', space=sflag, size = 0x8, scoped, tag = 'scoped memory for tpu_custom_call.1']
    %15 = vsyncpa [#allocation4], 0
    %16 = vsyncpa [#allocation5], 0
    %s17 = scalar_lea.sflag [#allocation5], 1
    %18 = vsyncpa %s17, 0
    %19 = vsyncpa [#allocation8], 0
    %s20 = scalar_lea.sflag [#allocation8], 1
    %21 = vsyncpa %s20, 0
    loop: start=0, step=1, limit=4
    $region2: #{tpu_custom_call.1} parent=1 // loop_pre_header
      _
    $region3: #{tpu_custom_call.1} parent=1 // loop_header
      %s23 = sphi 0, %s27
      %p24 = scmp.ge.s32.totalorder %s23, 4
      %s33 = sphi 0, %s35
      %s36 = sphi 0, %s33
      %s37 = sphi 0, %s36
      %s53 = sphi 0, %s37
      %s57 = sphi 0, %s57
      %s59 = sphi 0, %s57
      %s60 = sphi 0, %s59
      %s74 = sphi 0, %s60
      %s78 = sphi 0, %s78
      %s80 = sphi 0, %s78
      %s81 = sphi 0, %s80
      %s95 = sphi 0, %s81
      %s99 = sphi 0, %s99
      %s101 = sphi 0, %s99
      %s102 = sphi 0, %s101
      %s116 = sphi 0, %s102
      %s120 = sphi 0, %s120
      %s122 = sphi 0, %s120
      %s123 = sphi 0, %s122
      %s137 = sphi 0, %s123
      %s141 = sphi 0, %s141
      %s143 = sphi 0, %s141
      %s144 = sphi 0, %s143
      %s158 = sphi 0, %s144
      %s162 = sphi 0, %s162
      %s164 = sphi 0, %s162
      %s165 = sphi 0, %s164
      %s179 = sphi 0, %s165
      %s183 = sphi 0, %s183
      %s185 = sphi 0, %s183
      %s186 = sphi 0, %s185
      %s200 = sphi 0, %s186
      %s206 = sphi 0, %s208
      %s209 = sphi 0, %s206
      %s210 = sphi 0, %s209
      %s226 = sphi 0, %s210
      %s232 = sphi 0, %s234
      %s235 = sphi 0, %s232
      %s236 = sphi 0, %s235
      %s252 = sphi 0, %s236
    $region4: #{tpu_custom_call.1} parent=1 // loop_header_branch
      %26 = sbr.rel (%p24) target = $region8
    $region5: #{tpu_custom_call.1} parent=1 // loop_body
      %s28 = ssub.s32 %s23, 1
      %s29 = ssub.s32 %s23, 2
      %s30 = sadd.s32 %s23, 1
      %s31 = ssub.s32 %s23, %s30
      %p32 = scmp.eq.s32.totalorder %s31, 0
      %s34 = sadd.s32 %s33, 1
      %s35 = scalar_select %p32, %s33, %s34
      %p38 = pneg %p32
      %p39 = scmp.eq.s32.totalorder %s23, 1
      %p40 = por %p38, %p39
      %p41 = scmp.ne.s32.totalorder %s33, %s36
      %p42 = scmp.eq.s32.totalorder %s23, 0
      %p43 = por %p41, %p42
      %p44 = scmp.ne.s32.totalorder %s33, %s36
      %p45 = scmp.eq.s32.totalorder %s28, 1
      %p46 = por %p44, %p45
      %p47 = scmp.ne.s32.totalorder %s36, %s37
      %p48 = scmp.eq.s32.totalorder %s28, 0
      %p49 = por %p47, %p48
      %p50 = scmp.ne.s32.totalorder %s36, %s37
      %p51 = scmp.eq.s32.totalorder %s29, 1
      %p52 = por %p50, %p51
      %p54 = scmp.ne.s32.totalorder %s37, %s53
      %p55 = scmp.eq.s32.totalorder %s29, 0
      %p56 = por %p54, %p55
      %s58 = sadd.s32 %s57, 1
      %p61 = scmp.eq.s32.totalorder %s23, 1
      %p62 = scmp.ne.s32.totalorder %s57, %s59
      %p63 = scmp.eq.s32.totalorder %s23, 0
      %p64 = por %p62, %p63
      %p65 = scmp.ne.s32.totalorder %s57, %s59
      %p66 = scmp.eq.s32.totalorder %s28, 1
      %p67 = por %p65, %p66
      %p68 = scmp.ne.s32.totalorder %s59, %s60
      %p69 = scmp.eq.s32.totalorder %s28, 0
      %p70 = por %p68, %p69
      %p71 = scmp.ne.s32.totalorder %s59, %s60
      %p72 = scmp.eq.s32.totalorder %s29, 1
      %p73 = por %p71, %p72
      %p75 = scmp.ne.s32.totalorder %s60, %s74
      %p76 = scmp.eq.s32.totalorder %s29, 0
      %p77 = por %p75, %p76
      %s79 = sadd.s32 %s78, 1
      %p82 = scmp.eq.s32.totalorder %s23, 1
      %p83 = scmp.ne.s32.totalorder %s78, %s80
      %p84 = scmp.eq.s32.totalorder %s23, 0
      %p85 = por %p83, %p84
      %p86 = scmp.ne.s32.totalorder %s78, %s80
      %p87 = scmp.eq.s32.totalorder %s28, 1
      %p88 = por %p86, %p87
      %p89 = scmp.ne.s32.totalorder %s80, %s81
      %p90 = scmp.eq.s32.totalorder %s28, 0
      %p91 = por %p89, %p90
      %p92 = scmp.ne.s32.totalorder %s80, %s81
      %p93 = scmp.eq.s32.totalorder %s29, 1
      %p94 = por %p92, %p93
      %p96 = scmp.ne.s32.totalorder %s81, %s95
      %p97 = scmp.eq.s32.totalorder %s29, 0
      %p98 = por %p96, %p97
      %s100 = sadd.s32 %s99, 1
      %p103 = scmp.eq.s32.totalorder %s23, 1
      %p104 = scmp.ne.s32.totalorder %s99, %s101
      %p105 = scmp.eq.s32.totalorder %s23, 0
      %p106 = por %p104, %p105
      %p107 = scmp.ne.s32.totalorder %s99, %s101
      %p108 = scmp.eq.s32.totalorder %s28, 1
      %p109 = por %p107, %p108
      %p110 = scmp.ne.s32.totalorder %s101, %s102
      %p111 = scmp.eq.s32.totalorder %s28, 0
      %p112 = por %p110, %p111
      %p113 = scmp.ne.s32.totalorder %s101, %s102
      %p114 = scmp.eq.s32.totalorder %s29, 1
      %p115 = por %p113, %p114
      %p117 = scmp.ne.s32.totalorder %s102, %s116
      %p118 = scmp.eq.s32.totalorder %s29, 0
      %p119 = por %p117, %p118
      %s121 = sadd.s32 %s120, 1
      %p124 = scmp.eq.s32.totalorder %s23, 1
      %p125 = scmp.ne.s32.totalorder %s120, %s122
      %p126 = scmp.eq.s32.totalorder %s23, 0
      %p127 = por %p125, %p126
      %p128 = scmp.ne.s32.totalorder %s120, %s122
      %p129 = scmp.eq.s32.totalorder %s28, 1
      %p130 = por %p128, %p129
      %p131 = scmp.ne.s32.totalorder %s122, %s123
      %p132 = scmp.eq.s32.totalorder %s28, 0
      %p133 = por %p131, %p132
      %p134 = scmp.ne.s32.totalorder %s122, %s123
      %p135 = scmp.eq.s32.totalorder %s29, 1
      %p136 = por %p134, %p135
      %p138 = scmp.ne.s32.totalorder %s123, %s137
      %p139 = scmp.eq.s32.totalorder %s29, 0
      %p140 = por %p138, %p139
      %s142 = sadd.s32 %s141, 1
      %p145 = scmp.eq.s32.totalorder %s23, 1
      %p146 = scmp.ne.s32.totalorder %s141, %s143
      %p147 = scmp.eq.s32.totalorder %s23, 0
      %p148 = por %p146, %p147
      %p149 = scmp.ne.s32.totalorder %s141, %s143
      %p150 = scmp.eq.s32.totalorder %s28, 1
      %p151 = por %p149, %p150
      %p152 = scmp.ne.s32.totalorder %s143, %s144
      %p153 = scmp.eq.s32.totalorder %s28, 0
      %p154 = por %p152, %p153
      %p155 = scmp.ne.s32.totalorder %s143, %s144
      %p156 = scmp.eq.s32.totalorder %s29, 1
      %p157 = por %p155, %p156
      %p159 = scmp.ne.s32.totalorder %s144, %s158
      %p160 = scmp.eq.s32.totalorder %s29, 0
      %p161 = por %p159, %p160
      %s163 = sadd.s32 %s162, 1
      %p166 = scmp.eq.s32.totalorder %s23, 1
      %p167 = scmp.ne.s32.totalorder %s162, %s164
      %p168 = scmp.eq.s32.totalorder %s23, 0
      %p169 = por %p167, %p168
      %p170 = scmp.ne.s32.totalorder %s162, %s164
      %p171 = scmp.eq.s32.totalorder %s28, 1
      %p172 = por %p170, %p171
      %p173 = scmp.ne.s32.totalorder %s164, %s165
      %p174 = scmp.eq.s32.totalorder %s28, 0
      %p175 = por %p173, %p174
      %p176 = scmp.ne.s32.totalorder %s164, %s165
      %p177 = scmp.eq.s32.totalorder %s29, 1
      %p178 = por %p176, %p177
      %p180 = scmp.ne.s32.totalorder %s165, %s179
      %p181 = scmp.eq.s32.totalorder %s29, 0
      %p182 = por %p180, %p181
      %s184 = sadd.s32 %s183, 1
      %p187 = scmp.eq.s32.totalorder %s23, 1
      %p188 = scmp.ne.s32.totalorder %s183, %s185
      %p189 = scmp.eq.s32.totalorder %s23, 0
      %p190 = por %p188, %p189
      %p191 = scmp.ne.s32.totalorder %s183, %s185
      %p192 = scmp.eq.s32.totalorder %s28, 1
      %p193 = por %p191, %p192
      %p194 = scmp.ne.s32.totalorder %s185, %s186
      %p195 = scmp.eq.s32.totalorder %s28, 0
      %p196 = por %p194, %p195
      %p197 = scmp.ne.s32.totalorder %s185, %s186
      %p198 = scmp.eq.s32.totalorder %s29, 1
      %p199 = por %p197, %p198
      %p201 = scmp.ne.s32.totalorder %s186, %s200
      %p202 = scmp.eq.s32.totalorder %s29, 0
      %p203 = por %p201, %p202
      %s204 = ssub.s32 %s23, %s30
      %p205 = scmp.eq.s32.totalorder %s204, 0
      %s207 = sadd.s32 %s206, 1
      %s208 = scalar_select %p205, %s206, %s207
      %p211 = pneg %p205
      %p212 = scmp.eq.s32.totalorder %s23, 1
      %p213 = por %p211, %p212
      %p214 = scmp.ne.s32.totalorder %s206, %s209
      %p215 = scmp.eq.s32.totalorder %s23, 0
      %p216 = por %p214, %p215
      %p217 = scmp.ne.s32.totalorder %s206, %s209
      %p218 = scmp.eq.s32.totalorder %s28, 1
      %p219 = por %p217, %p218
      %p220 = scmp.ne.s32.totalorder %s209, %s210
      %p221 = scmp.eq.s32.totalorder %s28, 0
      %p222 = por %p220, %p221
      %p223 = scmp.ne.s32.totalorder %s209, %s210
      %p224 = scmp.eq.s32.totalorder %s29, 1
      %p225 = por %p223, %p224
      %p227 = scmp.ne.s32.totalorder %s210, %s226
      %p228 = scmp.eq.s32.totalorder %s29, 0
      %p229 = por %p227, %p228
      %s230 = ssub.s32 %s23, %s30
      %p231 = scmp.eq.s32.totalorder %s230, 0
      %s233 = sadd.s32 %s232, 1
      %s234 = scalar_select %p231, %s232, %s233
      %p237 = pneg %p231
      %p238 = scmp.eq.s32.totalorder %s23, 1
      %p239 = por %p237, %p238
      %p240 = scmp.ne.s32.totalorder %s232, %s235
      %p241 = scmp.eq.s32.totalorder %s23, 0
      %p242 = por %p240, %p241
      %p243 = scmp.ne.s32.totalorder %s232, %s235
      %p244 = scmp.eq.s32.totalorder %s28, 1
      %p245 = por %p243, %p244
      %p246 = scmp.ne.s32.totalorder %s235, %s236
      %p247 = scmp.eq.s32.totalorder %s28, 0
      %p248 = por %p246, %p247
      %p249 = scmp.ne.s32.totalorder %s235, %s236
      %p250 = scmp.eq.s32.totalorder %s29, 1
      %p251 = por %p249, %p250
      %p253 = scmp.ne.s32.totalorder %s236, %s252
      %p254 = scmp.eq.s32.totalorder %s29, 0
      %p255 = por %p253, %p254
      %p256 = scmp.le.s32.totalorder 1, %s23
      %p257 = scmp.lt.s32.totalorder %s23, 3
      %p258 = pnand %p256, %p257
      %p259 = pneg %p258
      // Predicated region
      $region9: #{tpu_custom_call.1} parent=5 // pred_check
        _
      $region10: #{tpu_custom_call.1} parent=5 // pred_check_branch
        %261 = sbr.rel (%p258) target = $region12
      $region11: #{tpu_custom_call.1} parent=5 // pred_region
        %s262 = ssub.s32 %s23, 1
        // Predicated region
        $region13: #{tpu_custom_call.1} parent=11 // pred_check
          %p263 = pneg %p70
        $region14: #{tpu_custom_call.1} parent=11 // pred_check_branch
          %265 = sbr.rel (%p263) target = $region16
        $region15: #{tpu_custom_call.1} parent=11 // pred_region
          _
        $region16: #{tpu_custom_call.1} parent=11 // pred_fallthru
          _
        // Predicated region
        $region17: #{tpu_custom_call.1} parent=11 // pred_check
          %p266 = pneg %p91
        $region18: #{tpu_custom_call.1} parent=11 // pred_check_branch
          %268 = sbr.rel (%p266) target = $region20
        $region19: #{tpu_custom_call.1} parent=11 // pred_region
          _
        $region20: #{tpu_custom_call.1} parent=11 // pred_fallthru
          _
        // Predicated region
        $region21: #{tpu_custom_call.1} parent=11 // pred_check
          %p269 = pneg %p112
        $region22: #{tpu_custom_call.1} parent=11 // pred_check_branch
          %271 = sbr.rel (%p269) target = $region24
        $region23: #{tpu_custom_call.1} parent=11 // pred_region
          _
        $region24: #{tpu_custom_call.1} parent=11 // pred_fallthru
          _
        // Predicated region
        $region25: #{tpu_custom_call.1} parent=11 // pred_check
          %p272 = pneg %p133
        $region26: #{tpu_custom_call.1} parent=11 // pred_check_branch
          %274 = sbr.rel (%p272) target = $region28
        $region27: #{tpu_custom_call.1} parent=11 // pred_region
          _
        $region28: #{tpu_custom_call.1} parent=11 // pred_fallthru
          _
        // Predicated region
        $region29: #{tpu_custom_call.1} parent=11 // pred_check
          %p275 = pneg %p154
        $region30: #{tpu_custom_call.1} parent=11 // pred_check_branch
          %277 = sbr.rel (%p275) target = $region32
        $region31: #{tpu_custom_call.1} parent=11 // pred_region
          _
        $region32: #{tpu_custom_call.1} parent=11 // pred_fallthru
          _
        // Predicated region
        $region33: #{tpu_custom_call.1} parent=11 // pred_check
          %p278 = pneg %p175
        $region34: #{tpu_custom_call.1} parent=11 // pred_check_branch
          %280 = sbr.rel (%p278) target = $region36
        $region35: #{tpu_custom_call.1} parent=11 // pred_region
          %282 = vsyncadd [#allocation4], 0
          %s283 = sshll.u32 %s6, 4
          %s284 = int_to_ptr.hbm [resolvable:$true] %s283
          %s285 = sshll.u32 [#allocation3], 4
          %s286 = int_to_ptr.vmem [resolvable:$true] %s285
          %291 = dma.hbm_to_vmem [thread:$0]  %s284, 16384, %s286, [#allocation4], 256, 256, 16
        $region36: #{tpu_custom_call.1} parent=11 // pred_fallthru
          _
        // Predicated region
        $region37: #{tpu_custom_call.1} parent=11 // pred_check
          %p292 = pneg %p196
        $region38: #{tpu_custom_call.1} parent=11 // pred_check_branch
          %294 = sbr.rel (%p292) target = $region40
        $region39: #{tpu_custom_call.1} parent=11 // pred_region
          _
        $region40: #{tpu_custom_call.1} parent=11 // pred_fallthru
          _
      $region12: #{tpu_custom_call.1} parent=5 // pred_fallthru
        _
      %p295 = scmp.lt.s32.totalorder %s23, 2
      // Predicated region
      $region41: #{tpu_custom_call.1} parent=5 // pred_check
        %p296 = pneg %p295
      $region42: #{tpu_custom_call.1} parent=5 // pred_check_branch
        %298 = sbr.rel (%p296) target = $region44
      $region43: #{tpu_custom_call.1} parent=5 // pred_region
        // Predicated region
        $region45: #{tpu_custom_call.1} parent=43 // pred_check
          %p299 = pneg %p43
        $region46: #{tpu_custom_call.1} parent=43 // pred_check_branch
          %301 = sbr.rel (%p299) target = $region48
        $region47: #{tpu_custom_call.1} parent=43 // pred_region
          %p302 = scmp.lt.s32.totalorder %s23, 1
          %s303 = scalar_select %p302, %s23, 1
          %s304 = smul.addr %s303, 41
          %s305 = smul.addr %s304, 8
          %s306 = scalar_lea.vmem %s0, %s305
        $region48: #{tpu_custom_call.1} parent=43 // pred_fallthru
          _
      $region44: #{tpu_custom_call.1} parent=5 // pred_fallthru
        _
      %p307 = scmp.le.s32.totalorder 1, %s23
      %p308 = scmp.lt.s32.totalorder %s23, 3
      %p309 = pnand %p307, %p308
      %p310 = pneg %p309
      // Predicated region
      $region49: #{tpu_custom_call.1} parent=5 // pred_check
        _
      $region50: #{tpu_custom_call.1} parent=5 // pred_check_branch
        %312 = sbr.rel (%p309) target = $region52
      $region51: #{tpu_custom_call.1} parent=5 // pred_region
        %s313 = ssub.s32 %s23, 1
        // Predicated region
        $region53: #{tpu_custom_call.1} parent=51 // pred_check
          %p314 = pneg %p175
        $region54: #{tpu_custom_call.1} parent=51 // pred_check_branch
          %316 = sbr.rel (%p314) target = $region56
        $region55: #{tpu_custom_call.1} parent=51 // pred_region
          %318 = dma.done [#allocation4], 16384
        $region56: #{tpu_custom_call.1} parent=51 // pred_fallthru
          _
        %p319 = scmp.lt.s32.totalorder %s28, 1
        %s320 = scalar_select %p319, %s28, 1
        %s321 = smul.addr %s320, 41
        %s322 = smul.addr %s321, 8
        %s323 = scalar_lea.vmem %s0, %s322
        %p324 = pneg %p49
        %p325 = pneg %p46
        %p326 = pneg %p70
        %p327 = pneg %p67
        %p328 = pneg %p91
        %p329 = pneg %p88
        %p330 = pneg %p112
        %p331 = pneg %p109
        %p332 = pneg %p133
        %p333 = pneg %p130
        %p334 = pneg %p154
        %p335 = pneg %p151
        %p336 = pneg %p175
        %p337 = pneg %p172
        %p338 = pneg %p196
        %p339 = pneg %p193
        %p340 = pneg %p222
        %p341 = pneg %p219
        %s342 = sand.u32 %s209, 1
        %s343 = scalar_lea.sflag [#allocation5], %s342
        %s344 = sand.u32 %s209, 1
        %s345 = smul.addr %s344, 4
        %s346 = scalar_lea.vmem [#allocation6], %s345
        %p347 = pneg %p248
        %p348 = pneg %p245
        %s349 = sand.u32 %s235, 1
        %s350 = scalar_lea.sflag [#allocation8], %s349
        %s351 = sand.u32 %s235, 1
        %s352 = smul.addr %s351, 2
        %s353 = scalar_lea.vmem [#allocation7], %s352
        %p354 = scmp.lt.s32.totalorder %s28, 1
        %s355 = scalar_select %p354, %s28, 1
        %s356 = smul.addr %s355, 41
        %s357 = smul.addr %s356, 8
        %s358 = scalar_lea.vmem %s0, %s357
        %vm359 = vcmask 261120
        %360 = vst.msk [vmem:[#allocation2] sm:$0xff] %vm359, 0.0
        %361 = vst.msk [vmem:[#allocation2 + $0x8] sm:$0xff] %vm359, 0.0
        %362 = vst.msk [vmem:[#allocation2 + $0x10] sm:$0xff] %vm359, 0.0
        %363 = vst.msk [vmem:[#allocation2 + $0x18] sm:$0xff] %vm359, 0.0
        %364 = vst.msk [vmem:[#allocation2 + $0x20] sm:$0xff] %vm359, 0.0
        %365 = vst.msk [vmem:[#allocation2 + $0x28] sm:$0xff] %vm359, 0.0
        %366 = vst.msk [vmem:[#allocation2 + $0x30] sm:$0xff] %vm359, 0.0
        %367 = vst.msk [vmem:[#allocation2 + $0x38] sm:$0xff] %vm359, 0.0
        %368 = vst.msk [vmem:[#allocation2 + $0x40] sm:$0xff] %vm359, 0.0
        %369 = vst.msk [vmem:[#allocation2 + $0x48] sm:$0xff] %vm359, 0.0
        %370 = vst.msk [vmem:[#allocation2 + $0x50] sm:$0xff] %vm359, 0.0
        %371 = vst.msk [vmem:[#allocation2 + $0x58] sm:$0xff] %vm359, 0.0
        %372 = vst.msk [vmem:[#allocation2 + $0x60] sm:$0xff] %vm359, 0.0
        %373 = vst.msk [vmem:[#allocation2 + $0x68] sm:$0xff] %vm359, 0.0
        %374 = vst.msk [vmem:[#allocation2 + $0x70] sm:$0xff] %vm359, 0.0
        %375 = vst.msk [vmem:[#allocation2 + $0x78] sm:$0xff] %vm359, 0.0
        %376 = vst.msk [vmem:[#allocation2 + $0x80] sm:$0xff] %vm359, 0.0
        %377 = vst.msk [vmem:[#allocation2 + $0x88] sm:$0xff] %vm359, 0.0
        %378 = vst.msk [vmem:[#allocation2 + $0x90] sm:$0xff] %vm359, 0.0
        %379 = vst.msk [vmem:[#allocation2 + $0x98] sm:$0xff] %vm359, 0.0
        %380 = vst.msk [vmem:[#allocation2 + $0xa0] sm:$0xff] %vm359, 0.0
        %381 = vst.msk [vmem:[#allocation2 + $0xa8] sm:$0xff] %vm359, 0.0
        %382 = vst.msk [vmem:[#allocation2 + $0xb0] sm:$0xff] %vm359, 0.0
        %383 = vst.msk [vmem:[#allocation2 + $0xb8] sm:$0xff] %vm359, 0.0
        %384 = vst.msk [vmem:[#allocation2 + $0xc0] sm:$0xff] %vm359, 0.0
        %385 = vst.msk [vmem:[#allocation2 + $0xc8] sm:$0xff] %vm359, 0.0
        %386 = vst.msk [vmem:[#allocation2 + $0xd0] sm:$0xff] %vm359, 0.0
        %387 = vst.msk [vmem:[#allocation2 + $0xd8] sm:$0xff] %vm359, 0.0
        %388 = vst.msk [vmem:[#allocation2 + $0xe0] sm:$0xff] %vm359, 0.0
        %389 = vst.msk [vmem:[#allocation2 + $0xe8] sm:$0xff] %vm359, 0.0
        %390 = vst.msk [vmem:[#allocation2 + $0xf0] sm:$0xff] %vm359, 0.0
        %391 = vst.msk [vmem:[#allocation2 + $0xf8] sm:$0xff] %vm359, 0.0
        %392 = vst.msk [vmem:[#allocation2 + $0x100] sm:$0xff] %vm359, 0.0
        %393 = vst.msk [vmem:[#allocation2 + $0x108] sm:$0xff] %vm359, 0.0
        %394 = vst.msk [vmem:[#allocation2 + $0x110] sm:$0xff] %vm359, 0.0
        %395 = vst.msk [vmem:[#allocation2 + $0x118] sm:$0xff] %vm359, 0.0
        %v396 = vld [vmem:[%s358] sm:$0xff]
        %v397 = vld [vmem:[%s358 + $0x8] sm:$0xff]
        %v398 = vld [vmem:[%s358 + $0x10] sm:$0xff]
        %v399 = vld [vmem:[%s358 + $0x18] sm:$0xff]
        %v400 = vld [vmem:[%s358 + $0x20] sm:$0xff]
        %v401 = vld [vmem:[%s358 + $0x28] sm:$0xff]
        %v402 = vld [vmem:[%s358 + $0x30] sm:$0xff]
        %v403 = vld [vmem:[%s358 + $0x38] sm:$0xff]
        %v404 = vld [vmem:[%s358 + $0x40] sm:$0xff]
        %v405 = vld [vmem:[%s358 + $0x48] sm:$0xff]
        %v406 = vld [vmem:[%s358 + $0x50] sm:$0xff]
        %v407 = vld [vmem:[%s358 + $0x58] sm:$0xff]
        %v408 = vld [vmem:[%s358 + $0x60] sm:$0xff]
        %v409 = vld [vmem:[%s358 + $0x68] sm:$0xff]
        %v410 = vld [vmem:[%s358 + $0x70] sm:$0xff]
        %v411 = vld [vmem:[%s358 + $0x78] sm:$0xff]
        %v412 = vld [vmem:[%s358 + $0x80] sm:$0xff]
        %v413 = vld [vmem:[%s358 + $0x88] sm:$0xff]
        %v414 = vld [vmem:[%s358 + $0x90] sm:$0xff]
        %v415 = vld [vmem:[%s358 + $0x98] sm:$0xff]
        %v416 = vld [vmem:[%s358 + $0xa0] sm:$0xff]
        %v417 = vld [vmem:[%s358 + $0xa8] sm:$0xff]
        %v418 = vld [vmem:[%s358 + $0xb0] sm:$0xff]
        %v419 = vld [vmem:[%s358 + $0xb8] sm:$0xff]
        %v420 = vld [vmem:[%s358 + $0xc0] sm:$0xff]
        %v421 = vld [vmem:[%s358 + $0xc8] sm:$0xff]
        %v422 = vld [vmem:[%s358 + $0xd0] sm:$0xff]
        %v423 = vld [vmem:[%s358 + $0xd8] sm:$0xff]
        %v424 = vld [vmem:[%s358 + $0xe0] sm:$0xff]
        %v425 = vld [vmem:[%s358 + $0xe8] sm:$0xff]
        %v426 = vld [vmem:[%s358 + $0xf0] sm:$0xff]
        %v427 = vld [vmem:[%s358 + $0xf8] sm:$0xff]
        %v428 = vld [vmem:[%s358 + $0x100] sm:$0xff]
        %v429 = vld [vmem:[%s358 + $0x108] sm:$0xff]
        %v430 = vld [vmem:[%s358 + $0x110] sm:$0xff]
        %v431 = vld [vmem:[%s358 + $0x118] sm:$0xff]
        %v432 = vld [vmem:[#allocation2] sm:$0xff]
        %v433 = vld [vmem:[#allocation2 + $0x8] sm:$0xff]
        %v434 = vld [vmem:[#allocation2 + $0x10] sm:$0xff]
        %v435 = vld [vmem:[#allocation2 + $0x18] sm:$0xff]
        %v436 = vld [vmem:[#allocation2 + $0x20] sm:$0xff]
        %v437 = vld [vmem:[#allocation2 + $0x28] sm:$0xff]
        %v438 = vld [vmem:[#allocation2 + $0x30] sm:$0xff]
        %v439 = vld [vmem:[#allocation2 + $0x38] sm:$0xff]
        %v440 = vld [vmem:[#allocation2 + $0x40] sm:$0xff]
        %v441 = vld [vmem:[#allocation2 + $0x48] sm:$0xff]
        %v442 = vld [vmem:[#allocation2 + $0x50] sm:$0xff]
        %v443 = vld [vmem:[#allocation2 + $0x58] sm:$0xff]
        %v444 = vld [vmem:[#allocation2 + $0x60] sm:$0xff]
        %v445 = vld [vmem:[#allocation2 + $0x68] sm:$0xff]
        %v446 = vld [vmem:[#allocation2 + $0x70] sm:$0xff]
        %v447 = vld [vmem:[#allocation2 + $0x78] sm:$0xff]
        %v448 = vld [vmem:[#allocation2 + $0x80] sm:$0xff]
        %v449 = vld [vmem:[#allocation2 + $0x88] sm:$0xff]
        %v450 = vld [vmem:[#allocation2 + $0x90] sm:$0xff]
        %v451 = vld [vmem:[#allocation2 + $0x98] sm:$0xff]
        %v452 = vld [vmem:[#allocation2 + $0xa0] sm:$0xff]
        %v453 = vld [vmem:[#allocation2 + $0xa8] sm:$0xff]
        %v454 = vld [vmem:[#allocation2 + $0xb0] sm:$0xff]
        %v455 = vld [vmem:[#allocation2 + $0xb8] sm:$0xff]
        %v456 = vld [vmem:[#allocation2 + $0xc0] sm:$0xff]
        %v457 = vld [vmem:[#allocation2 + $0xc8] sm:$0xff]
        %v458 = vld [vmem:[#allocation2 + $0xd0] sm:$0xff]
        %v459 = vld [vmem:[#allocation2 + $0xd8] sm:$0xff]
        %v460 = vld [vmem:[#allocation2 + $0xe0] sm:$0xff]
        %v461 = vld [vmem:[#allocation2 + $0xe8] sm:$0xff]
        %v462 = vld [vmem:[#allocation2 + $0xf0] sm:$0xff]
        %v463 = vld [vmem:[#allocation2 + $0xf8] sm:$0xff]
        %v464 = vld [vmem:[#allocation2 + $0x100] sm:$0xff]
        %v465 = vld [vmem:[#allocation2 + $0x108] sm:$0xff]
        %v466 = vld [vmem:[#allocation2 + $0x110] sm:$0xff]
        %v467 = vld [vmem:[#allocation2 + $0x118] sm:$0xff]
        %v468 = vld [vmem:[%s2] sm:$0xf]
        %vm469 = vcmask 31744
        %v471 = vsel %vm469, %v396, 0
        %v474 = vsel %vm469, %v397, 0
        %v477 = vsel %vm469, %v398, 0
        %v480 = vsel %vm469, %v399, 0
        %v483 = vsel %vm469, %v400, 0
        %v486 = vsel %vm469, %v401, 0
        %v489 = vsel %vm469, %v402, 0
        %v492 = vsel %vm469, %v403, 0
        %v495 = vsel %vm469, %v404, 0
        %v498 = vsel %vm469, %v405, 0
        %v501 = vsel %vm469, %v406, 0
        %v504 = vsel %vm469, %v407, 0
        %v507 = vsel %vm469, %v408, 0
        %v510 = vsel %vm469, %v409, 0
        %v513 = vsel %vm469, %v410, 0
        %v516 = vsel %vm469, %v411, 0
        %v519 = vsel %vm469, %v412, 0
        %v522 = vsel %vm469, %v413, 0
        %v525 = vsel %vm469, %v414, 0
        %v528 = vsel %vm469, %v415, 0
        %v531 = vsel %vm469, %v416, 0
        %v534 = vsel %vm469, %v417, 0
        %v537 = vsel %vm469, %v418, 0
        %v540 = vsel %vm469, %v419, 0
        %v543 = vsel %vm469, %v420, 0
        %v546 = vsel %vm469, %v421, 0
        %v549 = vsel %vm469, %v422, 0
        %v552 = vsel %vm469, %v423, 0
        %v555 = vsel %vm469, %v424, 0
        %v558 = vsel %vm469, %v425, 0
        %v561 = vsel %vm469, %v426, 0
        %v564 = vsel %vm469, %v427, 0
        %v567 = vsel %vm469, %v428, 0
        %v570 = vsel %vm469, %v429, 0
        %v573 = vsel %vm469, %v430, 0
        %v576 = vsel %vm469, %v431, 0
        %vm578 = vcmask 1043456
        %v580 = vsel %vm578, %v468, 0
        %582 = vmatpush.msra.mxu0 0.0
        %583 = vmatpush.msra.mxu0 0.0
        %584 = vmatpush.msra.mxu0 0.0
        %585 = vmatpush.msra.mxu0 0.0
        %586 = vmatpush.msra.mxu0 0.0
        %587 = vmatpush.msra.mxu0 0.0
        %588 = vmatpush.msra.mxu0 0.0
        %589 = vmatpush.msra.mxu0 0.0
        %590 = vmatpush.msra.mxu0 0.0
        %591 = vmatpush.msra.mxu0 0.0
        %592 = vmatpush.msra.mxu0 0.0
        %593 = vmatpush.msra.mxu0 0.0
        %594 = vmatpush.msra.mxu0 0.0
        %595 = vmatpush.msra.mxu0 0.0
        %596 = vmatpush.msra.mxu0 0.0
        %597 = vmatpush.msra.mxu0 %v580
        %598 = vmatmul.f32.gmra.mxu0 %v471
        %v599 = vpop.f32.mrf.mxu0
        %v600 = vadd.f32 0.0, %v599
        %601 = vmatmul.f32.gmra.mxu0 %v474
        %v602 = vpop.f32.mrf.mxu0
        %v603 = vadd.f32 0.0, %v602
        %604 = vmatmul.f32.gmra.mxu0 %v477
        %v605 = vpop.f32.mrf.mxu0
        %v606 = vadd.f32 0.0, %v605
        %607 = vmatmul.f32.gmra.mxu0 %v480
        %v608 = vpop.f32.mrf.mxu0
        %v609 = vadd.f32 0.0, %v608
        %610 = vmatmul.f32.gmra.mxu0 %v483
        %v611 = vpop.f32.mrf.mxu0
        %v612 = vadd.f32 0.0, %v611
        %613 = vmatmul.f32.gmra.mxu0 %v486
        %v614 = vpop.f32.mrf.mxu0
        %v615 = vadd.f32 0.0, %v614
        %616 = vmatmul.f32.gmra.mxu0 %v489
        %v617 = vpop.f32.mrf.mxu0
        %v618 = vadd.f32 0.0, %v617
        %619 = vmatmul.f32.gmra.mxu0 %v492
        %v620 = vpop.f32.mrf.mxu0
        %v621 = vadd.f32 0.0, %v620
        %622 = vmatmul.f32.gmra.mxu0 %v495
        %v623 = vpop.f32.mrf.mxu0
        %v624 = vadd.f32 0.0, %v623
        %625 = vmatmul.f32.gmra.mxu0 %v498
        %v626 = vpop.f32.mrf.mxu0
        %v627 = vadd.f32 0.0, %v626
        %628 = vmatmul.f32.gmra.mxu0 %v501
        %v629 = vpop.f32.mrf.mxu0
        %v630 = vadd.f32 0.0, %v629
        %631 = vmatmul.f32.gmra.mxu0 %v504
        %v632 = vpop.f32.mrf.mxu0
        %v633 = vadd.f32 0.0, %v632
        %634 = vmatmul.f32.gmra.mxu0 %v507
        %v635 = vpop.f32.mrf.mxu0
        %v636 = vadd.f32 0.0, %v635
        %637 = vmatmul.f32.gmra.mxu0 %v510
        %v638 = vpop.f32.mrf.mxu0
        %v639 = vadd.f32 0.0, %v638
        %640 = vmatmul.f32.gmra.mxu0 %v513
        %v641 = vpop.f32.mrf.mxu0
        %v642 = vadd.f32 0.0, %v641
        %643 = vmatmul.f32.gmra.mxu0 %v516
        %v644 = vpop.f32.mrf.mxu0
        %v645 = vadd.f32 0.0, %v644
        %646 = vmatmul.f32.gmra.mxu0 %v519
        %v647 = vpop.f32.mrf.mxu0
        %v648 = vadd.f32 0.0, %v647
        %649 = vmatmul.f32.gmra.mxu0 %v522
        %v650 = vpop.f32.mrf.mxu0
        %v651 = vadd.f32 0.0, %v650
        %652 = vmatmul.f32.gmra.mxu0 %v525
        %v653 = vpop.f32.mrf.mxu0
        %v654 = vadd.f32 0.0, %v653
        %655 = vmatmul.f32.gmra.mxu0 %v528
        %v656 = vpop.f32.mrf.mxu0
        %v657 = vadd.f32 0.0, %v656
        %658 = vmatmul.f32.gmra.mxu0 %v531
        %v659 = vpop.f32.mrf.mxu0
        %v660 = vadd.f32 0.0, %v659
        %661 = vmatmul.f32.gmra.mxu0 %v534
        %v662 = vpop.f32.mrf.mxu0
        %v663 = vadd.f32 0.0, %v662
        %664 = vmatmul.f32.gmra.mxu0 %v537
        %v665 = vpop.f32.mrf.mxu0
        %v666 = vadd.f32 0.0, %v665
        %667 = vmatmul.f32.gmra.mxu0 %v540
        %v668 = vpop.f32.mrf.mxu0
        %v669 = vadd.f32 0.0, %v668
        %670 = vmatmul.f32.gmra.mxu0 %v543
        %v671 = vpop.f32.mrf.mxu0
        %v672 = vadd.f32 0.0, %v671
        %673 = vmatmul.f32.gmra.mxu0 %v546
        %v674 = vpop.f32.mrf.mxu0
        %v675 = vadd.f32 0.0, %v674
        %676 = vmatmul.f32.gmra.mxu0 %v549
        %v677 = vpop.f32.mrf.mxu0
        %v678 = vadd.f32 0.0, %v677
        %679 = vmatmul.f32.gmra.mxu0 %v552
        %v680 = vpop.f32.mrf.mxu0
        %v681 = vadd.f32 0.0, %v680
        %682 = vmatmul.f32.gmra.mxu0 %v555
        %v683 = vpop.f32.mrf.mxu0
        %v684 = vadd.f32 0.0, %v683
        %685 = vmatmul.f32.gmra.mxu0 %v558
        %v686 = vpop.f32.mrf.mxu0
        %v687 = vadd.f32 0.0, %v686
        %688 = vmatmul.f32.gmra.mxu0 %v561
        %v689 = vpop.f32.mrf.mxu0
        %v690 = vadd.f32 0.0, %v689
        %691 = vmatmul.f32.gmra.mxu0 %v564
        %v692 = vpop.f32.mrf.mxu0
        %v693 = vadd.f32 0.0, %v692
        %694 = vmatmul.f32.gmra.mxu0 %v567
        %v695 = vpop.f32.mrf.mxu0
        %v696 = vadd.f32 0.0, %v695
        %697 = vmatmul.f32.gmra.mxu0 %v570
        %v698 = vpop.f32.mrf.mxu0
        %v699 = vadd.f32 0.0, %v698
        %700 = vmatmul.f32.gmra.mxu0 %v573
        %v701 = vpop.f32.mrf.mxu0
        %v702 = vadd.f32 0.0, %v701
        %703 = vmatmul.f32.gmra.mxu0 %v576
        %v704 = vpop.f32.mrf.mxu0
        %v705 = vadd.f32 0.0, %v704
        %706 = vdwg.mxu0
        %v707 = vadd.f32 %v432, %v600
        %v708 = vadd.f32 %v433, %v603
        %v709 = vadd.f32 %v434, %v606
        %v710 = vadd.f32 %v435, %v609
        %v711 = vadd.f32 %v436, %v612
        %v712 = vadd.f32 %v437, %v615
        %v713 = vadd.f32 %v438, %v618
        %v714 = vadd.f32 %v439, %v621
        %v715 = vadd.f32 %v440, %v624
        %v716 = vadd.f32 %v441, %v627
        %v717 = vadd.f32 %v442, %v630
        %v718 = vadd.f32 %v443, %v633
        %v719 = vadd.f32 %v444, %v636
        %v720 = vadd.f32 %v445, %v639
        %v721 = vadd.f32 %v446, %v642
        %v722 = vadd.f32 %v447, %v645
        %v723 = vadd.f32 %v448, %v648
        %v724 = vadd.f32 %v449, %v651
        %v725 = vadd.f32 %v450, %v654
        %v726 = vadd.f32 %v451, %v657
        %v727 = vadd.f32 %v452, %v660
        %v728 = vadd.f32 %v453, %v663
        %v729 = vadd.f32 %v454, %v666
        %v730 = vadd.f32 %v455, %v669
        %v731 = vadd.f32 %v456, %v672
        %v732 = vadd.f32 %v457, %v675
        %v733 = vadd.f32 %v458, %v678
        %v734 = vadd.f32 %v459, %v681
        %v735 = vadd.f32 %v460, %v684
        %v736 = vadd.f32 %v461, %v687
        %v737 = vadd.f32 %v462, %v690
        %v738 = vadd.f32 %v463, %v693
        %v739 = vadd.f32 %v464, %v696
        %v740 = vadd.f32 %v465, %v699
        %v741 = vadd.f32 %v466, %v702
        %v742 = vadd.f32 %v467, %v705
        %743 = vst.msk [vmem:[#allocation2] sm:$0xff] %vm359, %v707
        %744 = vst.msk [vmem:[#allocation2 + $0x8] sm:$0xff] %vm359, %v708
        %745 = vst.msk [vmem:[#allocation2 + $0x10] sm:$0xff] %vm359, %v709
        %746 = vst.msk [vmem:[#allocation2 + $0x18] sm:$0xff] %vm359, %v710
        %747 = vst.msk [vmem:[#allocation2 + $0x20] sm:$0xff] %vm359, %v711
        %748 = vst.msk [vmem:[#allocation2 + $0x28] sm:$0xff] %vm359, %v712
        %749 = vst.msk [vmem:[#allocation2 + $0x30] sm:$0xff] %vm359, %v713
        %750 = vst.msk [vmem:[#allocation2 + $0x38] sm:$0xff] %vm359, %v714
        %751 = vst.msk [vmem:[#allocation2 + $0x40] sm:$0xff] %vm359, %v715
        %752 = vst.msk [vmem:[#allocation2 + $0x48] sm:$0xff] %vm359, %v716
        %753 = vst.msk [vmem:[#allocation2 + $0x50] sm:$0xff] %vm359, %v717
        %754 = vst.msk [vmem:[#allocation2 + $0x58] sm:$0xff] %vm359, %v718
        %755 = vst.msk [vmem:[#allocation2 + $0x60] sm:$0xff] %vm359, %v719
        %756 = vst.msk [vmem:[#allocation2 + $0x68] sm:$0xff] %vm359, %v720
        %757 = vst.msk [vmem:[#allocation2 + $0x70] sm:$0xff] %vm359, %v721
        %758 = vst.msk [vmem:[#allocation2 + $0x78] sm:$0xff] %vm359, %v722
        %759 = vst.msk [vmem:[#allocation2 + $0x80] sm:$0xff] %vm359, %v723
        %760 = vst.msk [vmem:[#allocation2 + $0x88] sm:$0xff] %vm359, %v724
        %761 = vst.msk [vmem:[#allocation2 + $0x90] sm:$0xff] %vm359, %v725
        %762 = vst.msk [vmem:[#allocation2 + $0x98] sm:$0xff] %vm359, %v726
        %763 = vst.msk [vmem:[#allocation2 + $0xa0] sm:$0xff] %vm359, %v727
        %764 = vst.msk [vmem:[#allocation2 + $0xa8] sm:$0xff] %vm359, %v728
        %765 = vst.msk [vmem:[#allocation2 + $0xb0] sm:$0xff] %vm359, %v729
        %766 = vst.msk [vmem:[#allocation2 + $0xb8] sm:$0xff] %vm359, %v730
        %767 = vst.msk [vmem:[#allocation2 + $0xc0] sm:$0xff] %vm359, %v731
        %768 = vst.msk [vmem:[#allocation2 + $0xc8] sm:$0xff] %vm359, %v732
        %769 = vst.msk [vmem:[#allocation2 + $0xd0] sm:$0xff] %vm359, %v733
        %770 = vst.msk [vmem:[#allocation2 + $0xd8] sm:$0xff] %vm359, %v734
        %771 = vst.msk [vmem:[#allocation2 + $0xe0] sm:$0xff] %vm359, %v735
        %772 = vst.msk [vmem:[#allocation2 + $0xe8] sm:$0xff] %vm359, %v736
        %773 = vst.msk [vmem:[#allocation2 + $0xf0] sm:$0xff] %vm359, %v737
        %774 = vst.msk [vmem:[#allocation2 + $0xf8] sm:$0xff] %vm359, %v738
        %775 = vst.msk [vmem:[#allocation2 + $0x100] sm:$0xff] %vm359, %v739
        %776 = vst.msk [vmem:[#allocation2 + $0x108] sm:$0xff] %vm359, %v740
        %777 = vst.msk [vmem:[#allocation2 + $0x110] sm:$0xff] %vm359, %v741
        %778 = vst.msk [vmem:[#allocation2 + $0x118] sm:$0xff] %vm359, %v742
        %v779 = vld [vmem:[%s358 + $0x1] sm:$0xff]
        %v780 = vld [vmem:[%s358 + $0x9] sm:$0xff]
        %v781 = vld [vmem:[%s358 + $0x11] sm:$0xff]
        %v782 = vld [vmem:[%s358 + $0x19] sm:$0xff]
        %v783 = vld [vmem:[%s358 + $0x21] sm:$0xff]
        %v784 = vld [vmem:[%s358 + $0x29] sm:$0xff]
        %v785 = vld [vmem:[%s358 + $0x31] sm:$0xff]
        %v786 = vld [vmem:[%s358 + $0x39] sm:$0xff]
        %v787 = vld [vmem:[%s358 + $0x41] sm:$0xff]
        %v788 = vld [vmem:[%s358 + $0x49] sm:$0xff]
        %v789 = vld [vmem:[%s358 + $0x51] sm:$0xff]
        %v790 = vld [vmem:[%s358 + $0x59] sm:$0xff]
        %v791 = vld [vmem:[%s358 + $0x61] sm:$0xff]
        %v792 = vld [vmem:[%s358 + $0x69] sm:$0xff]
        %v793 = vld [vmem:[%s358 + $0x71] sm:$0xff]
        %v794 = vld [vmem:[%s358 + $0x79] sm:$0xff]
        %v795 = vld [vmem:[%s358 + $0x81] sm:$0xff]
        %v796 = vld [vmem:[%s358 + $0x89] sm:$0xff]
        %v797 = vld [vmem:[%s358 + $0x91] sm:$0xff]
        %v798 = vld [vmem:[%s358 + $0x99] sm:$0xff]
        %v799 = vld [vmem:[%s358 + $0xa1] sm:$0xff]
        %v800 = vld [vmem:[%s358 + $0xa9] sm:$0xff]
        %v801 = vld [vmem:[%s358 + $0xb1] sm:$0xff]
        %v802 = vld [vmem:[%s358 + $0xb9] sm:$0xff]
        %v803 = vld [vmem:[%s358 + $0xc1] sm:$0xff]
        %v804 = vld [vmem:[%s358 + $0xc9] sm:$0xff]
        %v805 = vld [vmem:[%s358 + $0xd1] sm:$0xff]
        %v806 = vld [vmem:[%s358 + $0xd9] sm:$0xff]
        %v807 = vld [vmem:[%s358 + $0xe1] sm:$0xff]
        %v808 = vld [vmem:[%s358 + $0xe9] sm:$0xff]
        %v809 = vld [vmem:[%s358 + $0xf1] sm:$0xff]
        %v810 = vld [vmem:[%s358 + $0xf9] sm:$0xff]
        %v811 = vld [vmem:[%s358 + $0x101] sm:$0xff]
        %v812 = vld [vmem:[%s358 + $0x109] sm:$0xff]
        %v813 = vld [vmem:[%s358 + $0x111] sm:$0xff]
        %v814 = vld [vmem:[%s358 + $0x119] sm:$0xff]
        %v815 = vld [vmem:[#allocation2] sm:$0xff]
        %v816 = vld [vmem:[#allocation2 + $0x8] sm:$0xff]
        %v817 = vld [vmem:[#allocation2 + $0x10] sm:$0xff]
        %v818 = vld [vmem:[#allocation2 + $0x18] sm:$0xff]
        %v819 = vld [vmem:[#allocation2 + $0x20] sm:$0xff]
        %v820 = vld [vmem:[#allocation2 + $0x28] sm:$0xff]
        %v821 = vld [vmem:[#allocation2 + $0x30] sm:$0xff]
        %v822 = vld [vmem:[#allocation2 + $0x38] sm:$0xff]
        %v823 = vld [vmem:[#allocation2 + $0x40] sm:$0xff]
        %v824 = vld [vmem:[#allocation2 + $0x48] sm:$0xff]
        %v825 = vld [vmem:[#allocation2 + $0x50] sm:$0xff]
        %v826 = vld [vmem:[#allocation2 + $0x58] sm:$0xff]
        %v827 = vld [vmem:[#allocation2 + $0x60] sm:$0xff]
        %v828 = vld [vmem:[#allocation2 + $0x68] sm:$0xff]
        %v829 = vld [vmem:[#allocation2 + $0x70] sm:$0xff]
        %v830 = vld [vmem:[#allocation2 + $0x78] sm:$0xff]
        %v831 = vld [vmem:[#allocation2 + $0x80] sm:$0xff]
        %v832 = vld [vmem:[#allocation2 + $0x88] sm:$0xff]
        %v833 = vld [vmem:[#allocation2 + $0x90] sm:$0xff]
        %v834 = vld [vmem:[#allocation2 + $0x98] sm:$0xff]
        %v835 = vld [vmem:[#allocation2 + $0xa0] sm:$0xff]
        %v836 = vld [vmem:[#allocation2 + $0xa8] sm:$0xff]
        %v837 = vld [vmem:[#allocation2 + $0xb0] sm:$0xff]
        %v838 = vld [vmem:[#allocation2 + $0xb8] sm:$0xff]
        %v839 = vld [vmem:[#allocation2 + $0xc0] sm:$0xff]
        %v840 = vld [vmem:[#allocation2 + $0xc8] sm:$0xff]
        %v841 = vld [vmem:[#allocation2 + $0xd0] sm:$0xff]
        %v842 = vld [vmem:[#allocation2 + $0xd8] sm:$0xff]
        %v843 = vld [vmem:[#allocation2 + $0xe0] sm:$0xff]
        %v844 = vld [vmem:[#allocation2 + $0xe8] sm:$0xff]
        %v845 = vld [vmem:[#allocation2 + $0xf0] sm:$0xff]
        %v846 = vld [vmem:[#allocation2 + $0xf8] sm:$0xff]
        %v847 = vld [vmem:[#allocation2 + $0x100] sm:$0xff]
        %v848 = vld [vmem:[#allocation2 + $0x108] sm:$0xff]
        %v849 = vld [vmem:[#allocation2 + $0x110] sm:$0xff]
        %v850 = vld [vmem:[#allocation2 + $0x118] sm:$0xff]
        %s851 = scalar_lea.vmem %s2, 4
        %v852 = vld [vmem:[%s851] sm:$0xf]
        %v854 = vsel %vm469, %v779, 0
        %v857 = vsel %vm469, %v780, 0
        %v860 = vsel %vm469, %v781, 0
        %v863 = vsel %vm469, %v782, 0
        %v866 = vsel %vm469, %v783, 0
        %v869 = vsel %vm469, %v784, 0
        %v872 = vsel %vm469, %v785, 0
        %v875 = vsel %vm469, %v786, 0
        %v878 = vsel %vm469, %v787, 0
        %v881 = vsel %vm469, %v788, 0
        %v884 = vsel %vm469, %v789, 0
        %v887 = vsel %vm469, %v790, 0
        %v890 = vsel %vm469, %v791, 0
        %v893 = vsel %vm469, %v792, 0
        %v896 = vsel %vm469, %v793, 0
        %v899 = vsel %vm469, %v794, 0
        %v902 = vsel %vm469, %v795, 0
        %v905 = vsel %vm469, %v796, 0
        %v908 = vsel %vm469, %v797, 0
        %v911 = vsel %vm469, %v798, 0
        %v914 = vsel %vm469, %v799, 0
        %v917 = vsel %vm469, %v800, 0
        %v920 = vsel %vm469, %v801, 0
        %v923 = vsel %vm469, %v802, 0
        %v926 = vsel %vm469, %v803, 0
        %v929 = vsel %vm469, %v804, 0
        %v932 = vsel %vm469, %v805, 0
        %v935 = vsel %vm469, %v806, 0
        %v938 = vsel %vm469, %v807, 0
        %v941 = vsel %vm469, %v808, 0
        %v944 = vsel %vm469, %v809, 0
        %v947 = vsel %vm469, %v810, 0
        %v950 = vsel %vm469, %v811, 0
        %v953 = vsel %vm469, %v812, 0
        %v956 = vsel %vm469, %v813, 0
        %v959 = vsel %vm469, %v814, 0
        %v962 = vsel %vm578, %v852, 0
        %964 = vmatpush.msra.mxu0 0.0
        %965 = vmatpush.msra.mxu0 0.0
        %966 = vmatpush.msra.mxu0 0.0
        %967 = vmatpush.msra.mxu0 0.0
        %968 = vmatpush.msra.mxu0 0.0
        %969 = vmatpush.msra.mxu0 0.0
        %970 = vmatpush.msra.mxu0 0.0
        %971 = vmatpush.msra.mxu0 0.0
        %972 = vmatpush.msra.mxu0 0.0
        %973 = vmatpush.msra.mxu0 0.0
        %974 = vmatpush.msra.mxu0 0.0
        %975 = vmatpush.msra.mxu0 0.0
        %976 = vmatpush.msra.mxu0 0.0
        %977 = vmatpush.msra.mxu0 0.0
        %978 = vmatpush.msra.mxu0 0.0
        %979 = vmatpush.msra.mxu0 %v962
        %980 = vmatmul.f32.gmra.mxu0 %v854
        %v981 = vpop.f32.mrf.mxu0
        %v982 = vadd.f32 0.0, %v981
        %983 = vmatmul.f32.gmra.mxu0 %v857
        %v984 = vpop.f32.mrf.mxu0
        %v985 = vadd.f32 0.0, %v984
        %986 = vmatmul.f32.gmra.mxu0 %v860
        %v987 = vpop.f32.mrf.mxu0
        %v988 = vadd.f32 0.0, %v987
        %989 = vmatmul.f32.gmra.mxu0 %v863
        %v990 = vpop.f32.mrf.mxu0
        %v991 = vadd.f32 0.0, %v990
        %992 = vmatmul.f32.gmra.mxu0 %v866
        %v993 = vpop.f32.mrf.mxu0
        %v994 = vadd.f32 0.0, %v993
        %995 = vmatmul.f32.gmra.mxu0 %v869
        %v996 = vpop.f32.mrf.mxu0
        %v997 = vadd.f32 0.0, %v996
        %998 = vmatmul.f32.gmra.mxu0 %v872
        %v999 = vpop.f32.mrf.mxu0
        %v1000 = vadd.f32 0.0, %v999
        %1001 = vmatmul.f32.gmra.mxu0 %v875
        %v1002 = vpop.f32.mrf.mxu0
        %v1003 = vadd.f32 0.0, %v1002
        %1004 = vmatmul.f32.gmra.mxu0 %v878
        %v1005 = vpop.f32.mrf.mxu0
        %v1006 = vadd.f32 0.0, %v1005
        %1007 = vmatmul.f32.gmra.mxu0 %v881
        %v1008 = vpop.f32.mrf.mxu0
        %v1009 = vadd.f32 0.0, %v1008
        %1010 = vmatmul.f32.gmra.mxu0 %v884
        %v1011 = vpop.f32.mrf.mxu0
        %v1012 = vadd.f32 0.0, %v1011
        %1013 = vmatmul.f32.gmra.mxu0 %v887
        %v1014 = vpop.f32.mrf.mxu0
        %v1015 = vadd.f32 0.0, %v1014
        %1016 = vmatmul.f32.gmra.mxu0 %v890
        %v1017 = vpop.f32.mrf.mxu0
        %v1018 = vadd.f32 0.0, %v1017
        %1019 = vmatmul.f32.gmra.mxu0 %v893
        %v1020 = vpop.f32.mrf.mxu0
        %v1021 = vadd.f32 0.0, %v1020
        %1022 = vmatmul.f32.gmra.mxu0 %v896
        %v1023 = vpop.f32.mrf.mxu0
        %v1024 = vadd.f32 0.0, %v1023
        %1025 = vmatmul.f32.gmra.mxu0 %v899
        %v1026 = vpop.f32.mrf.mxu0
        %v1027 = vadd.f32 0.0, %v1026
        %1028 = vmatmul.f32.gmra.mxu0 %v902
        %v1029 = vpop.f32.mrf.mxu0
        %v1030 = vadd.f32 0.0, %v1029
        %1031 = vmatmul.f32.gmra.mxu0 %v905
        %v1032 = vpop.f32.mrf.mxu0
        %v1033 = vadd.f32 0.0, %v1032
        %1034 = vmatmul.f32.gmra.mxu0 %v908
        %v1035 = vpop.f32.mrf.mxu0
        %v1036 = vadd.f32 0.0, %v1035
        %1037 = vmatmul.f32.gmra.mxu0 %v911
        %v1038 = vpop.f32.mrf.mxu0
        %v1039 = vadd.f32 0.0, %v1038
        %1040 = vmatmul.f32.gmra.mxu0 %v914
        %v1041 = vpop.f32.mrf.mxu0
        %v1042 = vadd.f32 0.0, %v1041
        %1043 = vmatmul.f32.gmra.mxu0 %v917
        %v1044 = vpop.f32.mrf.mxu0
        %v1045 = vadd.f32 0.0, %v1044
        %1046 = vmatmul.f32.gmra.mxu0 %v920
        %v1047 = vpop.f32.mrf.mxu0
        %v1048 = vadd.f32 0.0, %v1047
        %1049 = vmatmul.f32.gmra.mxu0 %v923
        %v1050 = vpop.f32.mrf.mxu0
        %v1051 = vadd.f32 0.0, %v1050
        %1052 = vmatmul.f32.gmra.mxu0 %v926
        %v1053 = vpop.f32.mrf.mxu0
        %v1054 = vadd.f32 0.0, %v1053
        %1055 = vmatmul.f32.gmra.mxu0 %v929
        %v1056 = vpop.f32.mrf.mxu0
        %v1057 = vadd.f32 0.0, %v1056
        %1058 = vmatmul.f32.gmra.mxu0 %v932
        %v1059 = vpop.f32.mrf.mxu0
        %v1060 = vadd.f32 0.0, %v1059
        %1061 = vmatmul.f32.gmra.mxu0 %v935
        %v1062 = vpop.f32.mrf.mxu0
        %v1063 = vadd.f32 0.0, %v1062
        %1064 = vmatmul.f32.gmra.mxu0 %v938
        %v1065 = vpop.f32.mrf.mxu0
        %v1066 = vadd.f32 0.0, %v1065
        %1067 = vmatmul.f32.gmra.mxu0 %v941
        %v1068 = vpop.f32.mrf.mxu0
        %v1069 = vadd.f32 0.0, %v1068
        %1070 = vmatmul.f32.gmra.mxu0 %v944
        %v1071 = vpop.f32.mrf.mxu0
        %v1072 = vadd.f32 0.0, %v1071
        %1073 = vmatmul.f32.gmra.mxu0 %v947
        %v1074 = vpop.f32.mrf.mxu0
        %v1075 = vadd.f32 0.0, %v1074
        %1076 = vmatmul.f32.gmra.mxu0 %v950
        %v1077 = vpop.f32.mrf.mxu0
        %v1078 = vadd.f32 0.0, %v1077
        %1079 = vmatmul.f32.gmra.mxu0 %v953
        %v1080 = vpop.f32.mrf.mxu0
        %v1081 = vadd.f32 0.0, %v1080
        %1082 = vmatmul.f32.gmra.mxu0 %v956
        %v1083 = vpop.f32.mrf.mxu0
        %v1084 = vadd.f32 0.0, %v1083
        %1085 = vmatmul.f32.gmra.mxu0 %v959
        %v1086 = vpop.f32.mrf.mxu0
        %v1087 = vadd.f32 0.0, %v1086
        %1088 = vdwg.mxu0
        %v1089 = vadd.f32 %v815, %v982
        %v1090 = vadd.f32 %v816, %v985
        %v1091 = vadd.f32 %v817, %v988
        %v1092 = vadd.f32 %v818, %v991
        %v1093 = vadd.f32 %v819, %v994
        %v1094 = vadd.f32 %v820, %v997
        %v1095 = vadd.f32 %v821, %v1000
        %v1096 = vadd.f32 %v822, %v1003
        %v1097 = vadd.f32 %v823, %v1006
        %v1098 = vadd.f32 %v824, %v1009
        %v1099 = vadd.f32 %v825, %v1012
        %v1100 = vadd.f32 %v826, %v1015
        %v1101 = vadd.f32 %v827, %v1018
        %v1102 = vadd.f32 %v828, %v1021
        %v1103 = vadd.f32 %v829, %v1024
        %v1104 = vadd.f32 %v830, %v1027
        %v1105 = vadd.f32 %v831, %v1030
        %v1106 = vadd.f32 %v832, %v1033
        %v1107 = vadd.f32 %v833, %v1036
        %v1108 = vadd.f32 %v834, %v1039
        %v1109 = vadd.f32 %v835, %v1042
        %v1110 = vadd.f32 %v836, %v1045
        %v1111 = vadd.f32 %v837, %v1048
        %v1112 = vadd.f32 %v838, %v1051
        %v1113 = vadd.f32 %v839, %v1054
        %v1114 = vadd.f32 %v840, %v1057
        %v1115 = vadd.f32 %v841, %v1060
        %v1116 = vadd.f32 %v842, %v1063
        %v1117 = vadd.f32 %v843, %v1066
        %v1118 = vadd.f32 %v844, %v1069
        %v1119 = vadd.f32 %v845, %v1072
        %v1120 = vadd.f32 %v846, %v1075
        %v1121 = vadd.f32 %v847, %v1078
        %v1122 = vadd.f32 %v848, %v1081
        %v1123 = vadd.f32 %v849, %v1084
        %v1124 = vadd.f32 %v850, %v1087
        %1125 = vst.msk [vmem:[#allocation2] sm:$0xff] %vm359, %v1089
        %1126 = vst.msk [vmem:[#allocation2 + $0x8] sm:$0xff] %vm359, %v1090
        %1127 = vst.msk [vmem:[#allocation2 + $0x10] sm:$0xff] %vm359, %v1091
        %1128 = vst.msk [vmem:[#allocation2 + $0x18] sm:$0xff] %vm359, %v1092
        %1129 = vst.msk [vmem:[#allocation2 + $0x20] sm:$0xff] %vm359, %v1093
        %1130 = vst.msk [vmem:[#allocation2 + $0x28] sm:$0xff] %vm359, %v1094
        %1131 = vst.msk [vmem:[#allocation2 + $0x30] sm:$0xff] %vm359, %v1095
        %1132 = vst.msk [vmem:[#allocation2 + $0x38] sm:$0xff] %vm359, %v1096
        %1133 = vst.msk [vmem:[#allocation2 + $0x40] sm:$0xff] %vm359, %v1097
        %1134 = vst.msk [vmem:[#allocation2 + $0x48] sm:$0xff] %vm359, %v1098
        %1135 = vst.msk [vmem:[#allocation2 + $0x50] sm:$0xff] %vm359, %v1099
        %1136 = vst.msk [vmem:[#allocation2 + $0x58] sm:$0xff] %vm359, %v1100
        %1137 = vst.msk [vmem:[#allocation2 + $0x60] sm:$0xff] %vm359, %v1101
        %1138 = vst.msk [vmem:[#allocation2 + $0x68] sm:$0xff] %vm359, %v1102
        %1139 = vst.msk [vmem:[#allocation2 + $0x70] sm:$0xff] %vm359, %v1103
        %1140 = vst.msk [vmem:[#allocation2 + $0x78] sm:$0xff] %vm359, %v1104
        %1141 = vst.msk [vmem:[#allocation2 + $0x80] sm:$0xff] %vm359, %v1105
        %1142 = vst.msk [vmem:[#allocation2 + $0x88] sm:$0xff] %vm359, %v1106
        %1143 = vst.msk [vmem:[#allocation2 + $0x90] sm:$0xff] %vm359, %v1107
        %1144 = vst.msk [vmem:[#allocation2 + $0x98] sm:$0xff] %vm359, %v1108
        %1145 = vst.msk [vmem:[#allocation2 + $0xa0] sm:$0xff] %vm359, %v1109
        %1146 = vst.msk [vmem:[#allocation2 + $0xa8] sm:$0xff] %vm359, %v1110
        %1147 = vst.msk [vmem:[#allocation2 + $0xb0] sm:$0xff] %vm359, %v1111
        %1148 = vst.msk [vmem:[#allocation2 + $0xb8] sm:$0xff] %vm359, %v1112
        %1149 = vst.msk [vmem:[#allocation2 + $0xc0] sm:$0xff] %vm359, %v1113
        %1150 = vst.msk [vmem:[#allocation2 + $0xc8] sm:$0xff] %vm359, %v1114
        %1151 = vst.msk [vmem:[#allocation2 + $0xd0] sm:$0xff] %vm359, %v1115
        %1152 = vst.msk [vmem:[#allocation2 + $0xd8] sm:$0xff] %vm359, %v1116
        %1153 = vst.msk [vmem:[#allocation2 + $0xe0] sm:$0xff] %vm359, %v1117
        %1154 = vst.msk [vmem:[#allocation2 + $0xe8] sm:$0xff] %vm359, %v1118
        %1155 = vst.msk [vmem:[#allocation2 + $0xf0] sm:$0xff] %vm359, %v1119
        %1156 = vst.msk [vmem:[#allocation2 + $0xf8] sm:$0xff] %vm359, %v1120
        %1157 = vst.msk [vmem:[#allocation2 + $0x100] sm:$0xff] %vm359, %v1121
        %1158 = vst.msk [vmem:[#allocation2 + $0x108] sm:$0xff] %vm359, %v1122
        %1159 = vst.msk [vmem:[#allocation2 + $0x110] sm:$0xff] %vm359, %v1123
        %1160 = vst.msk [vmem:[#allocation2 + $0x118] sm:$0xff] %vm359, %v1124
        %v1161 = vld [vmem:[%s358 + $0x2] sm:$0xff]
        %v1162 = vld [vmem:[%s358 + $0xa] sm:$0xff]
        %v1163 = vld [vmem:[%s358 + $0x12] sm:$0xff]
        %v1164 = vld [vmem:[%s358 + $0x1a] sm:$0xff]
        %v1165 = vld [vmem:[%s358 + $0x22] sm:$0xff]
        %v1166 = vld [vmem:[%s358 + $0x2a] sm:$0xff]
        %v1167 = vld [vmem:[%s358 + $0x32] sm:$0xff]
        %v1168 = vld [vmem:[%s358 + $0x3a] sm:$0xff]
        %v1169 = vld [vmem:[%s358 + $0x42] sm:$0xff]
        %v1170 = vld [vmem:[%s358 + $0x4a] sm:$0xff]
        %v1171 = vld [vmem:[%s358 + $0x52] sm:$0xff]
        %v1172 = vld [vmem:[%s358 + $0x5a] sm:$0xff]
        %v1173 = vld [vmem:[%s358 + $0x62] sm:$0xff]
        %v1174 = vld [vmem:[%s358 + $0x6a] sm:$0xff]
        %v1175 = vld [vmem:[%s358 + $0x72] sm:$0xff]
        %v1176 = vld [vmem:[%s358 + $0x7a] sm:$0xff]
        %v1177 = vld [vmem:[%s358 + $0x82] sm:$0xff]
        %v1178 = vld [vmem:[%s358 + $0x8a] sm:$0xff]
        %v1179 = vld [vmem:[%s358 + $0x92] sm:$0xff]
        %v1180 = vld [vmem:[%s358 + $0x9a] sm:$0xff]
        %v1181 = vld [vmem:[%s358 + $0xa2] sm:$0xff]
        %v1182 = vld [vmem:[%s358 + $0xaa] sm:$0xff]
        %v1183 = vld [vmem:[%s358 + $0xb2] sm:$0xff]
        %v1184 = vld [vmem:[%s358 + $0xba] sm:$0xff]
        %v1185 = vld [vmem:[%s358 + $0xc2] sm:$0xff]
        %v1186 = vld [vmem:[%s358 + $0xca] sm:$0xff]
        %v1187 = vld [vmem:[%s358 + $0xd2] sm:$0xff]
        %v1188 = vld [vmem:[%s358 + $0xda] sm:$0xff]
        %v1189 = vld [vmem:[%s358 + $0xe2] sm:$0xff]
        %v1190 = vld [vmem:[%s358 + $0xea] sm:$0xff]
        %v1191 = vld [vmem:[%s358 + $0xf2] sm:$0xff]
        %v1192 = vld [vmem:[%s358 + $0xfa] sm:$0xff]
        %v1193 = vld [vmem:[%s358 + $0x102] sm:$0xff]
        %v1194 = vld [vmem:[%s358 + $0x10a] sm:$0xff]
        %v1195 = vld [vmem:[%s358 + $0x112] sm:$0xff]
        %v1196 = vld [vmem:[%s358 + $0x11a] sm:$0xff]
        %v1197 = vld [vmem:[#allocation2] sm:$0xff]
        %v1198 = vld [vmem:[#allocation2 + $0x8] sm:$0xff]
        %v1199 = vld [vmem:[#allocation2 + $0x10] sm:$0xff]
        %v1200 = vld [vmem:[#allocation2 + $0x18] sm:$0xff]
        %v1201 = vld [vmem:[#allocation2 + $0x20] sm:$0xff]
        %v1202 = vld [vmem:[#allocation2 + $0x28] sm:$0xff]
        %v1203 = vld [vmem:[#allocation2 + $0x30] sm:$0xff]
        %v1204 = vld [vmem:[#allocation2 + $0x38] sm:$0xff]
        %v1205 = vld [vmem:[#allocation2 + $0x40] sm:$0xff]
        %v1206 = vld [vmem:[#allocation2 + $0x48] sm:$0xff]
        %v1207 = vld [vmem:[#allocation2 + $0x50] sm:$0xff]
        %v1208 = vld [vmem:[#allocation2 + $0x58] sm:$0xff]
        %v1209 = vld [vmem:[#allocation2 + $0x60] sm:$0xff]
        %v1210 = vld [vmem:[#allocation2 + $0x68] sm:$0xff]
        %v1211 = vld [vmem:[#allocation2 + $0x70] sm:$0xff]
        %v1212 = vld [vmem:[#allocation2 + $0x78] sm:$0xff]
        %v1213 = vld [vmem:[#allocation2 + $0x80] sm:$0xff]
        %v1214 = vld [vmem:[#allocation2 + $0x88] sm:$0xff]
        %v1215 = vld [vmem:[#allocation2 + $0x90] sm:$0xff]
        %v1216 = vld [vmem:[#allocation2 + $0x98] sm:$0xff]
        %v1217 = vld [vmem:[#allocation2 + $0xa0] sm:$0xff]
        %v1218 = vld [vmem:[#allocation2 + $0xa8] sm:$0xff]
        %v1219 = vld [vmem:[#allocation2 + $0xb0] sm:$0xff]
        %v1220 = vld [vmem:[#allocation2 + $0xb8] sm:$0xff]
        %v1221 = vld [vmem:[#allocation2 + $0xc0] sm:$0xff]
        %v1222 = vld [vmem:[#allocation2 + $0xc8] sm:$0xff]
        %v1223 = vld [vmem:[#allocation2 + $0xd0] sm:$0xff]
        %v1224 = vld [vmem:[#allocation2 + $0xd8] sm:$0xff]
        %v1225 = vld [vmem:[#allocation2 + $0xe0] sm:$0xff]
        %v1226 = vld [vmem:[#allocation2 + $0xe8] sm:$0xff]
        %v1227 = vld [vmem:[#allocation2 + $0xf0] sm:$0xff]
        %v1228 = vld [vmem:[#allocation2 + $0xf8] sm:$0xff]
        %v1229 = vld [vmem:[#allocation2 + $0x100] sm:$0xff]
        %v1230 = vld [vmem:[#allocation2 + $0x108] sm:$0xff]
        %v1231 = vld [vmem:[#allocation2 + $0x110] sm:$0xff]
        %v1232 = vld [vmem:[#allocation2 + $0x118] sm:$0xff]
        %s1233 = scalar_lea.vmem %s2, 8
        %v1234 = vld [vmem:[%s1233] sm:$0xf]
        %v1236 = vsel %vm469, %v1161, 0
        %v1239 = vsel %vm469, %v1162, 0
        %v1242 = vsel %vm469, %v1163, 0
        %v1245 = vsel %vm469, %v1164, 0
        %v1248 = vsel %vm469, %v1165, 0
        %v1251 = vsel %vm469, %v1166, 0
        %v1254 = vsel %vm469, %v1167, 0
        %v1257 = vsel %vm469, %v1168, 0
        %v1260 = vsel %vm469, %v1169, 0
        %v1263 = vsel %vm469, %v1170, 0
        %v1266 = vsel %vm469, %v1171, 0
        %v1269 = vsel %vm469, %v1172, 0
        %v1272 = vsel %vm469, %v1173, 0
        %v1275 = vsel %vm469, %v1174, 0
        %v1278 = vsel %vm469, %v1175, 0
        %v1281 = vsel %vm469, %v1176, 0
        %v1284 = vsel %vm469, %v1177, 0
        %v1287 = vsel %vm469, %v1178, 0
        %v1290 = vsel %vm469, %v1179, 0
        %v1293 = vsel %vm469, %v1180, 0
        %v1296 = vsel %vm469, %v1181, 0
        %v1299 = vsel %vm469, %v1182, 0
        %v1302 = vsel %vm469, %v1183, 0
        %v1305 = vsel %vm469, %v1184, 0
        %v1308 = vsel %vm469, %v1185, 0
        %v1311 = vsel %vm469, %v1186, 0
        %v1314 = vsel %vm469, %v1187, 0
        %v1317 = vsel %vm469, %v1188, 0
        %v1320 = vsel %vm469, %v1189, 0
        %v1323 = vsel %vm469, %v1190, 0
        %v1326 = vsel %vm469, %v1191, 0
        %v1329 = vsel %vm469, %v1192, 0
        %v1332 = vsel %vm469, %v1193, 0
        %v1335 = vsel %vm469, %v1194, 0
        %v1338 = vsel %vm469, %v1195, 0
        %v1341 = vsel %vm469, %v1196, 0
        %v1344 = vsel %vm578, %v1234, 0
        %1346 = vmatpush.msra.mxu0 0.0
        %1347 = vmatpush.msra.mxu0 0.0
        %1348 = vmatpush.msra.mxu0 0.0
        %1349 = vmatpush.msra.mxu0 0.0
        %1350 = vmatpush.msra.mxu0 0.0
        %1351 = vmatpush.msra.mxu0 0.0
        %1352 = vmatpush.msra.mxu0 0.0
        %1353 = vmatpush.msra.mxu0 0.0
        %1354 = vmatpush.msra.mxu0 0.0
        %1355 = vmatpush.msra.mxu0 0.0
        %1356 = vmatpush.msra.mxu0 0.0
        %1357 = vmatpush.msra.mxu0 0.0
        %1358 = vmatpush.msra.mxu0 0.0
        %1359 = vmatpush.msra.mxu0 0.0
        %1360 = vmatpush.msra.mxu0 0.0
        %1361 = vmatpush.msra.mxu0 %v1344
        %1362 = vmatmul.f32.gmra.mxu0 %v1236
        %v1363 = vpop.f32.mrf.mxu0
        %v1364 = vadd.f32 0.0, %v1363
        %1365 = vmatmul.f32.gmra.mxu0 %v1239
        %v1366 = vpop.f32.mrf.mxu0
        %v1367 = vadd.f32 0.0, %v1366
        %1368 = vmatmul.f32.gmra.mxu0 %v1242
        %v1369 = vpop.f32.mrf.mxu0
        %v1370 = vadd.f32 0.0, %v1369
        %1371 = vmatmul.f32.gmra.mxu0 %v1245
        %v1372 = vpop.f32.mrf.mxu0
        %v1373 = vadd.f32 0.0, %v1372
        %1374 = vmatmul.f32.gmra.mxu0 %v1248
        %v1375 = vpop.f32.mrf.mxu0
        %v1376 = vadd.f32 0.0, %v1375
        %1377 = vmatmul.f32.gmra.mxu0 %v1251
        %v1378 = vpop.f32.mrf.mxu0
        %v1379 = vadd.f32 0.0, %v1378
        %1380 = vmatmul.f32.gmra.mxu0 %v1254
        %v1381 = vpop.f32.mrf.mxu0
        %v1382 = vadd.f32 0.0, %v1381
        %1383 = vmatmul.f32.gmra.mxu0 %v1257
        %v1384 = vpop.f32.mrf.mxu0
        %v1385 = vadd.f32 0.0, %v1384
        %1386 = vmatmul.f32.gmra.mxu0 %v1260
        %v1387 = vpop.f32.mrf.mxu0
        %v1388 = vadd.f32 0.0, %v1387
        %1389 = vmatmul.f32.gmra.mxu0 %v1263
        %v1390 = vpop.f32.mrf.mxu0
        %v1391 = vadd.f32 0.0, %v1390
        %1392 = vmatmul.f32.gmra.mxu0 %v1266
        %v1393 = vpop.f32.mrf.mxu0
        %v1394 = vadd.f32 0.0, %v1393
        %1395 = vmatmul.f32.gmra.mxu0 %v1269
        %v1396 = vpop.f32.mrf.mxu0
        %v1397 = vadd.f32 0.0, %v1396
        %1398 = vmatmul.f32.gmra.mxu0 %v1272
        %v1399 = vpop.f32.mrf.mxu0
        %v1400 = vadd.f32 0.0, %v1399
        %1401 = vmatmul.f32.gmra.mxu0 %v1275
        %v1402 = vpop.f32.mrf.mxu0
        %v1403 = vadd.f32 0.0, %v1402
        %1404 = vmatmul.f32.gmra.mxu0 %v1278
        %v1405 = vpop.f32.mrf.mxu0
        %v1406 = vadd.f32 0.0, %v1405
        %1407 = vmatmul.f32.gmra.mxu0 %v1281
        %v1408 = vpop.f32.mrf.mxu0
        %v1409 = vadd.f32 0.0, %v1408
        %1410 = vmatmul.f32.gmra.mxu0 %v1284
        %v1411 = vpop.f32.mrf.mxu0
        %v1412 = vadd.f32 0.0, %v1411
        %1413 = vmatmul.f32.gmra.mxu0 %v1287
        %v1414 = vpop.f32.mrf.mxu0
        %v1415 = vadd.f32 0.0, %v1414
        %1416 = vmatmul.f32.gmra.mxu0 %v1290
        %v1417 = vpop.f32.mrf.mxu0
        %v1418 = vadd.f32 0.0, %v1417
        %1419 = vmatmul.f32.gmra.mxu0 %v1293
        %v1420 = vpop.f32.mrf.mxu0
        %v1421 = vadd.f32 0.0, %v1420
        %1422 = vmatmul.f32.gmra.mxu0 %v1296
        %v1423 = vpop.f32.mrf.mxu0
        %v1424 = vadd.f32 0.0, %v1423
        %1425 = vmatmul.f32.gmra.mxu0 %v1299
        %v1426 = vpop.f32.mrf.mxu0
        %v1427 = vadd.f32 0.0, %v1426
        %1428 = vmatmul.f32.gmra.mxu0 %v1302
        %v1429 = vpop.f32.mrf.mxu0
        %v1430 = vadd.f32 0.0, %v1429
        %1431 = vmatmul.f32.gmra.mxu0 %v1305
        %v1432 = vpop.f32.mrf.mxu0
        %v1433 = vadd.f32 0.0, %v1432
        %1434 = vmatmul.f32.gmra.mxu0 %v1308
        %v1435 = vpop.f32.mrf.mxu0
        %v1436 = vadd.f32 0.0, %v1435
        %1437 = vmatmul.f32.gmra.mxu0 %v1311
        %v1438 = vpop.f32.mrf.mxu0
        %v1439 = vadd.f32 0.0, %v1438
        %1440 = vmatmul.f32.gmra.mxu0 %v1314
        %v1441 = vpop.f32.mrf.mxu0
        %v1442 = vadd.f32 0.0, %v1441
        %1443 = vmatmul.f32.gmra.mxu0 %v1317
        %v1444 = vpop.f32.mrf.mxu0
        %v1445 = vadd.f32 0.0, %v1444
        %1446 = vmatmul.f32.gmra.mxu0 %v1320
        %v1447 = vpop.f32.mrf.mxu0
        %v1448 = vadd.f32 0.0, %v1447
        %1449 = vmatmul.f32.gmra.mxu0 %v1323
        %v1450 = vpop.f32.mrf.mxu0
        %v1451 = vadd.f32 0.0, %v1450
        %1452 = vmatmul.f32.gmra.mxu0 %v1326
        %v1453 = vpop.f32.mrf.mxu0
        %v1454 = vadd.f32 0.0, %v1453
        %1455 = vmatmul.f32.gmra.mxu0 %v1329
        %v1456 = vpop.f32.mrf.mxu0
        %v1457 = vadd.f32 0.0, %v1456
        %1458 = vmatmul.f32.gmra.mxu0 %v1332
        %v1459 = vpop.f32.mrf.mxu0
        %v1460 = vadd.f32 0.0, %v1459
        %1461 = vmatmul.f32.gmra.mxu0 %v1335
        %v1462 = vpop.f32.mrf.mxu0
        %v1463 = vadd.f32 0.0, %v1462
        %1464 = vmatmul.f32.gmra.mxu0 %v1338
        %v1465 = vpop.f32.mrf.mxu0
        %v1466 = vadd.f32 0.0, %v1465
        %1467 = vmatmul.f32.gmra.mxu0 %v1341
        %v1468 = vpop.f32.mrf.mxu0
        %v1469 = vadd.f32 0.0, %v1468
        %1470 = vdwg.mxu0
        %v1471 = vadd.f32 %v1197, %v1364
        %v1472 = vadd.f32 %v1198, %v1367
        %v1473 = vadd.f32 %v1199, %v1370
        %v1474 = vadd.f32 %v1200, %v1373
        %v1475 = vadd.f32 %v1201, %v1376
        %v1476 = vadd.f32 %v1202, %v1379
        %v1477 = vadd.f32 %v1203, %v1382
        %v1478 = vadd.f32 %v1204, %v1385
        %v1479 = vadd.f32 %v1205, %v1388
        %v1480 = vadd.f32 %v1206, %v1391
        %v1481 = vadd.f32 %v1207, %v1394
        %v1482 = vadd.f32 %v1208, %v1397
        %v1483 = vadd.f32 %v1209, %v1400
        %v1484 = vadd.f32 %v1210, %v1403
        %v1485 = vadd.f32 %v1211, %v1406
        %v1486 = vadd.f32 %v1212, %v1409
        %v1487 = vadd.f32 %v1213, %v1412
        %v1488 = vadd.f32 %v1214, %v1415
        %v1489 = vadd.f32 %v1215, %v1418
        %v1490 = vadd.f32 %v1216, %v1421
        %v1491 = vadd.f32 %v1217, %v1424
        %v1492 = vadd.f32 %v1218, %v1427
        %v1493 = vadd.f32 %v1219, %v1430
        %v1494 = vadd.f32 %v1220, %v1433
        %v1495 = vadd.f32 %v1221, %v1436
        %v1496 = vadd.f32 %v1222, %v1439
        %v1497 = vadd.f32 %v1223, %v1442
        %v1498 = vadd.f32 %v1224, %v1445
        %v1499 = vadd.f32 %v1225, %v1448
        %v1500 = vadd.f32 %v1226, %v1451
        %v1501 = vadd.f32 %v1227, %v1454
        %v1502 = vadd.f32 %v1228, %v1457
        %v1503 = vadd.f32 %v1229, %v1460
        %v1504 = vadd.f32 %v1230, %v1463
        %v1505 = vadd.f32 %v1231, %v1466
        %v1506 = vadd.f32 %v1232, %v1469
        %1507 = vst.msk [vmem:[#allocation2] sm:$0xff] %vm359, %v1471
        %1508 = vst.msk [vmem:[#allocation2 + $0x8] sm:$0xff] %vm359, %v1472
        %1509 = vst.msk [vmem:[#allocation2 + $0x10] sm:$0xff] %vm359, %v1473
        %1510 = vst.msk [vmem:[#allocation2 + $0x18] sm:$0xff] %vm359, %v1474
        %1511 = vst.msk [vmem:[#allocation2 + $0x20] sm:$0xff] %vm359, %v1475
        %1512 = vst.msk [vmem:[#allocation2 + $0x28] sm:$0xff] %vm359, %v1476
        %1513 = vst.msk [vmem:[#allocation2 + $0x30] sm:$0xff] %vm359, %v1477
        %1514 = vst.msk [vmem:[#allocation2 + $0x38] sm:$0xff] %vm359, %v1478
        %1515 = vst.msk [vmem:[#allocation2 + $0x40] sm:$0xff] %vm359, %v1479
        %1516 = vst.msk [vmem:[#allocation2 + $0x48] sm:$0xff] %vm359, %v1480
        %1517 = vst.msk [vmem:[#allocation2 + $0x50] sm:$0xff] %vm359, %v1481
        %1518 = vst.msk [vmem:[#allocation2 + $0x58] sm:$0xff] %vm359, %v1482
        %1519 = vst.msk [vmem:[#allocation2 + $0x60] sm:$0xff] %vm359, %v1483
        %1520 = vst.msk [vmem:[#allocation2 + $0x68] sm:$0xff] %vm359, %v1484
        %1521 = vst.msk [vmem:[#allocation2 + $0x70] sm:$0xff] %vm359, %v1485
        %1522 = vst.msk [vmem:[#allocation2 + $0x78] sm:$0xff] %vm359, %v1486
        %1523 = vst.msk [vmem:[#allocation2 + $0x80] sm:$0xff] %vm359, %v1487
        %1524 = vst.msk [vmem:[#allocation2 + $0x88] sm:$0xff] %vm359, %v1488
        %1525 = vst.msk [vmem:[#allocation2 + $0x90] sm:$0xff] %vm359, %v1489
        %1526 = vst.msk [vmem:[#allocation2 + $0x98] sm:$0xff] %vm359, %v1490
        %1527 = vst.msk [vmem:[#allocation2 + $0xa0] sm:$0xff] %vm359, %v1491
        %1528 = vst.msk [vmem:[#allocation2 + $0xa8] sm:$0xff] %vm359, %v1492
        %1529 = vst.msk [vmem:[#allocation2 + $0xb0] sm:$0xff] %vm359, %v1493
        %1530 = vst.msk [vmem:[#allocation2 + $0xb8] sm:$0xff] %vm359, %v1494
        %1531 = vst.msk [vmem:[#allocation2 + $0xc0] sm:$0xff] %vm359, %v1495
        %1532 = vst.msk [vmem:[#allocation2 + $0xc8] sm:$0xff] %vm359, %v1496
        %1533 = vst.msk [vmem:[#allocation2 + $0xd0] sm:$0xff] %vm359, %v1497
        %1534 = vst.msk [vmem:[#allocation2 + $0xd8] sm:$0xff] %vm359, %v1498
        %1535 = vst.msk [vmem:[#allocation2 + $0xe0] sm:$0xff] %vm359, %v1499
        %1536 = vst.msk [vmem:[#allocation2 + $0xe8] sm:$0xff] %vm359, %v1500
        %1537 = vst.msk [vmem:[#allocation2 + $0xf0] sm:$0xff] %vm359, %v1501
        %1538 = vst.msk [vmem:[#allocation2 + $0xf8] sm:$0xff] %vm359, %v1502
        %1539 = vst.msk [vmem:[#allocation2 + $0x100] sm:$0xff] %vm359, %v1503
        %1540 = vst.msk [vmem:[#allocation2 + $0x108] sm:$0xff] %vm359, %v1504
        %1541 = vst.msk [vmem:[#allocation2 + $0x110] sm:$0xff] %vm359, %v1505
        %1542 = vst.msk [vmem:[#allocation2 + $0x118] sm:$0xff] %vm359, %v1506
        %v1543 = vld [vmem:[%s358 + $0x12] sm:$0xff]
        %v1544 = vld [vmem:[%s358 + $0x1a] sm:$0xff]
        %v1545 = vld [vmem:[%s358 + $0x22] sm:$0xff]
        %v1546 = vld [vmem:[%s358 + $0x2a] sm:$0xff]
        %v1547 = vld [vmem:[%s358 + $0x32] sm:$0xff]
        %v1548 = vld [vmem:[%s358 + $0x3a] sm:$0xff]
        %v1549 = vld [vmem:[%s358 + $0x42] sm:$0xff]
        %v1550 = vld [vmem:[%s358 + $0x4a] sm:$0xff]
        %v1551 = vld [vmem:[%s358 + $0x52] sm:$0xff]
        %v1552 = vld [vmem:[%s358 + $0x5a] sm:$0xff]
        %v1553 = vld [vmem:[%s358 + $0x62] sm:$0xff]
        %v1554 = vld [vmem:[%s358 + $0x6a] sm:$0xff]
        %v1555 = vld [vmem:[%s358 + $0x72] sm:$0xff]
        %v1556 = vld [vmem:[%s358 + $0x7a] sm:$0xff]
        %v1557 = vld [vmem:[%s358 + $0x82] sm:$0xff]
        %v1558 = vld [vmem:[%s358 + $0x8a] sm:$0xff]
        %v1559 = vld [vmem:[%s358 + $0x92] sm:$0xff]
        %v1560 = vld [vmem:[%s358 + $0x9a] sm:$0xff]
        %v1561 = vld [vmem:[%s358 + $0xa2] sm:$0xff]
        %v1562 = vld [vmem:[%s358 + $0xaa] sm:$0xff]
        %v1563 = vld [vmem:[%s358 + $0xb2] sm:$0xff]
        %v1564 = vld [vmem:[%s358 + $0xba] sm:$0xff]
        %v1565 = vld [vmem:[%s358 + $0xc2] sm:$0xff]
        %v1566 = vld [vmem:[%s358 + $0xca] sm:$0xff]
        %v1567 = vld [vmem:[%s358 + $0xd2] sm:$0xff]
        %v1568 = vld [vmem:[%s358 + $0xda] sm:$0xff]
        %v1569 = vld [vmem:[%s358 + $0xe2] sm:$0xff]
        %v1570 = vld [vmem:[%s358 + $0xea] sm:$0xff]
        %v1571 = vld [vmem:[%s358 + $0xf2] sm:$0xff]
        %v1572 = vld [vmem:[%s358 + $0xfa] sm:$0xff]
        %v1573 = vld [vmem:[%s358 + $0x102] sm:$0xff]
        %v1574 = vld [vmem:[%s358 + $0x10a] sm:$0xff]
        %v1575 = vld [vmem:[%s358 + $0x112] sm:$0xff]
        %v1576 = vld [vmem:[%s358 + $0x11a] sm:$0xff]
        %v1577 = vld [vmem:[%s358 + $0x122] sm:$0xff]
        %v1578 = vld [vmem:[%s358 + $0x12a] sm:$0xff]
        %v1579 = vld [vmem:[#allocation2] sm:$0xff]
        %v1580 = vld [vmem:[#allocation2 + $0x8] sm:$0xff]
        %v1581 = vld [vmem:[#allocation2 + $0x10] sm:$0xff]
        %v1582 = vld [vmem:[#allocation2 + $0x18] sm:$0xff]
        %v1583 = vld [vmem:[#allocation2 + $0x20] sm:$0xff]
        %v1584 = vld [vmem:[#allocation2 + $0x28] sm:$0xff]
        %v1585 = vld [vmem:[#allocation2 + $0x30] sm:$0xff]
        %v1586 = vld [vmem:[#allocation2 + $0x38] sm:$0xff]
        %v1587 = vld [vmem:[#allocation2 + $0x40] sm:$0xff]
        %v1588 = vld [vmem:[#allocation2 + $0x48] sm:$0xff]
        %v1589 = vld [vmem:[#allocation2 + $0x50] sm:$0xff]
        %v1590 = vld [vmem:[#allocation2 + $0x58] sm:$0xff]
        %v1591 = vld [vmem:[#allocation2 + $0x60] sm:$0xff]
        %v1592 = vld [vmem:[#allocation2 + $0x68] sm:$0xff]
        %v1593 = vld [vmem:[#allocation2 + $0x70] sm:$0xff]
        %v1594 = vld [vmem:[#allocation2 + $0x78] sm:$0xff]
        %v1595 = vld [vmem:[#allocation2 + $0x80] sm:$0xff]
        %v1596 = vld [vmem:[#allocation2 + $0x88] sm:$0xff]
        %v1597 = vld [vmem:[#allocation2 + $0x90] sm:$0xff]
        %v1598 = vld [vmem:[#allocation2 + $0x98] sm:$0xff]
        %v1599 = vld [vmem:[#allocation2 + $0xa0] sm:$0xff]
        %v1600 = vld [vmem:[#allocation2 + $0xa8] sm:$0xff]
        %v1601 = vld [vmem:[#allocation2 + $0xb0] sm:$0xff]
        %v1602 = vld [vmem:[#allocation2 + $0xb8] sm:$0xff]
        %v1603 = vld [vmem:[#allocation2 + $0xc0] sm:$0xff]
        %v1604 = vld [vmem:[#allocation2 + $0xc8] sm:$0xff]
        %v1605 = vld [vmem:[#allocation2 + $0xd0] sm:$0xff]
        %v1606 = vld [vmem:[#allocation2 + $0xd8] sm:$0xff]
        %v1607 = vld [vmem:[#allocation2 + $0xe0] sm:$0xff]
        %v1608 = vld [vmem:[#allocation2 + $0xe8] sm:$0xff]
        %v1609 = vld [vmem:[#allocation2 + $0xf0] sm:$0xff]
        %v1610 = vld [vmem:[#allocation2 + $0xf8] sm:$0xff]
        %v1611 = vld [vmem:[#allocation2 + $0x100] sm:$0xff]
        %v1612 = vld [vmem:[#allocation2 + $0x108] sm:$0xff]
        %v1613 = vld [vmem:[#allocation2 + $0x110] sm:$0xff]
        %v1614 = vld [vmem:[#allocation2 + $0x118] sm:$0xff]
        %s1615 = scalar_lea.vmem %s2, 12
        %v1616 = vld [vmem:[%s1615] sm:$0xf]
        %v1618 = vsel %vm469, %v1543, 0
        %v1621 = vsel %vm469, %v1544, 0
        %v1624 = vsel %vm469, %v1545, 0
        %v1627 = vsel %vm469, %v1546, 0
        %v1630 = vsel %vm469, %v1547, 0
        %v1633 = vsel %vm469, %v1548, 0
        %v1636 = vsel %vm469, %v1549, 0
        %v1639 = vsel %vm469, %v1550, 0
        %v1642 = vsel %vm469, %v1551, 0
        %v1645 = vsel %vm469, %v1552, 0
        %v1648 = vsel %vm469, %v1553, 0
        %v1651 = vsel %vm469, %v1554, 0
        %v1654 = vsel %vm469, %v1555, 0
        %v1657 = vsel %vm469, %v1556, 0
        %v1660 = vsel %vm469, %v1557, 0
        %v1663 = vsel %vm469, %v1558, 0
        %v1666 = vsel %vm469, %v1559, 0
        %v1669 = vsel %vm469, %v1560, 0
        %v1672 = vsel %vm469, %v1561, 0
        %v1675 = vsel %vm469, %v1562, 0
        %v1678 = vsel %vm469, %v1563, 0
        %v1681 = vsel %vm469, %v1564, 0
        %v1684 = vsel %vm469, %v1565, 0
        %v1687 = vsel %vm469, %v1566, 0
        %v1690 = vsel %vm469, %v1567, 0
        %v1693 = vsel %vm469, %v1568, 0
        %v1696 = vsel %vm469, %v1569, 0
        %v1699 = vsel %vm469, %v1570, 0
        %v1702 = vsel %vm469, %v1571, 0
        %v1705 = vsel %vm469, %v1572, 0
        %v1708 = vsel %vm469, %v1573, 0
        %v1711 = vsel %vm469, %v1574, 0
        %v1714 = vsel %vm469, %v1575, 0
        %v1717 = vsel %vm469, %v1576, 0
        %v1720 = vsel %vm469, %v1577, 0
        %v1723 = vsel %vm469, %v1578, 0
        %v1726 = vsel %vm578, %v1616, 0
        %1728 = vmatpush.msra.mxu0 0.0
        %1729 = vmatpush.msra.mxu0 0.0
        %1730 = vmatpush.msra.mxu0 0.0
        %1731 = vmatpush.msra.mxu0 0.0
        %1732 = vmatpush.msra.mxu0 0.0
        %1733 = vmatpush.msra.mxu0 0.0
        %1734 = vmatpush.msra.mxu0 0.0
        %1735 = vmatpush.msra.mxu0 0.0
        %1736 = vmatpush.msra.mxu0 0.0
        %1737 = vmatpush.msra.mxu0 0.0
        %1738 = vmatpush.msra.mxu0 0.0
        %1739 = vmatpush.msra.mxu0 0.0
        %1740 = vmatpush.msra.mxu0 0.0
        %1741 = vmatpush.msra.mxu0 0.0
        %1742 = vmatpush.msra.mxu0 0.0
        %1743 = vmatpush.msra.mxu0 %v1726
        %1744 = vmatmul.f32.gmra.mxu0 %v1618
        %v1745 = vpop.f32.mrf.mxu0
        %v1746 = vadd.f32 0.0, %v1745
        %1747 = vmatmul.f32.gmra.mxu0 %v1621
        %v1748 = vpop.f32.mrf.mxu0
        %v1749 = vadd.f32 0.0, %v1748
        %1750 = vmatmul.f32.gmra.mxu0 %v1624
        %v1751 = vpop.f32.mrf.mxu0
        %v1752 = vadd.f32 0.0, %v1751
        %1753 = vmatmul.f32.gmra.mxu0 %v1627
        %v1754 = vpop.f32.mrf.mxu0
        %v1755 = vadd.f32 0.0, %v1754
        %1756 = vmatmul.f32.gmra.mxu0 %v1630
        %v1757 = vpop.f32.mrf.mxu0
        %v1758 = vadd.f32 0.0, %v1757
        %1759 = vmatmul.f32.gmra.mxu0 %v1633
        %v1760 = vpop.f32.mrf.mxu0
        %v1761 = vadd.f32 0.0, %v1760
        %1762 = vmatmul.f32.gmra.mxu0 %v1636
        %v1763 = vpop.f32.mrf.mxu0
        %v1764 = vadd.f32 0.0, %v1763
        %1765 = vmatmul.f32.gmra.mxu0 %v1639
        %v1766 = vpop.f32.mrf.mxu0
        %v1767 = vadd.f32 0.0, %v1766
        %1768 = vmatmul.f32.gmra.mxu0 %v1642
        %v1769 = vpop.f32.mrf.mxu0
        %v1770 = vadd.f32 0.0, %v1769
        %1771 = vmatmul.f32.gmra.mxu0 %v1645
        %v1772 = vpop.f32.mrf.mxu0
        %v1773 = vadd.f32 0.0, %v1772
        %1774 = vmatmul.f32.gmra.mxu0 %v1648
        %v1775 = vpop.f32.mrf.mxu0
        %v1776 = vadd.f32 0.0, %v1775
        %1777 = vmatmul.f32.gmra.mxu0 %v1651
        %v1778 = vpop.f32.mrf.mxu0
        %v1779 = vadd.f32 0.0, %v1778
        %1780 = vmatmul.f32.gmra.mxu0 %v1654
        %v1781 = vpop.f32.mrf.mxu0
        %v1782 = vadd.f32 0.0, %v1781
        %1783 = vmatmul.f32.gmra.mxu0 %v1657
        %v1784 = vpop.f32.mrf.mxu0
        %v1785 = vadd.f32 0.0, %v1784
        %1786 = vmatmul.f32.gmra.mxu0 %v1660
        %v1787 = vpop.f32.mrf.mxu0
        %v1788 = vadd.f32 0.0, %v1787
        %1789 = vmatmul.f32.gmra.mxu0 %v1663
        %v1790 = vpop.f32.mrf.mxu0
        %v1791 = vadd.f32 0.0, %v1790
        %1792 = vmatmul.f32.gmra.mxu0 %v1666
        %v1793 = vpop.f32.mrf.mxu0
        %v1794 = vadd.f32 0.0, %v1793
        %1795 = vmatmul.f32.gmra.mxu0 %v1669
        %v1796 = vpop.f32.mrf.mxu0
        %v1797 = vadd.f32 0.0, %v1796
        %1798 = vmatmul.f32.gmra.mxu0 %v1672
        %v1799 = vpop.f32.mrf.mxu0
        %v1800 = vadd.f32 0.0, %v1799
        %1801 = vmatmul.f32.gmra.mxu0 %v1675
        %v1802 = vpop.f32.mrf.mxu0
        %v1803 = vadd.f32 0.0, %v1802
        %1804 = vmatmul.f32.gmra.mxu0 %v1678
        %v1805 = vpop.f32.mrf.mxu0
        %v1806 = vadd.f32 0.0, %v1805
        %1807 = vmatmul.f32.gmra.mxu0 %v1681
        %v1808 = vpop.f32.mrf.mxu0
        %v1809 = vadd.f32 0.0, %v1808
        %1810 = vmatmul.f32.gmra.mxu0 %v1684
        %v1811 = vpop.f32.mrf.mxu0
        %v1812 = vadd.f32 0.0, %v1811
        %1813 = vmatmul.f32.gmra.mxu0 %v1687
        %v1814 = vpop.f32.mrf.mxu0
        %v1815 = vadd.f32 0.0, %v1814
        %1816 = vmatmul.f32.gmra.mxu0 %v1690
        %v1817 = vpop.f32.mrf.mxu0
        %v1818 = vadd.f32 0.0, %v1817
        %1819 = vmatmul.f32.gmra.mxu0 %v1693
        %v1820 = vpop.f32.mrf.mxu0
        %v1821 = vadd.f32 0.0, %v1820
        %1822 = vmatmul.f32.gmra.mxu0 %v1696
        %v1823 = vpop.f32.mrf.mxu0
        %v1824 = vadd.f32 0.0, %v1823
        %1825 = vmatmul.f32.gmra.mxu0 %v1699
        %v1826 = vpop.f32.mrf.mxu0
        %v1827 = vadd.f32 0.0, %v1826
        %1828 = vmatmul.f32.gmra.mxu0 %v1702
        %v1829 = vpop.f32.mrf.mxu0
        %v1830 = vadd.f32 0.0, %v1829
        %1831 = vmatmul.f32.gmra.mxu0 %v1705
        %v1832 = vpop.f32.mrf.mxu0
        %v1833 = vadd.f32 0.0, %v1832
        %1834 = vmatmul.f32.gmra.mxu0 %v1708
        %v1835 = vpop.f32.mrf.mxu0
        %v1836 = vadd.f32 0.0, %v1835
        %1837 = vmatmul.f32.gmra.mxu0 %v1711
        %v1838 = vpop.f32.mrf.mxu0
        %v1839 = vadd.f32 0.0, %v1838
        %1840 = vmatmul.f32.gmra.mxu0 %v1714
        %v1841 = vpop.f32.mrf.mxu0
        %v1842 = vadd.f32 0.0, %v1841
        %1843 = vmatmul.f32.gmra.mxu0 %v1717
        %v1844 = vpop.f32.mrf.mxu0
        %v1845 = vadd.f32 0.0, %v1844
        %1846 = vmatmul.f32.gmra.mxu0 %v1720
        %v1847 = vpop.f32.mrf.mxu0
        %v1848 = vadd.f32 0.0, %v1847
        %1849 = vmatmul.f32.gmra.mxu0 %v1723
        %v1850 = vpop.f32.mrf.mxu0
        %v1851 = vadd.f32 0.0, %v1850
        %1852 = vdwg.mxu0
        %v1853 = vadd.f32 %v1579, %v1746
        %v1854 = vadd.f32 %v1580, %v1749
        %v1855 = vadd.f32 %v1581, %v1752
        %v1856 = vadd.f32 %v1582, %v1755
        %v1857 = vadd.f32 %v1583, %v1758
        %v1858 = vadd.f32 %v1584, %v1761
        %v1859 = vadd.f32 %v1585, %v1764
        %v1860 = vadd.f32 %v1586, %v1767
        %v1861 = vadd.f32 %v1587, %v1770
        %v1862 = vadd.f32 %v1588, %v1773
        %v1863 = vadd.f32 %v1589, %v1776
        %v1864 = vadd.f32 %v1590, %v1779
        %v1865 = vadd.f32 %v1591, %v1782
        %v1866 = vadd.f32 %v1592, %v1785
        %v1867 = vadd.f32 %v1593, %v1788
        %v1868 = vadd.f32 %v1594, %v1791
        %v1869 = vadd.f32 %v1595, %v1794
        %v1870 = vadd.f32 %v1596, %v1797
        %v1871 = vadd.f32 %v1597, %v1800
        %v1872 = vadd.f32 %v1598, %v1803
        %v1873 = vadd.f32 %v1599, %v1806
        %v1874 = vadd.f32 %v1600, %v1809
        %v1875 = vadd.f32 %v1601, %v1812
        %v1876 = vadd.f32 %v1602, %v1815
        %v1877 = vadd.f32 %v1603, %v1818
        %v1878 = vadd.f32 %v1604, %v1821
        %v1879 = vadd.f32 %v1605, %v1824
        %v1880 = vadd.f32 %v1606, %v1827
        %v1881 = vadd.f32 %v1607, %v1830
        %v1882 = vadd.f32 %v1608, %v1833
        %v1883 = vadd.f32 %v1609, %v1836
        %v1884 = vadd.f32 %v1610, %v1839
        %v1885 = vadd.f32 %v1611, %v1842
        %v1886 = vadd.f32 %v1612, %v1845
        %v1887 = vadd.f32 %v1613, %v1848
        %v1888 = vadd.f32 %v1614, %v1851
        %1889 = vst.msk [vmem:[#allocation2] sm:$0xff] %vm359, %v1853
        %1890 = vst.msk [vmem:[#allocation2 + $0x8] sm:$0xff] %vm359, %v1854
        %1891 = vst.msk [vmem:[#allocation2 + $0x10] sm:$0xff] %vm359, %v1855
        %1892 = vst.msk [vmem:[#allocation2 + $0x18] sm:$0xff] %vm359, %v1856
        %1893 = vst.msk [vmem:[#allocation2 + $0x20] sm:$0xff] %vm359, %v1857
        %1894 = vst.msk [vmem:[#allocation2 + $0x28] sm:$0xff] %vm359, %v1858
        %1895 = vst.msk [vmem:[#allocation2 + $0x30] sm:$0xff] %vm359, %v1859
        %1896 = vst.msk [vmem:[#allocation2 + $0x38] sm:$0xff] %vm359, %v1860
        %1897 = vst.msk [vmem:[#allocation2 + $0x40] sm:$0xff] %vm359, %v1861
        %1898 = vst.msk [vmem:[#allocation2 + $0x48] sm:$0xff] %vm359, %v1862
        %1899 = vst.msk [vmem:[#allocation2 + $0x50] sm:$0xff] %vm359, %v1863
        %1900 = vst.msk [vmem:[#allocation2 + $0x58] sm:$0xff] %vm359, %v1864
        %1901 = vst.msk [vmem:[#allocation2 + $0x60] sm:$0xff] %vm359, %v1865
        %1902 = vst.msk [vmem:[#allocation2 + $0x68] sm:$0xff] %vm359, %v1866
        %1903 = vst.msk [vmem:[#allocation2 + $0x70] sm:$0xff] %vm359, %v1867
        %1904 = vst.msk [vmem:[#allocation2 + $0x78] sm:$0xff] %vm359, %v1868
        %1905 = vst.msk [vmem:[#allocation2 + $0x80] sm:$0xff] %vm359, %v1869
        %1906 = vst.msk [vmem:[#allocation2 + $0x88] sm:$0xff] %vm359, %v1870
        %1907 = vst.msk [vmem:[#allocation2 + $0x90] sm:$0xff] %vm359, %v1871
        %1908 = vst.msk [vmem:[#allocation2 + $0x98] sm:$0xff] %vm359, %v1872
        %1909 = vst.msk [vmem:[#allocation2 + $0xa0] sm:$0xff] %vm359, %v1873
        %1910 = vst.msk [vmem:[#allocation2 + $0xa8] sm:$0xff] %vm359, %v1874
        %1911 = vst.msk [vmem:[#allocation2 + $0xb0] sm:$0xff] %vm359, %v1875
        %1912 = vst.msk [vmem:[#allocation2 + $0xb8] sm:$0xff] %vm359, %v1876
        %1913 = vst.msk [vmem:[#allocation2 + $0xc0] sm:$0xff] %vm359, %v1877
        %1914 = vst.msk [vmem:[#allocation2 + $0xc8] sm:$0xff] %vm359, %v1878
        %1915 = vst.msk [vmem:[#allocation2 + $0xd0] sm:$0xff] %vm359, %v1879
        %1916 = vst.msk [vmem:[#allocation2 + $0xd8] sm:$0xff] %vm359, %v1880
        %1917 = vst.msk [vmem:[#allocation2 + $0xe0] sm:$0xff] %vm359, %v1881
        %1918 = vst.msk [vmem:[#allocation2 + $0xe8] sm:$0xff] %vm359, %v1882
        %1919 = vst.msk [vmem:[#allocation2 + $0xf0] sm:$0xff] %vm359, %v1883
        %1920 = vst.msk [vmem:[#allocation2 + $0xf8] sm:$0xff] %vm359, %v1884
        %1921 = vst.msk [vmem:[#allocation2 + $0x100] sm:$0xff] %vm359, %v1885
        %1922 = vst.msk [vmem:[#allocation2 + $0x108] sm:$0xff] %vm359, %v1886
        %1923 = vst.msk [vmem:[#allocation2 + $0x110] sm:$0xff] %vm359, %v1887
        %1924 = vst.msk [vmem:[#allocation2 + $0x118] sm:$0xff] %vm359, %v1888
        %v1925 = vld [vmem:[%s358 + $0x13] sm:$0xff]
        %v1926 = vld [vmem:[%s358 + $0x1b] sm:$0xff]
        %v1927 = vld [vmem:[%s358 + $0x23] sm:$0xff]
        %v1928 = vld [vmem:[%s358 + $0x2b] sm:$0xff]
        %v1929 = vld [vmem:[%s358 + $0x33] sm:$0xff]
        %v1930 = vld [vmem:[%s358 + $0x3b] sm:$0xff]
        %v1931 = vld [vmem:[%s358 + $0x43] sm:$0xff]
        %v1932 = vld [vmem:[%s358 + $0x4b] sm:$0xff]
        %v1933 = vld [vmem:[%s358 + $0x53] sm:$0xff]
        %v1934 = vld [vmem:[%s358 + $0x5b] sm:$0xff]
        %v1935 = vld [vmem:[%s358 + $0x63] sm:$0xff]
        %v1936 = vld [vmem:[%s358 + $0x6b] sm:$0xff]
        %v1937 = vld [vmem:[%s358 + $0x73] sm:$0xff]
        %v1938 = vld [vmem:[%s358 + $0x7b] sm:$0xff]
        %v1939 = vld [vmem:[%s358 + $0x83] sm:$0xff]
        %v1940 = vld [vmem:[%s358 + $0x8b] sm:$0xff]
        %v1941 = vld [vmem:[%s358 + $0x93] sm:$0xff]
        %v1942 = vld [vmem:[%s358 + $0x9b] sm:$0xff]
        %v1943 = vld [vmem:[%s358 + $0xa3] sm:$0xff]
        %v1944 = vld [vmem:[%s358 + $0xab] sm:$0xff]
        %v1945 = vld [vmem:[%s358 + $0xb3] sm:$0xff]
        %v1946 = vld [vmem:[%s358 + $0xbb] sm:$0xff]
        %v1947 = vld [vmem:[%s358 + $0xc3] sm:$0xff]
        %v1948 = vld [vmem:[%s358 + $0xcb] sm:$0xff]
        %v1949 = vld [vmem:[%s358 + $0xd3] sm:$0xff]
        %v1950 = vld [vmem:[%s358 + $0xdb] sm:$0xff]
        %v1951 = vld [vmem:[%s358 + $0xe3] sm:$0xff]
        %v1952 = vld [vmem:[%s358 + $0xeb] sm:$0xff]
        %v1953 = vld [vmem:[%s358 + $0xf3] sm:$0xff]
        %v1954 = vld [vmem:[%s358 + $0xfb] sm:$0xff]
        %v1955 = vld [vmem:[%s358 + $0x103] sm:$0xff]
        %v1956 = vld [vmem:[%s358 + $0x10b] sm:$0xff]
        %v1957 = vld [vmem:[%s358 + $0x113] sm:$0xff]
        %v1958 = vld [vmem:[%s358 + $0x11b] sm:$0xff]
        %v1959 = vld [vmem:[%s358 + $0x123] sm:$0xff]
        %v1960 = vld [vmem:[%s358 + $0x12b] sm:$0xff]
        %v1961 = vld [vmem:[#allocation2] sm:$0xff]
        %v1962 = vld [vmem:[#allocation2 + $0x8] sm:$0xff]
        %v1963 = vld [vmem:[#allocation2 + $0x10] sm:$0xff]
        %v1964 = vld [vmem:[#allocation2 + $0x18] sm:$0xff]
        %v1965 = vld [vmem:[#allocation2 + $0x20] sm:$0xff]
        %v1966 = vld [vmem:[#allocation2 + $0x28] sm:$0xff]
        %v1967 = vld [vmem:[#allocation2 + $0x30] sm:$0xff]
        %v1968 = vld [vmem:[#allocation2 + $0x38] sm:$0xff]
        %v1969 = vld [vmem:[#allocation2 + $0x40] sm:$0xff]
        %v1970 = vld [vmem:[#allocation2 + $0x48] sm:$0xff]
        %v1971 = vld [vmem:[#allocation2 + $0x50] sm:$0xff]
        %v1972 = vld [vmem:[#allocation2 + $0x58] sm:$0xff]
        %v1973 = vld [vmem:[#allocation2 + $0x60] sm:$0xff]
        %v1974 = vld [vmem:[#allocation2 + $0x68] sm:$0xff]
        %v1975 = vld [vmem:[#allocation2 + $0x70] sm:$0xff]
        %v1976 = vld [vmem:[#allocation2 + $0x78] sm:$0xff]
        %v1977 = vld [vmem:[#allocation2 + $0x80] sm:$0xff]
        %v1978 = vld [vmem:[#allocation2 + $0x88] sm:$0xff]
        %v1979 = vld [vmem:[#allocation2 + $0x90] sm:$0xff]
        %v1980 = vld [vmem:[#allocation2 + $0x98] sm:$0xff]
        %v1981 = vld [vmem:[#allocation2 + $0xa0] sm:$0xff]
        %v1982 = vld [vmem:[#allocation2 + $0xa8] sm:$0xff]
        %v1983 = vld [vmem:[#allocation2 + $0xb0] sm:$0xff]
        %v1984 = vld [vmem:[#allocation2 + $0xb8] sm:$0xff]
        %v1985 = vld [vmem:[#allocation2 + $0xc0] sm:$0xff]
        %v1986 = vld [vmem:[#allocation2 + $0xc8] sm:$0xff]
        %v1987 = vld [vmem:[#allocation2 + $0xd0] sm:$0xff]
        %v1988 = vld [vmem:[#allocation2 + $0xd8] sm:$0xff]
        %v1989 = vld [vmem:[#allocation2 + $0xe0] sm:$0xff]
        %v1990 = vld [vmem:[#allocation2 + $0xe8] sm:$0xff]
        %v1991 = vld [vmem:[#allocation2 + $0xf0] sm:$0xff]
        %v1992 = vld [vmem:[#allocation2 + $0xf8] sm:$0xff]
        %v1993 = vld [vmem:[#allocation2 + $0x100] sm:$0xff]
        %v1994 = vld [vmem:[#allocation2 + $0x108] sm:$0xff]
        %v1995 = vld [vmem:[#allocation2 + $0x110] sm:$0xff]
        %v1996 = vld [vmem:[#allocation2 + $0x118] sm:$0xff]
        %s1997 = scalar_lea.vmem %s2, 16
        %v1998 = vld [vmem:[%s1997] sm:$0xf]
        %v2000 = vsel %vm469, %v1925, 0
        %v2003 = vsel %vm469, %v1926, 0
        %v2006 = vsel %vm469, %v1927, 0
        %v2009 = vsel %vm469, %v1928, 0
        %v2012 = vsel %vm469, %v1929, 0
        %v2015 = vsel %vm469, %v1930, 0
        %v2018 = vsel %vm469, %v1931, 0
        %v2021 = vsel %vm469, %v1932, 0
        %v2024 = vsel %vm469, %v1933, 0
        %v2027 = vsel %vm469, %v1934, 0
        %v2030 = vsel %vm469, %v1935, 0
        %v2033 = vsel %vm469, %v1936, 0
        %v2036 = vsel %vm469, %v1937, 0
        %v2039 = vsel %vm469, %v1938, 0
        %v2042 = vsel %vm469, %v1939, 0
        %v2045 = vsel %vm469, %v1940, 0
        %v2048 = vsel %vm469, %v1941, 0
        %v2051 = vsel %vm469, %v1942, 0
        %v2054 = vsel %vm469, %v1943, 0
        %v2057 = vsel %vm469, %v1944, 0
        %v2060 = vsel %vm469, %v1945, 0
        %v2063 = vsel %vm469, %v1946, 0
        %v2066 = vsel %vm469, %v1947, 0
        %v2069 = vsel %vm469, %v1948, 0
        %v2072 = vsel %vm469, %v1949, 0
        %v2075 = vsel %vm469, %v1950, 0
        %v2078 = vsel %vm469, %v1951, 0
        %v2081 = vsel %vm469, %v1952, 0
        %v2084 = vsel %vm469, %v1953, 0
        %v2087 = vsel %vm469, %v1954, 0
        %v2090 = vsel %vm469, %v1955, 0
        %v2093 = vsel %vm469, %v1956, 0
        %v2096 = vsel %vm469, %v1957, 0
        %v2099 = vsel %vm469, %v1958, 0
        %v2102 = vsel %vm469, %v1959, 0
        %v2105 = vsel %vm469, %v1960, 0
        %v2108 = vsel %vm578, %v1998, 0
        %2110 = vmatpush.msra.mxu0 0.0
        %2111 = vmatpush.msra.mxu0 0.0
        %2112 = vmatpush.msra.mxu0 0.0
        %2113 = vmatpush.msra.mxu0 0.0
        %2114 = vmatpush.msra.mxu0 0.0
        %2115 = vmatpush.msra.mxu0 0.0
        %2116 = vmatpush.msra.mxu0 0.0
        %2117 = vmatpush.msra.mxu0 0.0
        %2118 = vmatpush.msra.mxu0 0.0
        %2119 = vmatpush.msra.mxu0 0.0
        %2120 = vmatpush.msra.mxu0 0.0
        %2121 = vmatpush.msra.mxu0 0.0
        %2122 = vmatpush.msra.mxu0 0.0
        %2123 = vmatpush.msra.mxu0 0.0
        %2124 = vmatpush.msra.mxu0 0.0
        %2125 = vmatpush.msra.mxu0 %v2108
        %2126 = vmatmul.f32.gmra.mxu0 %v2000
        %v2127 = vpop.f32.mrf.mxu0
        %v2128 = vadd.f32 0.0, %v2127
        %2129 = vmatmul.f32.gmra.mxu0 %v2003
        %v2130 = vpop.f32.mrf.mxu0
        %v2131 = vadd.f32 0.0, %v2130
        %2132 = vmatmul.f32.gmra.mxu0 %v2006
        %v2133 = vpop.f32.mrf.mxu0
        %v2134 = vadd.f32 0.0, %v2133
        %2135 = vmatmul.f32.gmra.mxu0 %v2009
        %v2136 = vpop.f32.mrf.mxu0
        %v2137 = vadd.f32 0.0, %v2136
        %2138 = vmatmul.f32.gmra.mxu0 %v2012
        %v2139 = vpop.f32.mrf.mxu0
        %v2140 = vadd.f32 0.0, %v2139
        %2141 = vmatmul.f32.gmra.mxu0 %v2015
        %v2142 = vpop.f32.mrf.mxu0
        %v2143 = vadd.f32 0.0, %v2142
        %2144 = vmatmul.f32.gmra.mxu0 %v2018
        %v2145 = vpop.f32.mrf.mxu0
        %v2146 = vadd.f32 0.0, %v2145
        %2147 = vmatmul.f32.gmra.mxu0 %v2021
        %v2148 = vpop.f32.mrf.mxu0
        %v2149 = vadd.f32 0.0, %v2148
        %2150 = vmatmul.f32.gmra.mxu0 %v2024
        %v2151 = vpop.f32.mrf.mxu0
        %v2152 = vadd.f32 0.0, %v2151
        %2153 = vmatmul.f32.gmra.mxu0 %v2027
        %v2154 = vpop.f32.mrf.mxu0
        %v2155 = vadd.f32 0.0, %v2154
        %2156 = vmatmul.f32.gmra.mxu0 %v2030
        %v2157 = vpop.f32.mrf.mxu0
        %v2158 = vadd.f32 0.0, %v2157
        %2159 = vmatmul.f32.gmra.mxu0 %v2033
        %v2160 = vpop.f32.mrf.mxu0
        %v2161 = vadd.f32 0.0, %v2160
        %2162 = vmatmul.f32.gmra.mxu0 %v2036
        %v2163 = vpop.f32.mrf.mxu0
        %v2164 = vadd.f32 0.0, %v2163
        %2165 = vmatmul.f32.gmra.mxu0 %v2039
        %v2166 = vpop.f32.mrf.mxu0
        %v2167 = vadd.f32 0.0, %v2166
        %2168 = vmatmul.f32.gmra.mxu0 %v2042
        %v2169 = vpop.f32.mrf.mxu0
        %v2170 = vadd.f32 0.0, %v2169
        %2171 = vmatmul.f32.gmra.mxu0 %v2045
        %v2172 = vpop.f32.mrf.mxu0
        %v2173 = vadd.f32 0.0, %v2172
        %2174 = vmatmul.f32.gmra.mxu0 %v2048
        %v2175 = vpop.f32.mrf.mxu0
        %v2176 = vadd.f32 0.0, %v2175
        %2177 = vmatmul.f32.gmra.mxu0 %v2051
        %v2178 = vpop.f32.mrf.mxu0
        %v2179 = vadd.f32 0.0, %v2178
        %2180 = vmatmul.f32.gmra.mxu0 %v2054
        %v2181 = vpop.f32.mrf.mxu0
        %v2182 = vadd.f32 0.0, %v2181
        %2183 = vmatmul.f32.gmra.mxu0 %v2057
        %v2184 = vpop.f32.mrf.mxu0
        %v2185 = vadd.f32 0.0, %v2184
        %2186 = vmatmul.f32.gmra.mxu0 %v2060
        %v2187 = vpop.f32.mrf.mxu0
        %v2188 = vadd.f32 0.0, %v2187
        %2189 = vmatmul.f32.gmra.mxu0 %v2063
        %v2190 = vpop.f32.mrf.mxu0
        %v2191 = vadd.f32 0.0, %v2190
        %2192 = vmatmul.f32.gmra.mxu0 %v2066
        %v2193 = vpop.f32.mrf.mxu0
        %v2194 = vadd.f32 0.0, %v2193
        %2195 = vmatmul.f32.gmra.mxu0 %v2069
        %v2196 = vpop.f32.mrf.mxu0
        %v2197 = vadd.f32 0.0, %v2196
        %2198 = vmatmul.f32.gmra.mxu0 %v2072
        %v2199 = vpop.f32.mrf.mxu0
        %v2200 = vadd.f32 0.0, %v2199
        %2201 = vmatmul.f32.gmra.mxu0 %v2075
        %v2202 = vpop.f32.mrf.mxu0
        %v2203 = vadd.f32 0.0, %v2202
        %2204 = vmatmul.f32.gmra.mxu0 %v2078
        %v2205 = vpop.f32.mrf.mxu0
        %v2206 = vadd.f32 0.0, %v2205
        %2207 = vmatmul.f32.gmra.mxu0 %v2081
        %v2208 = vpop.f32.mrf.mxu0
        %v2209 = vadd.f32 0.0, %v2208
        %2210 = vmatmul.f32.gmra.mxu0 %v2084
        %v2211 = vpop.f32.mrf.mxu0
        %v2212 = vadd.f32 0.0, %v2211
        %2213 = vmatmul.f32.gmra.mxu0 %v2087
        %v2214 = vpop.f32.mrf.mxu0
        %v2215 = vadd.f32 0.0, %v2214
        %2216 = vmatmul.f32.gmra.mxu0 %v2090
        %v2217 = vpop.f32.mrf.mxu0
        %v2218 = vadd.f32 0.0, %v2217
        %2219 = vmatmul.f32.gmra.mxu0 %v2093
        %v2220 = vpop.f32.mrf.mxu0
        %v2221 = vadd.f32 0.0, %v2220
        %2222 = vmatmul.f32.gmra.mxu0 %v2096
        %v2223 = vpop.f32.mrf.mxu0
        %v2224 = vadd.f32 0.0, %v2223
        %2225 = vmatmul.f32.gmra.mxu0 %v2099
        %v2226 = vpop.f32.mrf.mxu0
        %v2227 = vadd.f32 0.0, %v2226
        %2228 = vmatmul.f32.gmra.mxu0 %v2102
        %v2229 = vpop.f32.mrf.mxu0
        %v2230 = vadd.f32 0.0, %v2229
        %2231 = vmatmul.f32.gmra.mxu0 %v2105
        %v2232 = vpop.f32.mrf.mxu0
        %v2233 = vadd.f32 0.0, %v2232
        %2234 = vdwg.mxu0
        %v2235 = vadd.f32 %v1961, %v2128
        %v2236 = vadd.f32 %v1962, %v2131
        %v2237 = vadd.f32 %v1963, %v2134
        %v2238 = vadd.f32 %v1964, %v2137
        %v2239 = vadd.f32 %v1965, %v2140
        %v2240 = vadd.f32 %v1966, %v2143
        %v2241 = vadd.f32 %v1967, %v2146
        %v2242 = vadd.f32 %v1968, %v2149
        %v2243 = vadd.f32 %v1969, %v2152
        %v2244 = vadd.f32 %v1970, %v2155
        %v2245 = vadd.f32 %v1971, %v2158
        %v2246 = vadd.f32 %v1972, %v2161
        %v2247 = vadd.f32 %v1973, %v2164
        %v2248 = vadd.f32 %v1974, %v2167
        %v2249 = vadd.f32 %v1975, %v2170
        %v2250 = vadd.f32 %v1976, %v2173
        %v2251 = vadd.f32 %v1977, %v2176
        %v2252 = vadd.f32 %v1978, %v2179
        %v2253 = vadd.f32 %v1979, %v2182
        %v2254 = vadd.f32 %v1980, %v2185
        %v2255 = vadd.f32 %v1981, %v2188
        %v2256 = vadd.f32 %v1982, %v2191
        %v2257 = vadd.f32 %v1983, %v2194
        %v2258 = vadd.f32 %v1984, %v2197
        %v2259 = vadd.f32 %v1985, %v2200
        %v2260 = vadd.f32 %v1986, %v2203
        %v2261 = vadd.f32 %v1987, %v2206
        %v2262 = vadd.f32 %v1988, %v2209
        %v2263 = vadd.f32 %v1989, %v2212
        %v2264 = vadd.f32 %v1990, %v2215
        %v2265 = vadd.f32 %v1991, %v2218
        %v2266 = vadd.f32 %v1992, %v2221
        %v2267 = vadd.f32 %v1993, %v2224
        %v2268 = vadd.f32 %v1994, %v2227
        %v2269 = vadd.f32 %v1995, %v2230
        %v2270 = vadd.f32 %v1996, %v2233
        %2271 = vst.msk [vmem:[#allocation2] sm:$0xff] %vm359, %v2235
        %2272 = vst.msk [vmem:[#allocation2 + $0x8] sm:$0xff] %vm359, %v2236
        %2273 = vst.msk [vmem:[#allocation2 + $0x10] sm:$0xff] %vm359, %v2237
        %2274 = vst.msk [vmem:[#allocation2 + $0x18] sm:$0xff] %vm359, %v2238
        %2275 = vst.msk [vmem:[#allocation2 + $0x20] sm:$0xff] %vm359, %v2239
        %2276 = vst.msk [vmem:[#allocation2 + $0x28] sm:$0xff] %vm359, %v2240
        %2277 = vst.msk [vmem:[#allocation2 + $0x30] sm:$0xff] %vm359, %v2241
        %2278 = vst.msk [vmem:[#allocation2 + $0x38] sm:$0xff] %vm359, %v2242
        %2279 = vst.msk [vmem:[#allocation2 + $0x40] sm:$0xff] %vm359, %v2243
        %2280 = vst.msk [vmem:[#allocation2 + $0x48] sm:$0xff] %vm359, %v2244
        %2281 = vst.msk [vmem:[#allocation2 + $0x50] sm:$0xff] %vm359, %v2245
        %2282 = vst.msk [vmem:[#allocation2 + $0x58] sm:$0xff] %vm359, %v2246
        %2283 = vst.msk [vmem:[#allocation2 + $0x60] sm:$0xff] %vm359, %v2247
        %2284 = vst.msk [vmem:[#allocation2 + $0x68] sm:$0xff] %vm359, %v2248
        %2285 = vst.msk [vmem:[#allocation2 + $0x70] sm:$0xff] %vm359, %v2249
        %2286 = vst.msk [vmem:[#allocation2 + $0x78] sm:$0xff] %vm359, %v2250
        %2287 = vst.msk [vmem:[#allocation2 + $0x80] sm:$0xff] %vm359, %v2251
        %2288 = vst.msk [vmem:[#allocation2 + $0x88] sm:$0xff] %vm359, %v2252
        %2289 = vst.msk [vmem:[#allocation2 + $0x90] sm:$0xff] %vm359, %v2253
        %2290 = vst.msk [vmem:[#allocation2 + $0x98] sm:$0xff] %vm359, %v2254
        %2291 = vst.msk [vmem:[#allocation2 + $0xa0] sm:$0xff] %vm359, %v2255
        %2292 = vst.msk [vmem:[#allocation2 + $0xa8] sm:$0xff] %vm359, %v2256
        %2293 = vst.msk [vmem:[#allocation2 + $0xb0] sm:$0xff] %vm359, %v2257
        %2294 = vst.msk [vmem:[#allocation2 + $0xb8] sm:$0xff] %vm359, %v2258
        %2295 = vst.msk [vmem:[#allocation2 + $0xc0] sm:$0xff] %vm359, %v2259
        %2296 = vst.msk [vmem:[#allocation2 + $0xc8] sm:$0xff] %vm359, %v2260
        %2297 = vst.msk [vmem:[#allocation2 + $0xd0] sm:$0xff] %vm359, %v2261
        %2298 = vst.msk [vmem:[#allocation2 + $0xd8] sm:$0xff] %vm359, %v2262
        %2299 = vst.msk [vmem:[#allocation2 + $0xe0] sm:$0xff] %vm359, %v2263
        %2300 = vst.msk [vmem:[#allocation2 + $0xe8] sm:$0xff] %vm359, %v2264
        %2301 = vst.msk [vmem:[#allocation2 + $0xf0] sm:$0xff] %vm359, %v2265
        %2302 = vst.msk [vmem:[#allocation2 + $0xf8] sm:$0xff] %vm359, %v2266
        %2303 = vst.msk [vmem:[#allocation2 + $0x100] sm:$0xff] %vm359, %v2267
        %2304 = vst.msk [vmem:[#allocation2 + $0x108] sm:$0xff] %vm359, %v2268
        %2305 = vst.msk [vmem:[#allocation2 + $0x110] sm:$0xff] %vm359, %v2269
        %2306 = vst.msk [vmem:[#allocation2 + $0x118] sm:$0xff] %vm359, %v2270
        %v2307 = vld [vmem:[%s358 + $0x14] sm:$0xff]
        %v2308 = vld [vmem:[%s358 + $0x1c] sm:$0xff]
        %v2309 = vld [vmem:[%s358 + $0x24] sm:$0xff]
        %v2310 = vld [vmem:[%s358 + $0x2c] sm:$0xff]
        %v2311 = vld [vmem:[%s358 + $0x34] sm:$0xff]
        %v2312 = vld [vmem:[%s358 + $0x3c] sm:$0xff]
        %v2313 = vld [vmem:[%s358 + $0x44] sm:$0xff]
        %v2314 = vld [vmem:[%s358 + $0x4c] sm:$0xff]
        %v2315 = vld [vmem:[%s358 + $0x54] sm:$0xff]
        %v2316 = vld [vmem:[%s358 + $0x5c] sm:$0xff]
        %v2317 = vld [vmem:[%s358 + $0x64] sm:$0xff]
        %v2318 = vld [vmem:[%s358 + $0x6c] sm:$0xff]
        %v2319 = vld [vmem:[%s358 + $0x74] sm:$0xff]
        %v2320 = vld [vmem:[%s358 + $0x7c] sm:$0xff]
        %v2321 = vld [vmem:[%s358 + $0x84] sm:$0xff]
        %v2322 = vld [vmem:[%s358 + $0x8c] sm:$0xff]
        %v2323 = vld [vmem:[%s358 + $0x94] sm:$0xff]
        %v2324 = vld [vmem:[%s358 + $0x9c] sm:$0xff]
        %v2325 = vld [vmem:[%s358 + $0xa4] sm:$0xff]
        %v2326 = vld [vmem:[%s358 + $0xac] sm:$0xff]
        %v2327 = vld [vmem:[%s358 + $0xb4] sm:$0xff]
        %v2328 = vld [vmem:[%s358 + $0xbc] sm:$0xff]
        %v2329 = vld [vmem:[%s358 + $0xc4] sm:$0xff]
        %v2330 = vld [vmem:[%s358 + $0xcc] sm:$0xff]
        %v2331 = vld [vmem:[%s358 + $0xd4] sm:$0xff]
        %v2332 = vld [vmem:[%s358 + $0xdc] sm:$0xff]
        %v2333 = vld [vmem:[%s358 + $0xe4] sm:$0xff]
        %v2334 = vld [vmem:[%s358 + $0xec] sm:$0xff]
        %v2335 = vld [vmem:[%s358 + $0xf4] sm:$0xff]
        %v2336 = vld [vmem:[%s358 + $0xfc] sm:$0xff]
        %v2337 = vld [vmem:[%s358 + $0x104] sm:$0xff]
        %v2338 = vld [vmem:[%s358 + $0x10c] sm:$0xff]
        %v2339 = vld [vmem:[%s358 + $0x114] sm:$0xff]
        %v2340 = vld [vmem:[%s358 + $0x11c] sm:$0xff]
        %v2341 = vld [vmem:[%s358 + $0x124] sm:$0xff]
        %v2342 = vld [vmem:[%s358 + $0x12c] sm:$0xff]
        %v2343 = vld [vmem:[#allocation2] sm:$0xff]
        %v2344 = vld [vmem:[#allocation2 + $0x8] sm:$0xff]
        %v2345 = vld [vmem:[#allocation2 + $0x10] sm:$0xff]
        %v2346 = vld [vmem:[#allocation2 + $0x18] sm:$0xff]
        %v2347 = vld [vmem:[#allocation2 + $0x20] sm:$0xff]
        %v2348 = vld [vmem:[#allocation2 + $0x28] sm:$0xff]
        %v2349 = vld [vmem:[#allocation2 + $0x30] sm:$0xff]
        %v2350 = vld [vmem:[#allocation2 + $0x38] sm:$0xff]
        %v2351 = vld [vmem:[#allocation2 + $0x40] sm:$0xff]
        %v2352 = vld [vmem:[#allocation2 + $0x48] sm:$0xff]
        %v2353 = vld [vmem:[#allocation2 + $0x50] sm:$0xff]
        %v2354 = vld [vmem:[#allocation2 + $0x58] sm:$0xff]
        %v2355 = vld [vmem:[#allocation2 + $0x60] sm:$0xff]
        %v2356 = vld [vmem:[#allocation2 + $0x68] sm:$0xff]
        %v2357 = vld [vmem:[#allocation2 + $0x70] sm:$0xff]
        %v2358 = vld [vmem:[#allocation2 + $0x78] sm:$0xff]
        %v2359 = vld [vmem:[#allocation2 + $0x80] sm:$0xff]
        %v2360 = vld [vmem:[#allocation2 + $0x88] sm:$0xff]
        %v2361 = vld [vmem:[#allocation2 + $0x90] sm:$0xff]
        %v2362 = vld [vmem:[#allocation2 + $0x98] sm:$0xff]
        %v2363 = vld [vmem:[#allocation2 + $0xa0] sm:$0xff]
        %v2364 = vld [vmem:[#allocation2 + $0xa8] sm:$0xff]
        %v2365 = vld [vmem:[#allocation2 + $0xb0] sm:$0xff]
        %v2366 = vld [vmem:[#allocation2 + $0xb8] sm:$0xff]
        %v2367 = vld [vmem:[#allocation2 + $0xc0] sm:$0xff]
        %v2368 = vld [vmem:[#allocation2 + $0xc8] sm:$0xff]
        %v2369 = vld [vmem:[#allocation2 + $0xd0] sm:$0xff]
        %v2370 = vld [vmem:[#allocation2 + $0xd8] sm:$0xff]
        %v2371 = vld [vmem:[#allocation2 + $0xe0] sm:$0xff]
        %v2372 = vld [vmem:[#allocation2 + $0xe8] sm:$0xff]
        %v2373 = vld [vmem:[#allocation2 + $0xf0] sm:$0xff]
        %v2374 = vld [vmem:[#allocation2 + $0xf8] sm:$0xff]
        %v2375 = vld [vmem:[#allocation2 + $0x100] sm:$0xff]
        %v2376 = vld [vmem:[#allocation2 + $0x108] sm:$0xff]
        %v2377 = vld [vmem:[#allocation2 + $0x110] sm:$0xff]
        %v2378 = vld [vmem:[#allocation2 + $0x118] sm:$0xff]
        %s2379 = scalar_lea.vmem %s2, 20
        %v2380 = vld [vmem:[%s2379] sm:$0xf]
        %v2382 = vsel %vm469, %v2307, 0
        %v2385 = vsel %vm469, %v2308, 0
        %v2388 = vsel %vm469, %v2309, 0
        %v2391 = vsel %vm469, %v2310, 0
        %v2394 = vsel %vm469, %v2311, 0
        %v2397 = vsel %vm469, %v2312, 0
        %v2400 = vsel %vm469, %v2313, 0
        %v2403 = vsel %vm469, %v2314, 0
        %v2406 = vsel %vm469, %v2315, 0
        %v2409 = vsel %vm469, %v2316, 0
        %v2412 = vsel %vm469, %v2317, 0
        %v2415 = vsel %vm469, %v2318, 0
        %v2418 = vsel %vm469, %v2319, 0
        %v2421 = vsel %vm469, %v2320, 0
        %v2424 = vsel %vm469, %v2321, 0
        %v2427 = vsel %vm469, %v2322, 0
        %v2430 = vsel %vm469, %v2323, 0
        %v2433 = vsel %vm469, %v2324, 0
        %v2436 = vsel %vm469, %v2325, 0
        %v2439 = vsel %vm469, %v2326, 0
        %v2442 = vsel %vm469, %v2327, 0
        %v2445 = vsel %vm469, %v2328, 0
        %v2448 = vsel %vm469, %v2329, 0
        %v2451 = vsel %vm469, %v2330, 0
        %v2454 = vsel %vm469, %v2331, 0
        %v2457 = vsel %vm469, %v2332, 0
        %v2460 = vsel %vm469, %v2333, 0
        %v2463 = vsel %vm469, %v2334, 0
        %v2466 = vsel %vm469, %v2335, 0
        %v2469 = vsel %vm469, %v2336, 0
        %v2472 = vsel %vm469, %v2337, 0
        %v2475 = vsel %vm469, %v2338, 0
        %v2478 = vsel %vm469, %v2339, 0
        %v2481 = vsel %vm469, %v2340, 0
        %v2484 = vsel %vm469, %v2341, 0
        %v2487 = vsel %vm469, %v2342, 0
        %v2490 = vsel %vm578, %v2380, 0
        %2492 = vmatpush.msra.mxu0 0.0
        %2493 = vmatpush.msra.mxu0 0.0
        %2494 = vmatpush.msra.mxu0 0.0
        %2495 = vmatpush.msra.mxu0 0.0
        %2496 = vmatpush.msra.mxu0 0.0
        %2497 = vmatpush.msra.mxu0 0.0
        %2498 = vmatpush.msra.mxu0 0.0
        %2499 = vmatpush.msra.mxu0 0.0
        %2500 = vmatpush.msra.mxu0 0.0
        %2501 = vmatpush.msra.mxu0 0.0
        %2502 = vmatpush.msra.mxu0 0.0
        %2503 = vmatpush.msra.mxu0 0.0
        %2504 = vmatpush.msra.mxu0 0.0
        %2505 = vmatpush.msra.mxu0 0.0
        %2506 = vmatpush.msra.mxu0 0.0
        %2507 = vmatpush.msra.mxu0 %v2490
        %2508 = vmatmul.f32.gmra.mxu0 %v2382
        %v2509 = vpop.f32.mrf.mxu0
        %v2510 = vadd.f32 0.0, %v2509
        %2511 = vmatmul.f32.gmra.mxu0 %v2385
        %v2512 = vpop.f32.mrf.mxu0
        %v2513 = vadd.f32 0.0, %v2512
        %2514 = vmatmul.f32.gmra.mxu0 %v2388
        %v2515 = vpop.f32.mrf.mxu0
        %v2516 = vadd.f32 0.0, %v2515
        %2517 = vmatmul.f32.gmra.mxu0 %v2391
        %v2518 = vpop.f32.mrf.mxu0
        %v2519 = vadd.f32 0.0, %v2518
        %2520 = vmatmul.f32.gmra.mxu0 %v2394
        %v2521 = vpop.f32.mrf.mxu0
        %v2522 = vadd.f32 0.0, %v2521
        %2523 = vmatmul.f32.gmra.mxu0 %v2397
        %v2524 = vpop.f32.mrf.mxu0
        %v2525 = vadd.f32 0.0, %v2524
        %2526 = vmatmul.f32.gmra.mxu0 %v2400
        %v2527 = vpop.f32.mrf.mxu0
        %v2528 = vadd.f32 0.0, %v2527
        %2529 = vmatmul.f32.gmra.mxu0 %v2403
        %v2530 = vpop.f32.mrf.mxu0
        %v2531 = vadd.f32 0.0, %v2530
        %2532 = vmatmul.f32.gmra.mxu0 %v2406
        %v2533 = vpop.f32.mrf.mxu0
        %v2534 = vadd.f32 0.0, %v2533
        %2535 = vmatmul.f32.gmra.mxu0 %v2409
        %v2536 = vpop.f32.mrf.mxu0
        %v2537 = vadd.f32 0.0, %v2536
        %2538 = vmatmul.f32.gmra.mxu0 %v2412
        %v2539 = vpop.f32.mrf.mxu0
        %v2540 = vadd.f32 0.0, %v2539
        %2541 = vmatmul.f32.gmra.mxu0 %v2415
        %v2542 = vpop.f32.mrf.mxu0
        %v2543 = vadd.f32 0.0, %v2542
        %2544 = vmatmul.f32.gmra.mxu0 %v2418
        %v2545 = vpop.f32.mrf.mxu0
        %v2546 = vadd.f32 0.0, %v2545
        %2547 = vmatmul.f32.gmra.mxu0 %v2421
        %v2548 = vpop.f32.mrf.mxu0
        %v2549 = vadd.f32 0.0, %v2548
        %2550 = vmatmul.f32.gmra.mxu0 %v2424
        %v2551 = vpop.f32.mrf.mxu0
        %v2552 = vadd.f32 0.0, %v2551
        %2553 = vmatmul.f32.gmra.mxu0 %v2427
        %v2554 = vpop.f32.mrf.mxu0
        %v2555 = vadd.f32 0.0, %v2554
        %2556 = vmatmul.f32.gmra.mxu0 %v2430
        %v2557 = vpop.f32.mrf.mxu0
        %v2558 = vadd.f32 0.0, %v2557
        %2559 = vmatmul.f32.gmra.mxu0 %v2433
        %v2560 = vpop.f32.mrf.mxu0
        %v2561 = vadd.f32 0.0, %v2560
        %2562 = vmatmul.f32.gmra.mxu0 %v2436
        %v2563 = vpop.f32.mrf.mxu0
        %v2564 = vadd.f32 0.0, %v2563
        %2565 = vmatmul.f32.gmra.mxu0 %v2439
        %v2566 = vpop.f32.mrf.mxu0
        %v2567 = vadd.f32 0.0, %v2566
        %2568 = vmatmul.f32.gmra.mxu0 %v2442
        %v2569 = vpop.f32.mrf.mxu0
        %v2570 = vadd.f32 0.0, %v2569
        %2571 = vmatmul.f32.gmra.mxu0 %v2445
        %v2572 = vpop.f32.mrf.mxu0
        %v2573 = vadd.f32 0.0, %v2572
        %2574 = vmatmul.f32.gmra.mxu0 %v2448
        %v2575 = vpop.f32.mrf.mxu0
        %v2576 = vadd.f32 0.0, %v2575
        %2577 = vmatmul.f32.gmra.mxu0 %v2451
        %v2578 = vpop.f32.mrf.mxu0
        %v2579 = vadd.f32 0.0, %v2578
        %2580 = vmatmul.f32.gmra.mxu0 %v2454
        %v2581 = vpop.f32.mrf.mxu0
        %v2582 = vadd.f32 0.0, %v2581
        %2583 = vmatmul.f32.gmra.mxu0 %v2457
        %v2584 = vpop.f32.mrf.mxu0
        %v2585 = vadd.f32 0.0, %v2584
        %2586 = vmatmul.f32.gmra.mxu0 %v2460
        %v2587 = vpop.f32.mrf.mxu0
        %v2588 = vadd.f32 0.0, %v2587
        %2589 = vmatmul.f32.gmra.mxu0 %v2463
        %v2590 = vpop.f32.mrf.mxu0
        %v2591 = vadd.f32 0.0, %v2590
        %2592 = vmatmul.f32.gmra.mxu0 %v2466
        %v2593 = vpop.f32.mrf.mxu0
        %v2594 = vadd.f32 0.0, %v2593
        %2595 = vmatmul.f32.gmra.mxu0 %v2469
        %v2596 = vpop.f32.mrf.mxu0
        %v2597 = vadd.f32 0.0, %v2596
        %2598 = vmatmul.f32.gmra.mxu0 %v2472
        %v2599 = vpop.f32.mrf.mxu0
        %v2600 = vadd.f32 0.0, %v2599
        %2601 = vmatmul.f32.gmra.mxu0 %v2475
        %v2602 = vpop.f32.mrf.mxu0
        %v2603 = vadd.f32 0.0, %v2602
        %2604 = vmatmul.f32.gmra.mxu0 %v2478
        %v2605 = vpop.f32.mrf.mxu0
        %v2606 = vadd.f32 0.0, %v2605
        %2607 = vmatmul.f32.gmra.mxu0 %v2481
        %v2608 = vpop.f32.mrf.mxu0
        %v2609 = vadd.f32 0.0, %v2608
        %2610 = vmatmul.f32.gmra.mxu0 %v2484
        %v2611 = vpop.f32.mrf.mxu0
        %v2612 = vadd.f32 0.0, %v2611
        %2613 = vmatmul.f32.gmra.mxu0 %v2487
        %v2614 = vpop.f32.mrf.mxu0
        %v2615 = vadd.f32 0.0, %v2614
        %2616 = vdwg.mxu0
        %v2617 = vadd.f32 %v2343, %v2510
        %v2618 = vadd.f32 %v2344, %v2513
        %v2619 = vadd.f32 %v2345, %v2516
        %v2620 = vadd.f32 %v2346, %v2519
        %v2621 = vadd.f32 %v2347, %v2522
        %v2622 = vadd.f32 %v2348, %v2525
        %v2623 = vadd.f32 %v2349, %v2528
        %v2624 = vadd.f32 %v2350, %v2531
        %v2625 = vadd.f32 %v2351, %v2534
        %v2626 = vadd.f32 %v2352, %v2537
        %v2627 = vadd.f32 %v2353, %v2540
        %v2628 = vadd.f32 %v2354, %v2543
        %v2629 = vadd.f32 %v2355, %v2546
        %v2630 = vadd.f32 %v2356, %v2549
        %v2631 = vadd.f32 %v2357, %v2552
        %v2632 = vadd.f32 %v2358, %v2555
        %v2633 = vadd.f32 %v2359, %v2558
        %v2634 = vadd.f32 %v2360, %v2561
        %v2635 = vadd.f32 %v2361, %v2564
        %v2636 = vadd.f32 %v2362, %v2567
        %v2637 = vadd.f32 %v2363, %v2570
        %v2638 = vadd.f32 %v2364, %v2573
        %v2639 = vadd.f32 %v2365, %v2576
        %v2640 = vadd.f32 %v2366, %v2579
        %v2641 = vadd.f32 %v2367, %v2582
        %v2642 = vadd.f32 %v2368, %v2585
        %v2643 = vadd.f32 %v2369, %v2588
        %v2644 = vadd.f32 %v2370, %v2591
        %v2645 = vadd.f32 %v2371, %v2594
        %v2646 = vadd.f32 %v2372, %v2597
        %v2647 = vadd.f32 %v2373, %v2600
        %v2648 = vadd.f32 %v2374, %v2603
        %v2649 = vadd.f32 %v2375, %v2606
        %v2650 = vadd.f32 %v2376, %v2609
        %v2651 = vadd.f32 %v2377, %v2612
        %v2652 = vadd.f32 %v2378, %v2615
        %2653 = vst.msk [vmem:[#allocation2] sm:$0xff] %vm359, %v2617
        %2654 = vst.msk [vmem:[#allocation2 + $0x8] sm:$0xff] %vm359, %v2618
        %2655 = vst.msk [vmem:[#allocation2 + $0x10] sm:$0xff] %vm359, %v2619
        %2656 = vst.msk [vmem:[#allocation2 + $0x18] sm:$0xff] %vm359, %v2620
        %2657 = vst.msk [vmem:[#allocation2 + $0x20] sm:$0xff] %vm359, %v2621
        %2658 = vst.msk [vmem:[#allocation2 + $0x28] sm:$0xff] %vm359, %v2622
        %2659 = vst.msk [vmem:[#allocation2 + $0x30] sm:$0xff] %vm359, %v2623
        %2660 = vst.msk [vmem:[#allocation2 + $0x38] sm:$0xff] %vm359, %v2624
        %2661 = vst.msk [vmem:[#allocation2 + $0x40] sm:$0xff] %vm359, %v2625
        %2662 = vst.msk [vmem:[#allocation2 + $0x48] sm:$0xff] %vm359, %v2626
        %2663 = vst.msk [vmem:[#allocation2 + $0x50] sm:$0xff] %vm359, %v2627
        %2664 = vst.msk [vmem:[#allocation2 + $0x58] sm:$0xff] %vm359, %v2628
        %2665 = vst.msk [vmem:[#allocation2 + $0x60] sm:$0xff] %vm359, %v2629
        %2666 = vst.msk [vmem:[#allocation2 + $0x68] sm:$0xff] %vm359, %v2630
        %2667 = vst.msk [vmem:[#allocation2 + $0x70] sm:$0xff] %vm359, %v2631
        %2668 = vst.msk [vmem:[#allocation2 + $0x78] sm:$0xff] %vm359, %v2632
        %2669 = vst.msk [vmem:[#allocation2 + $0x80] sm:$0xff] %vm359, %v2633
        %2670 = vst.msk [vmem:[#allocation2 + $0x88] sm:$0xff] %vm359, %v2634
        %2671 = vst.msk [vmem:[#allocation2 + $0x90] sm:$0xff] %vm359, %v2635
        %2672 = vst.msk [vmem:[#allocation2 + $0x98] sm:$0xff] %vm359, %v2636
        %2673 = vst.msk [vmem:[#allocation2 + $0xa0] sm:$0xff] %vm359, %v2637
        %2674 = vst.msk [vmem:[#allocation2 + $0xa8] sm:$0xff] %vm359, %v2638
        %2675 = vst.msk [vmem:[#allocation2 + $0xb0] sm:$0xff] %vm359, %v2639
        %2676 = vst.msk [vmem:[#allocation2 + $0xb8] sm:$0xff] %vm359, %v2640
        %2677 = vst.msk [vmem:[#allocation2 + $0xc0] sm:$0xff] %vm359, %v2641
        %2678 = vst.msk [vmem:[#allocation2 + $0xc8] sm:$0xff] %vm359, %v2642
        %2679 = vst.msk [vmem:[#allocation2 + $0xd0] sm:$0xff] %vm359, %v2643
        %2680 = vst.msk [vmem:[#allocation2 + $0xd8] sm:$0xff] %vm359, %v2644
        %2681 = vst.msk [vmem:[#allocation2 + $0xe0] sm:$0xff] %vm359, %v2645
        %2682 = vst.msk [vmem:[#allocation2 + $0xe8] sm:$0xff] %vm359, %v2646
        %2683 = vst.msk [vmem:[#allocation2 + $0xf0] sm:$0xff] %vm359, %v2647
        %2684 = vst.msk [vmem:[#allocation2 + $0xf8] sm:$0xff] %vm359, %v2648
        %2685 = vst.msk [vmem:[#allocation2 + $0x100] sm:$0xff] %vm359, %v2649
        %2686 = vst.msk [vmem:[#allocation2 + $0x108] sm:$0xff] %vm359, %v2650
        %2687 = vst.msk [vmem:[#allocation2 + $0x110] sm:$0xff] %vm359, %v2651
        %2688 = vst.msk [vmem:[#allocation2 + $0x118] sm:$0xff] %vm359, %v2652
        %v2689 = vld [vmem:[%s358 + $0x24] sm:$0xff]
        %v2690 = vld [vmem:[%s358 + $0x2c] sm:$0xff]
        %v2691 = vld [vmem:[%s358 + $0x34] sm:$0xff]
        %v2692 = vld [vmem:[%s358 + $0x3c] sm:$0xff]
        %v2693 = vld [vmem:[%s358 + $0x44] sm:$0xff]
        %v2694 = vld [vmem:[%s358 + $0x4c] sm:$0xff]
        %v2695 = vld [vmem:[%s358 + $0x54] sm:$0xff]
        %v2696 = vld [vmem:[%s358 + $0x5c] sm:$0xff]
        %v2697 = vld [vmem:[%s358 + $0x64] sm:$0xff]
        %v2698 = vld [vmem:[%s358 + $0x6c] sm:$0xff]
        %v2699 = vld [vmem:[%s358 + $0x74] sm:$0xff]
        %v2700 = vld [vmem:[%s358 + $0x7c] sm:$0xff]
        %v2701 = vld [vmem:[%s358 + $0x84] sm:$0xff]
        %v2702 = vld [vmem:[%s358 + $0x8c] sm:$0xff]
        %v2703 = vld [vmem:[%s358 + $0x94] sm:$0xff]
        %v2704 = vld [vmem:[%s358 + $0x9c] sm:$0xff]
        %v2705 = vld [vmem:[%s358 + $0xa4] sm:$0xff]
        %v2706 = vld [vmem:[%s358 + $0xac] sm:$0xff]
        %v2707 = vld [vmem:[%s358 + $0xb4] sm:$0xff]
        %v2708 = vld [vmem:[%s358 + $0xbc] sm:$0xff]
        %v2709 = vld [vmem:[%s358 + $0xc4] sm:$0xff]
        %v2710 = vld [vmem:[%s358 + $0xcc] sm:$0xff]
        %v2711 = vld [vmem:[%s358 + $0xd4] sm:$0xff]
        %v2712 = vld [vmem:[%s358 + $0xdc] sm:$0xff]
        %v2713 = vld [vmem:[%s358 + $0xe4] sm:$0xff]
        %v2714 = vld [vmem:[%s358 + $0xec] sm:$0xff]
        %v2715 = vld [vmem:[%s358 + $0xf4] sm:$0xff]
        %v2716 = vld [vmem:[%s358 + $0xfc] sm:$0xff]
        %v2717 = vld [vmem:[%s358 + $0x104] sm:$0xff]
        %v2718 = vld [vmem:[%s358 + $0x10c] sm:$0xff]
        %v2719 = vld [vmem:[%s358 + $0x114] sm:$0xff]
        %v2720 = vld [vmem:[%s358 + $0x11c] sm:$0xff]
        %v2721 = vld [vmem:[%s358 + $0x124] sm:$0xff]
        %v2722 = vld [vmem:[%s358 + $0x12c] sm:$0xff]
        %v2723 = vld [vmem:[%s358 + $0x134] sm:$0xff]
        %v2724 = vld [vmem:[%s358 + $0x13c] sm:$0xff]
        %v2725 = vld [vmem:[#allocation2] sm:$0xff]
        %v2726 = vld [vmem:[#allocation2 + $0x8] sm:$0xff]
        %v2727 = vld [vmem:[#allocation2 + $0x10] sm:$0xff]
        %v2728 = vld [vmem:[#allocation2 + $0x18] sm:$0xff]
        %v2729 = vld [vmem:[#allocation2 + $0x20] sm:$0xff]
        %v2730 = vld [vmem:[#allocation2 + $0x28] sm:$0xff]
        %v2731 = vld [vmem:[#allocation2 + $0x30] sm:$0xff]
        %v2732 = vld [vmem:[#allocation2 + $0x38] sm:$0xff]
        %v2733 = vld [vmem:[#allocation2 + $0x40] sm:$0xff]
        %v2734 = vld [vmem:[#allocation2 + $0x48] sm:$0xff]
        %v2735 = vld [vmem:[#allocation2 + $0x50] sm:$0xff]
        %v2736 = vld [vmem:[#allocation2 + $0x58] sm:$0xff]
        %v2737 = vld [vmem:[#allocation2 + $0x60] sm:$0xff]
        %v2738 = vld [vmem:[#allocation2 + $0x68] sm:$0xff]
        %v2739 = vld [vmem:[#allocation2 + $0x70] sm:$0xff]
        %v2740 = vld [vmem:[#allocation2 + $0x78] sm:$0xff]
        %v2741 = vld [vmem:[#allocation2 + $0x80] sm:$0xff]
        %v2742 = vld [vmem:[#allocation2 + $0x88] sm:$0xff]
        %v2743 = vld [vmem:[#allocation2 + $0x90] sm:$0xff]
        %v2744 = vld [vmem:[#allocation2 + $0x98] sm:$0xff]
        %v2745 = vld [vmem:[#allocation2 + $0xa0] sm:$0xff]
        %v2746 = vld [vmem:[#allocation2 + $0xa8] sm:$0xff]
        %v2747 = vld [vmem:[#allocation2 + $0xb0] sm:$0xff]
        %v2748 = vld [vmem:[#allocation2 + $0xb8] sm:$0xff]
        %v2749 = vld [vmem:[#allocation2 + $0xc0] sm:$0xff]
        %v2750 = vld [vmem:[#allocation2 + $0xc8] sm:$0xff]
        %v2751 = vld [vmem:[#allocation2 + $0xd0] sm:$0xff]
        %v2752 = vld [vmem:[#allocation2 + $0xd8] sm:$0xff]
        %v2753 = vld [vmem:[#allocation2 + $0xe0] sm:$0xff]
        %v2754 = vld [vmem:[#allocation2 + $0xe8] sm:$0xff]
        %v2755 = vld [vmem:[#allocation2 + $0xf0] sm:$0xff]
        %v2756 = vld [vmem:[#allocation2 + $0xf8] sm:$0xff]
        %v2757 = vld [vmem:[#allocation2 + $0x100] sm:$0xff]
        %v2758 = vld [vmem:[#allocation2 + $0x108] sm:$0xff]
        %v2759 = vld [vmem:[#allocation2 + $0x110] sm:$0xff]
        %v2760 = vld [vmem:[#allocation2 + $0x118] sm:$0xff]
        %s2761 = scalar_lea.vmem %s2, 24
        %v2762 = vld [vmem:[%s2761] sm:$0xf]
        %v2764 = vsel %vm469, %v2689, 0
        %v2767 = vsel %vm469, %v2690, 0
        %v2770 = vsel %vm469, %v2691, 0
        %v2773 = vsel %vm469, %v2692, 0
        %v2776 = vsel %vm469, %v2693, 0
        %v2779 = vsel %vm469, %v2694, 0
        %v2782 = vsel %vm469, %v2695, 0
        %v2785 = vsel %vm469, %v2696, 0
        %v2788 = vsel %vm469, %v2697, 0
        %v2791 = vsel %vm469, %v2698, 0
        %v2794 = vsel %vm469, %v2699, 0
        %v2797 = vsel %vm469, %v2700, 0
        %v2800 = vsel %vm469, %v2701, 0
        %v2803 = vsel %vm469, %v2702, 0
        %v2806 = vsel %vm469, %v2703, 0
        %v2809 = vsel %vm469, %v2704, 0
        %v2812 = vsel %vm469, %v2705, 0
        %v2815 = vsel %vm469, %v2706, 0
        %v2818 = vsel %vm469, %v2707, 0
        %v2821 = vsel %vm469, %v2708, 0
        %v2824 = vsel %vm469, %v2709, 0
        %v2827 = vsel %vm469, %v2710, 0
        %v2830 = vsel %vm469, %v2711, 0
        %v2833 = vsel %vm469, %v2712, 0
        %v2836 = vsel %vm469, %v2713, 0
        %v2839 = vsel %vm469, %v2714, 0
        %v2842 = vsel %vm469, %v2715, 0
        %v2845 = vsel %vm469, %v2716, 0
        %v2848 = vsel %vm469, %v2717, 0
        %v2851 = vsel %vm469, %v2718, 0
        %v2854 = vsel %vm469, %v2719, 0
        %v2857 = vsel %vm469, %v2720, 0
        %v2860 = vsel %vm469, %v2721, 0
        %v2863 = vsel %vm469, %v2722, 0
        %v2866 = vsel %vm469, %v2723, 0
        %v2869 = vsel %vm469, %v2724, 0
        %v2872 = vsel %vm578, %v2762, 0
        %2874 = vmatpush.msra.mxu0 0.0
        %2875 = vmatpush.msra.mxu0 0.0
        %2876 = vmatpush.msra.mxu0 0.0
        %2877 = vmatpush.msra.mxu0 0.0
        %2878 = vmatpush.msra.mxu0 0.0
        %2879 = vmatpush.msra.mxu0 0.0
        %2880 = vmatpush.msra.mxu0 0.0
        %2881 = vmatpush.msra.mxu0 0.0
        %2882 = vmatpush.msra.mxu0 0.0
        %2883 = vmatpush.msra.mxu0 0.0
        %2884 = vmatpush.msra.mxu0 0.0
        %2885 = vmatpush.msra.mxu0 0.0
        %2886 = vmatpush.msra.mxu0 0.0
        %2887 = vmatpush.msra.mxu0 0.0
        %2888 = vmatpush.msra.mxu0 0.0
        %2889 = vmatpush.msra.mxu0 %v2872
        %2890 = vmatmul.f32.gmra.mxu0 %v2764
        %v2891 = vpop.f32.mrf.mxu0
        %v2892 = vadd.f32 0.0, %v2891
        %2893 = vmatmul.f32.gmra.mxu0 %v2767
        %v2894 = vpop.f32.mrf.mxu0
        %v2895 = vadd.f32 0.0, %v2894
        %2896 = vmatmul.f32.gmra.mxu0 %v2770
        %v2897 = vpop.f32.mrf.mxu0
        %v2898 = vadd.f32 0.0, %v2897
        %2899 = vmatmul.f32.gmra.mxu0 %v2773
        %v2900 = vpop.f32.mrf.mxu0
        %v2901 = vadd.f32 0.0, %v2900
        %2902 = vmatmul.f32.gmra.mxu0 %v2776
        %v2903 = vpop.f32.mrf.mxu0
        %v2904 = vadd.f32 0.0, %v2903
        %2905 = vmatmul.f32.gmra.mxu0 %v2779
        %v2906 = vpop.f32.mrf.mxu0
        %v2907 = vadd.f32 0.0, %v2906
        %2908 = vmatmul.f32.gmra.mxu0 %v2782
        %v2909 = vpop.f32.mrf.mxu0
        %v2910 = vadd.f32 0.0, %v2909
        %2911 = vmatmul.f32.gmra.mxu0 %v2785
        %v2912 = vpop.f32.mrf.mxu0
        %v2913 = vadd.f32 0.0, %v2912
        %2914 = vmatmul.f32.gmra.mxu0 %v2788
        %v2915 = vpop.f32.mrf.mxu0
        %v2916 = vadd.f32 0.0, %v2915
        %2917 = vmatmul.f32.gmra.mxu0 %v2791
        %v2918 = vpop.f32.mrf.mxu0
        %v2919 = vadd.f32 0.0, %v2918
        %2920 = vmatmul.f32.gmra.mxu0 %v2794
        %v2921 = vpop.f32.mrf.mxu0
        %v2922 = vadd.f32 0.0, %v2921
        %2923 = vmatmul.f32.gmra.mxu0 %v2797
        %v2924 = vpop.f32.mrf.mxu0
        %v2925 = vadd.f32 0.0, %v2924
        %2926 = vmatmul.f32.gmra.mxu0 %v2800
        %v2927 = vpop.f32.mrf.mxu0
        %v2928 = vadd.f32 0.0, %v2927
        %2929 = vmatmul.f32.gmra.mxu0 %v2803
        %v2930 = vpop.f32.mrf.mxu0
        %v2931 = vadd.f32 0.0, %v2930
        %2932 = vmatmul.f32.gmra.mxu0 %v2806
        %v2933 = vpop.f32.mrf.mxu0
        %v2934 = vadd.f32 0.0, %v2933
        %2935 = vmatmul.f32.gmra.mxu0 %v2809
        %v2936 = vpop.f32.mrf.mxu0
        %v2937 = vadd.f32 0.0, %v2936
        %2938 = vmatmul.f32.gmra.mxu0 %v2812
        %v2939 = vpop.f32.mrf.mxu0
        %v2940 = vadd.f32 0.0, %v2939
        %2941 = vmatmul.f32.gmra.mxu0 %v2815
        %v2942 = vpop.f32.mrf.mxu0
        %v2943 = vadd.f32 0.0, %v2942
        %2944 = vmatmul.f32.gmra.mxu0 %v2818
        %v2945 = vpop.f32.mrf.mxu0
        %v2946 = vadd.f32 0.0, %v2945
        %2947 = vmatmul.f32.gmra.mxu0 %v2821
        %v2948 = vpop.f32.mrf.mxu0
        %v2949 = vadd.f32 0.0, %v2948
        %2950 = vmatmul.f32.gmra.mxu0 %v2824
        %v2951 = vpop.f32.mrf.mxu0
        %v2952 = vadd.f32 0.0, %v2951
        %2953 = vmatmul.f32.gmra.mxu0 %v2827
        %v2954 = vpop.f32.mrf.mxu0
        %v2955 = vadd.f32 0.0, %v2954
        %2956 = vmatmul.f32.gmra.mxu0 %v2830
        %v2957 = vpop.f32.mrf.mxu0
        %v2958 = vadd.f32 0.0, %v2957
        %2959 = vmatmul.f32.gmra.mxu0 %v2833
        %v2960 = vpop.f32.mrf.mxu0
        %v2961 = vadd.f32 0.0, %v2960
        %2962 = vmatmul.f32.gmra.mxu0 %v2836
        %v2963 = vpop.f32.mrf.mxu0
        %v2964 = vadd.f32 0.0, %v2963
        %2965 = vmatmul.f32.gmra.mxu0 %v2839
        %v2966 = vpop.f32.mrf.mxu0
        %v2967 = vadd.f32 0.0, %v2966
        %2968 = vmatmul.f32.gmra.mxu0 %v2842
        %v2969 = vpop.f32.mrf.mxu0
        %v2970 = vadd.f32 0.0, %v2969
        %2971 = vmatmul.f32.gmra.mxu0 %v2845
        %v2972 = vpop.f32.mrf.mxu0
        %v2973 = vadd.f32 0.0, %v2972
        %2974 = vmatmul.f32.gmra.mxu0 %v2848
        %v2975 = vpop.f32.mrf.mxu0
        %v2976 = vadd.f32 0.0, %v2975
        %2977 = vmatmul.f32.gmra.mxu0 %v2851
        %v2978 = vpop.f32.mrf.mxu0
        %v2979 = vadd.f32 0.0, %v2978
        %2980 = vmatmul.f32.gmra.mxu0 %v2854
        %v2981 = vpop.f32.mrf.mxu0
        %v2982 = vadd.f32 0.0, %v2981
        %2983 = vmatmul.f32.gmra.mxu0 %v2857
        %v2984 = vpop.f32.mrf.mxu0
        %v2985 = vadd.f32 0.0, %v2984
        %2986 = vmatmul.f32.gmra.mxu0 %v2860
        %v2987 = vpop.f32.mrf.mxu0
        %v2988 = vadd.f32 0.0, %v2987
        %2989 = vmatmul.f32.gmra.mxu0 %v2863
        %v2990 = vpop.f32.mrf.mxu0
        %v2991 = vadd.f32 0.0, %v2990
        %2992 = vmatmul.f32.gmra.mxu0 %v2866
        %v2993 = vpop.f32.mrf.mxu0
        %v2994 = vadd.f32 0.0, %v2993
        %2995 = vmatmul.f32.gmra.mxu0 %v2869
        %v2996 = vpop.f32.mrf.mxu0
        %v2997 = vadd.f32 0.0, %v2996
        %2998 = vdwg.mxu0
        %v2999 = vadd.f32 %v2725, %v2892
        %v3000 = vadd.f32 %v2726, %v2895
        %v3001 = vadd.f32 %v2727, %v2898
        %v3002 = vadd.f32 %v2728, %v2901
        %v3003 = vadd.f32 %v2729, %v2904
        %v3004 = vadd.f32 %v2730, %v2907
        %v3005 = vadd.f32 %v2731, %v2910
        %v3006 = vadd.f32 %v2732, %v2913
        %v3007 = vadd.f32 %v2733, %v2916
        %v3008 = vadd.f32 %v2734, %v2919
        %v3009 = vadd.f32 %v2735, %v2922
        %v3010 = vadd.f32 %v2736, %v2925
        %v3011 = vadd.f32 %v2737, %v2928
        %v3012 = vadd.f32 %v2738, %v2931
        %v3013 = vadd.f32 %v2739, %v2934
        %v3014 = vadd.f32 %v2740, %v2937
        %v3015 = vadd.f32 %v2741, %v2940
        %v3016 = vadd.f32 %v2742, %v2943
        %v3017 = vadd.f32 %v2743, %v2946
        %v3018 = vadd.f32 %v2744, %v2949
        %v3019 = vadd.f32 %v2745, %v2952
        %v3020 = vadd.f32 %v2746, %v2955
        %v3021 = vadd.f32 %v2747, %v2958
        %v3022 = vadd.f32 %v2748, %v2961
        %v3023 = vadd.f32 %v2749, %v2964
        %v3024 = vadd.f32 %v2750, %v2967
        %v3025 = vadd.f32 %v2751, %v2970
        %v3026 = vadd.f32 %v2752, %v2973
        %v3027 = vadd.f32 %v2753, %v2976
        %v3028 = vadd.f32 %v2754, %v2979
        %v3029 = vadd.f32 %v2755, %v2982
        %v3030 = vadd.f32 %v2756, %v2985
        %v3031 = vadd.f32 %v2757, %v2988
        %v3032 = vadd.f32 %v2758, %v2991
        %v3033 = vadd.f32 %v2759, %v2994
        %v3034 = vadd.f32 %v2760, %v2997
        %3035 = vst.msk [vmem:[#allocation2] sm:$0xff] %vm359, %v2999
        %3036 = vst.msk [vmem:[#allocation2 + $0x8] sm:$0xff] %vm359, %v3000
        %3037 = vst.msk [vmem:[#allocation2 + $0x10] sm:$0xff] %vm359, %v3001
        %3038 = vst.msk [vmem:[#allocation2 + $0x18] sm:$0xff] %vm359, %v3002
        %3039 = vst.msk [vmem:[#allocation2 + $0x20] sm:$0xff] %vm359, %v3003
        %3040 = vst.msk [vmem:[#allocation2 + $0x28] sm:$0xff] %vm359, %v3004
        %3041 = vst.msk [vmem:[#allocation2 + $0x30] sm:$0xff] %vm359, %v3005
        %3042 = vst.msk [vmem:[#allocation2 + $0x38] sm:$0xff] %vm359, %v3006
        %3043 = vst.msk [vmem:[#allocation2 + $0x40] sm:$0xff] %vm359, %v3007
        %3044 = vst.msk [vmem:[#allocation2 + $0x48] sm:$0xff] %vm359, %v3008
        %3045 = vst.msk [vmem:[#allocation2 + $0x50] sm:$0xff] %vm359, %v3009
        %3046 = vst.msk [vmem:[#allocation2 + $0x58] sm:$0xff] %vm359, %v3010
        %3047 = vst.msk [vmem:[#allocation2 + $0x60] sm:$0xff] %vm359, %v3011
        %3048 = vst.msk [vmem:[#allocation2 + $0x68] sm:$0xff] %vm359, %v3012
        %3049 = vst.msk [vmem:[#allocation2 + $0x70] sm:$0xff] %vm359, %v3013
        %3050 = vst.msk [vmem:[#allocation2 + $0x78] sm:$0xff] %vm359, %v3014
        %3051 = vst.msk [vmem:[#allocation2 + $0x80] sm:$0xff] %vm359, %v3015
        %3052 = vst.msk [vmem:[#allocation2 + $0x88] sm:$0xff] %vm359, %v3016
        %3053 = vst.msk [vmem:[#allocation2 + $0x90] sm:$0xff] %vm359, %v3017
        %3054 = vst.msk [vmem:[#allocation2 + $0x98] sm:$0xff] %vm359, %v3018
        %3055 = vst.msk [vmem:[#allocation2 + $0xa0] sm:$0xff] %vm359, %v3019
        %3056 = vst.msk [vmem:[#allocation2 + $0xa8] sm:$0xff] %vm359, %v3020
        %3057 = vst.msk [vmem:[#allocation2 + $0xb0] sm:$0xff] %vm359, %v3021
        %3058 = vst.msk [vmem:[#allocation2 + $0xb8] sm:$0xff] %vm359, %v3022
        %3059 = vst.msk [vmem:[#allocation2 + $0xc0] sm:$0xff] %vm359, %v3023
        %3060 = vst.msk [vmem:[#allocation2 + $0xc8] sm:$0xff] %vm359, %v3024
        %3061 = vst.msk [vmem:[#allocation2 + $0xd0] sm:$0xff] %vm359, %v3025
        %3062 = vst.msk [vmem:[#allocation2 + $0xd8] sm:$0xff] %vm359, %v3026
        %3063 = vst.msk [vmem:[#allocation2 + $0xe0] sm:$0xff] %vm359, %v3027
        %3064 = vst.msk [vmem:[#allocation2 + $0xe8] sm:$0xff] %vm359, %v3028
        %3065 = vst.msk [vmem:[#allocation2 + $0xf0] sm:$0xff] %vm359, %v3029
        %3066 = vst.msk [vmem:[#allocation2 + $0xf8] sm:$0xff] %vm359, %v3030
        %3067 = vst.msk [vmem:[#allocation2 + $0x100] sm:$0xff] %vm359, %v3031
        %3068 = vst.msk [vmem:[#allocation2 + $0x108] sm:$0xff] %vm359, %v3032
        %3069 = vst.msk [vmem:[#allocation2 + $0x110] sm:$0xff] %vm359, %v3033
        %3070 = vst.msk [vmem:[#allocation2 + $0x118] sm:$0xff] %vm359, %v3034
        %v3071 = vld [vmem:[%s358 + $0x25] sm:$0xff]
        %v3072 = vld [vmem:[%s358 + $0x2d] sm:$0xff]
        %v3073 = vld [vmem:[%s358 + $0x35] sm:$0xff]
        %v3074 = vld [vmem:[%s358 + $0x3d] sm:$0xff]
        %v3075 = vld [vmem:[%s358 + $0x45] sm:$0xff]
        %v3076 = vld [vmem:[%s358 + $0x4d] sm:$0xff]
        %v3077 = vld [vmem:[%s358 + $0x55] sm:$0xff]
        %v3078 = vld [vmem:[%s358 + $0x5d] sm:$0xff]
        %v3079 = vld [vmem:[%s358 + $0x65] sm:$0xff]
        %v3080 = vld [vmem:[%s358 + $0x6d] sm:$0xff]
        %v3081 = vld [vmem:[%s358 + $0x75] sm:$0xff]
        %v3082 = vld [vmem:[%s358 + $0x7d] sm:$0xff]
        %v3083 = vld [vmem:[%s358 + $0x85] sm:$0xff]
        %v3084 = vld [vmem:[%s358 + $0x8d] sm:$0xff]
        %v3085 = vld [vmem:[%s358 + $0x95] sm:$0xff]
        %v3086 = vld [vmem:[%s358 + $0x9d] sm:$0xff]
        %v3087 = vld [vmem:[%s358 + $0xa5] sm:$0xff]
        %v3088 = vld [vmem:[%s358 + $0xad] sm:$0xff]
        %v3089 = vld [vmem:[%s358 + $0xb5] sm:$0xff]
        %v3090 = vld [vmem:[%s358 + $0xbd] sm:$0xff]
        %v3091 = vld [vmem:[%s358 + $0xc5] sm:$0xff]
        %v3092 = vld [vmem:[%s358 + $0xcd] sm:$0xff]
        %v3093 = vld [vmem:[%s358 + $0xd5] sm:$0xff]
        %v3094 = vld [vmem:[%s358 + $0xdd] sm:$0xff]
        %v3095 = vld [vmem:[%s358 + $0xe5] sm:$0xff]
        %v3096 = vld [vmem:[%s358 + $0xed] sm:$0xff]
        %v3097 = vld [vmem:[%s358 + $0xf5] sm:$0xff]
        %v3098 = vld [vmem:[%s358 + $0xfd] sm:$0xff]
        %v3099 = vld [vmem:[%s358 + $0x105] sm:$0xff]
        %v3100 = vld [vmem:[%s358 + $0x10d] sm:$0xff]
        %v3101 = vld [vmem:[%s358 + $0x115] sm:$0xff]
        %v3102 = vld [vmem:[%s358 + $0x11d] sm:$0xff]
        %v3103 = vld [vmem:[%s358 + $0x125] sm:$0xff]
        %v3104 = vld [vmem:[%s358 + $0x12d] sm:$0xff]
        %v3105 = vld [vmem:[%s358 + $0x135] sm:$0xff]
        %v3106 = vld [vmem:[%s358 + $0x13d] sm:$0xff]
        %v3107 = vld [vmem:[#allocation2] sm:$0xff]
        %v3108 = vld [vmem:[#allocation2 + $0x8] sm:$0xff]
        %v3109 = vld [vmem:[#allocation2 + $0x10] sm:$0xff]
        %v3110 = vld [vmem:[#allocation2 + $0x18] sm:$0xff]
        %v3111 = vld [vmem:[#allocation2 + $0x20] sm:$0xff]
        %v3112 = vld [vmem:[#allocation2 + $0x28] sm:$0xff]
        %v3113 = vld [vmem:[#allocation2 + $0x30] sm:$0xff]
        %v3114 = vld [vmem:[#allocation2 + $0x38] sm:$0xff]
        %v3115 = vld [vmem:[#allocation2 + $0x40] sm:$0xff]
        %v3116 = vld [vmem:[#allocation2 + $0x48] sm:$0xff]
        %v3117 = vld [vmem:[#allocation2 + $0x50] sm:$0xff]
        %v3118 = vld [vmem:[#allocation2 + $0x58] sm:$0xff]
        %v3119 = vld [vmem:[#allocation2 + $0x60] sm:$0xff]
        %v3120 = vld [vmem:[#allocation2 + $0x68] sm:$0xff]
        %v3121 = vld [vmem:[#allocation2 + $0x70] sm:$0xff]
        %v3122 = vld [vmem:[#allocation2 + $0x78] sm:$0xff]
        %v3123 = vld [vmem:[#allocation2 + $0x80] sm:$0xff]
        %v3124 = vld [vmem:[#allocation2 + $0x88] sm:$0xff]
        %v3125 = vld [vmem:[#allocation2 + $0x90] sm:$0xff]
        %v3126 = vld [vmem:[#allocation2 + $0x98] sm:$0xff]
        %v3127 = vld [vmem:[#allocation2 + $0xa0] sm:$0xff]
        %v3128 = vld [vmem:[#allocation2 + $0xa8] sm:$0xff]
        %v3129 = vld [vmem:[#allocation2 + $0xb0] sm:$0xff]
        %v3130 = vld [vmem:[#allocation2 + $0xb8] sm:$0xff]
        %v3131 = vld [vmem:[#allocation2 + $0xc0] sm:$0xff]
        %v3132 = vld [vmem:[#allocation2 + $0xc8] sm:$0xff]
        %v3133 = vld [vmem:[#allocation2 + $0xd0] sm:$0xff]
        %v3134 = vld [vmem:[#allocation2 + $0xd8] sm:$0xff]
        %v3135 = vld [vmem:[#allocation2 + $0xe0] sm:$0xff]
        %v3136 = vld [vmem:[#allocation2 + $0xe8] sm:$0xff]
        %v3137 = vld [vmem:[#allocation2 + $0xf0] sm:$0xff]
        %v3138 = vld [vmem:[#allocation2 + $0xf8] sm:$0xff]
        %v3139 = vld [vmem:[#allocation2 + $0x100] sm:$0xff]
        %v3140 = vld [vmem:[#allocation2 + $0x108] sm:$0xff]
        %v3141 = vld [vmem:[#allocation2 + $0x110] sm:$0xff]
        %v3142 = vld [vmem:[#allocation2 + $0x118] sm:$0xff]
        %s3143 = scalar_lea.vmem %s2, 28
        %v3144 = vld [vmem:[%s3143] sm:$0xf]
        %v3146 = vsel %vm469, %v3071, 0
        %v3149 = vsel %vm469, %v3072, 0
        %v3152 = vsel %vm469, %v3073, 0
        %v3155 = vsel %vm469, %v3074, 0
        %v3158 = vsel %vm469, %v3075, 0
        %v3161 = vsel %vm469, %v3076, 0
        %v3164 = vsel %vm469, %v3077, 0
        %v3167 = vsel %vm469, %v3078, 0
        %v3170 = vsel %vm469, %v3079, 0
        %v3173 = vsel %vm469, %v3080, 0
        %v3176 = vsel %vm469, %v3081, 0
        %v3179 = vsel %vm469, %v3082, 0
        %v3182 = vsel %vm469, %v3083, 0
        %v3185 = vsel %vm469, %v3084, 0
        %v3188 = vsel %vm469, %v3085, 0
        %v3191 = vsel %vm469, %v3086, 0
        %v3194 = vsel %vm469, %v3087, 0
        %v3197 = vsel %vm469, %v3088, 0
        %v3200 = vsel %vm469, %v3089, 0
        %v3203 = vsel %vm469, %v3090, 0
        %v3206 = vsel %vm469, %v3091, 0
        %v3209 = vsel %vm469, %v3092, 0
        %v3212 = vsel %vm469, %v3093, 0
        %v3215 = vsel %vm469, %v3094, 0
        %v3218 = vsel %vm469, %v3095, 0
        %v3221 = vsel %vm469, %v3096, 0
        %v3224 = vsel %vm469, %v3097, 0
        %v3227 = vsel %vm469, %v3098, 0
        %v3230 = vsel %vm469, %v3099, 0
        %v3233 = vsel %vm469, %v3100, 0
        %v3236 = vsel %vm469, %v3101, 0
        %v3239 = vsel %vm469, %v3102, 0
        %v3242 = vsel %vm469, %v3103, 0
        %v3245 = vsel %vm469, %v3104, 0
        %v3248 = vsel %vm469, %v3105, 0
        %v3251 = vsel %vm469, %v3106, 0
        %v3254 = vsel %vm578, %v3144, 0
        %3256 = vmatpush.msra.mxu0 0.0
        %3257 = vmatpush.msra.mxu0 0.0
        %3258 = vmatpush.msra.mxu0 0.0
        %3259 = vmatpush.msra.mxu0 0.0
        %3260 = vmatpush.msra.mxu0 0.0
        %3261 = vmatpush.msra.mxu0 0.0
        %3262 = vmatpush.msra.mxu0 0.0
        %3263 = vmatpush.msra.mxu0 0.0
        %3264 = vmatpush.msra.mxu0 0.0
        %3265 = vmatpush.msra.mxu0 0.0
        %3266 = vmatpush.msra.mxu0 0.0
        %3267 = vmatpush.msra.mxu0 0.0
        %3268 = vmatpush.msra.mxu0 0.0
        %3269 = vmatpush.msra.mxu0 0.0
        %3270 = vmatpush.msra.mxu0 0.0
        %3271 = vmatpush.msra.mxu0 %v3254
        %3272 = vmatmul.f32.gmra.mxu0 %v3146
        %v3273 = vpop.f32.mrf.mxu0
        %v3274 = vadd.f32 0.0, %v3273
        %3275 = vmatmul.f32.gmra.mxu0 %v3149
        %v3276 = vpop.f32.mrf.mxu0
        %v3277 = vadd.f32 0.0, %v3276
        %3278 = vmatmul.f32.gmra.mxu0 %v3152
        %v3279 = vpop.f32.mrf.mxu0
        %v3280 = vadd.f32 0.0, %v3279
        %3281 = vmatmul.f32.gmra.mxu0 %v3155
        %v3282 = vpop.f32.mrf.mxu0
        %v3283 = vadd.f32 0.0, %v3282
        %3284 = vmatmul.f32.gmra.mxu0 %v3158
        %v3285 = vpop.f32.mrf.mxu0
        %v3286 = vadd.f32 0.0, %v3285
        %3287 = vmatmul.f32.gmra.mxu0 %v3161
        %v3288 = vpop.f32.mrf.mxu0
        %v3289 = vadd.f32 0.0, %v3288
        %3290 = vmatmul.f32.gmra.mxu0 %v3164
        %v3291 = vpop.f32.mrf.mxu0
        %v3292 = vadd.f32 0.0, %v3291
        %3293 = vmatmul.f32.gmra.mxu0 %v3167
        %v3294 = vpop.f32.mrf.mxu0
        %v3295 = vadd.f32 0.0, %v3294
        %3296 = vmatmul.f32.gmra.mxu0 %v3170
        %v3297 = vpop.f32.mrf.mxu0
        %v3298 = vadd.f32 0.0, %v3297
        %3299 = vmatmul.f32.gmra.mxu0 %v3173
        %v3300 = vpop.f32.mrf.mxu0
        %v3301 = vadd.f32 0.0, %v3300
        %3302 = vmatmul.f32.gmra.mxu0 %v3176
        %v3303 = vpop.f32.mrf.mxu0
        %v3304 = vadd.f32 0.0, %v3303
        %3305 = vmatmul.f32.gmra.mxu0 %v3179
        %v3306 = vpop.f32.mrf.mxu0
        %v3307 = vadd.f32 0.0, %v3306
        %3308 = vmatmul.f32.gmra.mxu0 %v3182
        %v3309 = vpop.f32.mrf.mxu0
        %v3310 = vadd.f32 0.0, %v3309
        %3311 = vmatmul.f32.gmra.mxu0 %v3185
        %v3312 = vpop.f32.mrf.mxu0
        %v3313 = vadd.f32 0.0, %v3312
        %3314 = vmatmul.f32.gmra.mxu0 %v3188
        %v3315 = vpop.f32.mrf.mxu0
        %v3316 = vadd.f32 0.0, %v3315
        %3317 = vmatmul.f32.gmra.mxu0 %v3191
        %v3318 = vpop.f32.mrf.mxu0
        %v3319 = vadd.f32 0.0, %v3318
        %3320 = vmatmul.f32.gmra.mxu0 %v3194
        %v3321 = vpop.f32.mrf.mxu0
        %v3322 = vadd.f32 0.0, %v3321
        %3323 = vmatmul.f32.gmra.mxu0 %v3197
        %v3324 = vpop.f32.mrf.mxu0
        %v3325 = vadd.f32 0.0, %v3324
        %3326 = vmatmul.f32.gmra.mxu0 %v3200
        %v3327 = vpop.f32.mrf.mxu0
        %v3328 = vadd.f32 0.0, %v3327
        %3329 = vmatmul.f32.gmra.mxu0 %v3203
        %v3330 = vpop.f32.mrf.mxu0
        %v3331 = vadd.f32 0.0, %v3330
        %3332 = vmatmul.f32.gmra.mxu0 %v3206
        %v3333 = vpop.f32.mrf.mxu0
        %v3334 = vadd.f32 0.0, %v3333
        %3335 = vmatmul.f32.gmra.mxu0 %v3209
        %v3336 = vpop.f32.mrf.mxu0
        %v3337 = vadd.f32 0.0, %v3336
        %3338 = vmatmul.f32.gmra.mxu0 %v3212
        %v3339 = vpop.f32.mrf.mxu0
        %v3340 = vadd.f32 0.0, %v3339
        %3341 = vmatmul.f32.gmra.mxu0 %v3215
        %v3342 = vpop.f32.mrf.mxu0
        %v3343 = vadd.f32 0.0, %v3342
        %3344 = vmatmul.f32.gmra.mxu0 %v3218
        %v3345 = vpop.f32.mrf.mxu0
        %v3346 = vadd.f32 0.0, %v3345
        %3347 = vmatmul.f32.gmra.mxu0 %v3221
        %v3348 = vpop.f32.mrf.mxu0
        %v3349 = vadd.f32 0.0, %v3348
        %3350 = vmatmul.f32.gmra.mxu0 %v3224
        %v3351 = vpop.f32.mrf.mxu0
        %v3352 = vadd.f32 0.0, %v3351
        %3353 = vmatmul.f32.gmra.mxu0 %v3227
        %v3354 = vpop.f32.mrf.mxu0
        %v3355 = vadd.f32 0.0, %v3354
        %3356 = vmatmul.f32.gmra.mxu0 %v3230
        %v3357 = vpop.f32.mrf.mxu0
        %v3358 = vadd.f32 0.0, %v3357
        %3359 = vmatmul.f32.gmra.mxu0 %v3233
        %v3360 = vpop.f32.mrf.mxu0
        %v3361 = vadd.f32 0.0, %v3360
        %3362 = vmatmul.f32.gmra.mxu0 %v3236
        %v3363 = vpop.f32.mrf.mxu0
        %v3364 = vadd.f32 0.0, %v3363
        %3365 = vmatmul.f32.gmra.mxu0 %v3239
        %v3366 = vpop.f32.mrf.mxu0
        %v3367 = vadd.f32 0.0, %v3366
        %3368 = vmatmul.f32.gmra.mxu0 %v3242
        %v3369 = vpop.f32.mrf.mxu0
        %v3370 = vadd.f32 0.0, %v3369
        %3371 = vmatmul.f32.gmra.mxu0 %v3245
        %v3372 = vpop.f32.mrf.mxu0
        %v3373 = vadd.f32 0.0, %v3372
        %3374 = vmatmul.f32.gmra.mxu0 %v3248
        %v3375 = vpop.f32.mrf.mxu0
        %v3376 = vadd.f32 0.0, %v3375
        %3377 = vmatmul.f32.gmra.mxu0 %v3251
        %v3378 = vpop.f32.mrf.mxu0
        %v3379 = vadd.f32 0.0, %v3378
        %3380 = vdwg.mxu0
        %v3381 = vadd.f32 %v3107, %v3274
        %v3382 = vadd.f32 %v3108, %v3277
        %v3383 = vadd.f32 %v3109, %v3280
        %v3384 = vadd.f32 %v3110, %v3283
        %v3385 = vadd.f32 %v3111, %v3286
        %v3386 = vadd.f32 %v3112, %v3289
        %v3387 = vadd.f32 %v3113, %v3292
        %v3388 = vadd.f32 %v3114, %v3295
        %v3389 = vadd.f32 %v3115, %v3298
        %v3390 = vadd.f32 %v3116, %v3301
        %v3391 = vadd.f32 %v3117, %v3304
        %v3392 = vadd.f32 %v3118, %v3307
        %v3393 = vadd.f32 %v3119, %v3310
        %v3394 = vadd.f32 %v3120, %v3313
        %v3395 = vadd.f32 %v3121, %v3316
        %v3396 = vadd.f32 %v3122, %v3319
        %v3397 = vadd.f32 %v3123, %v3322
        %v3398 = vadd.f32 %v3124, %v3325
        %v3399 = vadd.f32 %v3125, %v3328
        %v3400 = vadd.f32 %v3126, %v3331
        %v3401 = vadd.f32 %v3127, %v3334
        %v3402 = vadd.f32 %v3128, %v3337
        %v3403 = vadd.f32 %v3129, %v3340
        %v3404 = vadd.f32 %v3130, %v3343
        %v3405 = vadd.f32 %v3131, %v3346
        %v3406 = vadd.f32 %v3132, %v3349
        %v3407 = vadd.f32 %v3133, %v3352
        %v3408 = vadd.f32 %v3134, %v3355
        %v3409 = vadd.f32 %v3135, %v3358
        %v3410 = vadd.f32 %v3136, %v3361
        %v3411 = vadd.f32 %v3137, %v3364
        %v3412 = vadd.f32 %v3138, %v3367
        %v3413 = vadd.f32 %v3139, %v3370
        %v3414 = vadd.f32 %v3140, %v3373
        %v3415 = vadd.f32 %v3141, %v3376
        %v3416 = vadd.f32 %v3142, %v3379
        %3417 = vst.msk [vmem:[#allocation2] sm:$0xff] %vm359, %v3381
        %3418 = vst.msk [vmem:[#allocation2 + $0x8] sm:$0xff] %vm359, %v3382
        %3419 = vst.msk [vmem:[#allocation2 + $0x10] sm:$0xff] %vm359, %v3383
        %3420 = vst.msk [vmem:[#allocation2 + $0x18] sm:$0xff] %vm359, %v3384
        %3421 = vst.msk [vmem:[#allocation2 + $0x20] sm:$0xff] %vm359, %v3385
        %3422 = vst.msk [vmem:[#allocation2 + $0x28] sm:$0xff] %vm359, %v3386
        %3423 = vst.msk [vmem:[#allocation2 + $0x30] sm:$0xff] %vm359, %v3387
        %3424 = vst.msk [vmem:[#allocation2 + $0x38] sm:$0xff] %vm359, %v3388
        %3425 = vst.msk [vmem:[#allocation2 + $0x40] sm:$0xff] %vm359, %v3389
        %3426 = vst.msk [vmem:[#allocation2 + $0x48] sm:$0xff] %vm359, %v3390
        %3427 = vst.msk [vmem:[#allocation2 + $0x50] sm:$0xff] %vm359, %v3391
        %3428 = vst.msk [vmem:[#allocation2 + $0x58] sm:$0xff] %vm359, %v3392
        %3429 = vst.msk [vmem:[#allocation2 + $0x60] sm:$0xff] %vm359, %v3393
        %3430 = vst.msk [vmem:[#allocation2 + $0x68] sm:$0xff] %vm359, %v3394
        %3431 = vst.msk [vmem:[#allocation2 + $0x70] sm:$0xff] %vm359, %v3395
        %3432 = vst.msk [vmem:[#allocation2 + $0x78] sm:$0xff] %vm359, %v3396
        %3433 = vst.msk [vmem:[#allocation2 + $0x80] sm:$0xff] %vm359, %v3397
        %3434 = vst.msk [vmem:[#allocation2 + $0x88] sm:$0xff] %vm359, %v3398
        %3435 = vst.msk [vmem:[#allocation2 + $0x90] sm:$0xff] %vm359, %v3399
        %3436 = vst.msk [vmem:[#allocation2 + $0x98] sm:$0xff] %vm359, %v3400
        %3437 = vst.msk [vmem:[#allocation2 + $0xa0] sm:$0xff] %vm359, %v3401
        %3438 = vst.msk [vmem:[#allocation2 + $0xa8] sm:$0xff] %vm359, %v3402
        %3439 = vst.msk [vmem:[#allocation2 + $0xb0] sm:$0xff] %vm359, %v3403
        %3440 = vst.msk [vmem:[#allocation2 + $0xb8] sm:$0xff] %vm359, %v3404
        %3441 = vst.msk [vmem:[#allocation2 + $0xc0] sm:$0xff] %vm359, %v3405
        %3442 = vst.msk [vmem:[#allocation2 + $0xc8] sm:$0xff] %vm359, %v3406
        %3443 = vst.msk [vmem:[#allocation2 + $0xd0] sm:$0xff] %vm359, %v3407
        %3444 = vst.msk [vmem:[#allocation2 + $0xd8] sm:$0xff] %vm359, %v3408
        %3445 = vst.msk [vmem:[#allocation2 + $0xe0] sm:$0xff] %vm359, %v3409
        %3446 = vst.msk [vmem:[#allocation2 + $0xe8] sm:$0xff] %vm359, %v3410
        %3447 = vst.msk [vmem:[#allocation2 + $0xf0] sm:$0xff] %vm359, %v3411
        %3448 = vst.msk [vmem:[#allocation2 + $0xf8] sm:$0xff] %vm359, %v3412
        %3449 = vst.msk [vmem:[#allocation2 + $0x100] sm:$0xff] %vm359, %v3413
        %3450 = vst.msk [vmem:[#allocation2 + $0x108] sm:$0xff] %vm359, %v3414
        %3451 = vst.msk [vmem:[#allocation2 + $0x110] sm:$0xff] %vm359, %v3415
        %3452 = vst.msk [vmem:[#allocation2 + $0x118] sm:$0xff] %vm359, %v3416
        %v3453 = vld [vmem:[%s358 + $0x26] sm:$0xff]
        %v3454 = vld [vmem:[%s358 + $0x2e] sm:$0xff]
        %v3455 = vld [vmem:[%s358 + $0x36] sm:$0xff]
        %v3456 = vld [vmem:[%s358 + $0x3e] sm:$0xff]
        %v3457 = vld [vmem:[%s358 + $0x46] sm:$0xff]
        %v3458 = vld [vmem:[%s358 + $0x4e] sm:$0xff]
        %v3459 = vld [vmem:[%s358 + $0x56] sm:$0xff]
        %v3460 = vld [vmem:[%s358 + $0x5e] sm:$0xff]
        %v3461 = vld [vmem:[%s358 + $0x66] sm:$0xff]
        %v3462 = vld [vmem:[%s358 + $0x6e] sm:$0xff]
        %v3463 = vld [vmem:[%s358 + $0x76] sm:$0xff]
        %v3464 = vld [vmem:[%s358 + $0x7e] sm:$0xff]
        %v3465 = vld [vmem:[%s358 + $0x86] sm:$0xff]
        %v3466 = vld [vmem:[%s358 + $0x8e] sm:$0xff]
        %v3467 = vld [vmem:[%s358 + $0x96] sm:$0xff]
        %v3468 = vld [vmem:[%s358 + $0x9e] sm:$0xff]
        %v3469 = vld [vmem:[%s358 + $0xa6] sm:$0xff]
        %v3470 = vld [vmem:[%s358 + $0xae] sm:$0xff]
        %v3471 = vld [vmem:[%s358 + $0xb6] sm:$0xff]
        %v3472 = vld [vmem:[%s358 + $0xbe] sm:$0xff]
        %v3473 = vld [vmem:[%s358 + $0xc6] sm:$0xff]
        %v3474 = vld [vmem:[%s358 + $0xce] sm:$0xff]
        %v3475 = vld [vmem:[%s358 + $0xd6] sm:$0xff]
        %v3476 = vld [vmem:[%s358 + $0xde] sm:$0xff]
        %v3477 = vld [vmem:[%s358 + $0xe6] sm:$0xff]
        %v3478 = vld [vmem:[%s358 + $0xee] sm:$0xff]
        %v3479 = vld [vmem:[%s358 + $0xf6] sm:$0xff]
        %v3480 = vld [vmem:[%s358 + $0xfe] sm:$0xff]
        %v3481 = vld [vmem:[%s358 + $0x106] sm:$0xff]
        %v3482 = vld [vmem:[%s358 + $0x10e] sm:$0xff]
        %v3483 = vld [vmem:[%s358 + $0x116] sm:$0xff]
        %v3484 = vld [vmem:[%s358 + $0x11e] sm:$0xff]
        %v3485 = vld [vmem:[%s358 + $0x126] sm:$0xff]
        %v3486 = vld [vmem:[%s358 + $0x12e] sm:$0xff]
        %v3487 = vld [vmem:[%s358 + $0x136] sm:$0xff]
        %v3488 = vld [vmem:[%s358 + $0x13e] sm:$0xff]
        %v3489 = vld [vmem:[#allocation2] sm:$0xff]
        %v3490 = vld [vmem:[#allocation2 + $0x8] sm:$0xff]
        %v3491 = vld [vmem:[#allocation2 + $0x10] sm:$0xff]
        %v3492 = vld [vmem:[#allocation2 + $0x18] sm:$0xff]
        %v3493 = vld [vmem:[#allocation2 + $0x20] sm:$0xff]
        %v3494 = vld [vmem:[#allocation2 + $0x28] sm:$0xff]
        %v3495 = vld [vmem:[#allocation2 + $0x30] sm:$0xff]
        %v3496 = vld [vmem:[#allocation2 + $0x38] sm:$0xff]
        %v3497 = vld [vmem:[#allocation2 + $0x40] sm:$0xff]
        %v3498 = vld [vmem:[#allocation2 + $0x48] sm:$0xff]
        %v3499 = vld [vmem:[#allocation2 + $0x50] sm:$0xff]
        %v3500 = vld [vmem:[#allocation2 + $0x58] sm:$0xff]
        %v3501 = vld [vmem:[#allocation2 + $0x60] sm:$0xff]
        %v3502 = vld [vmem:[#allocation2 + $0x68] sm:$0xff]
        %v3503 = vld [vmem:[#allocation2 + $0x70] sm:$0xff]
        %v3504 = vld [vmem:[#allocation2 + $0x78] sm:$0xff]
        %v3505 = vld [vmem:[#allocation2 + $0x80] sm:$0xff]
        %v3506 = vld [vmem:[#allocation2 + $0x88] sm:$0xff]
        %v3507 = vld [vmem:[#allocation2 + $0x90] sm:$0xff]
        %v3508 = vld [vmem:[#allocation2 + $0x98] sm:$0xff]
        %v3509 = vld [vmem:[#allocation2 + $0xa0] sm:$0xff]
        %v3510 = vld [vmem:[#allocation2 + $0xa8] sm:$0xff]
        %v3511 = vld [vmem:[#allocation2 + $0xb0] sm:$0xff]
        %v3512 = vld [vmem:[#allocation2 + $0xb8] sm:$0xff]
        %v3513 = vld [vmem:[#allocation2 + $0xc0] sm:$0xff]
        %v3514 = vld [vmem:[#allocation2 + $0xc8] sm:$0xff]
        %v3515 = vld [vmem:[#allocation2 + $0xd0] sm:$0xff]
        %v3516 = vld [vmem:[#allocation2 + $0xd8] sm:$0xff]
        %v3517 = vld [vmem:[#allocation2 + $0xe0] sm:$0xff]
        %v3518 = vld [vmem:[#allocation2 + $0xe8] sm:$0xff]
        %v3519 = vld [vmem:[#allocation2 + $0xf0] sm:$0xff]
        %v3520 = vld [vmem:[#allocation2 + $0xf8] sm:$0xff]
        %v3521 = vld [vmem:[#allocation2 + $0x100] sm:$0xff]
        %v3522 = vld [vmem:[#allocation2 + $0x108] sm:$0xff]
        %v3523 = vld [vmem:[#allocation2 + $0x110] sm:$0xff]
        %v3524 = vld [vmem:[#allocation2 + $0x118] sm:$0xff]
        %s3525 = scalar_lea.vmem %s2, 32
        %v3526 = vld [vmem:[%s3525] sm:$0xf]
        %v3528 = vsel %vm469, %v3453, 0
        %v3531 = vsel %vm469, %v3454, 0
        %v3534 = vsel %vm469, %v3455, 0
        %v3537 = vsel %vm469, %v3456, 0
        %v3540 = vsel %vm469, %v3457, 0
        %v3543 = vsel %vm469, %v3458, 0
        %v3546 = vsel %vm469, %v3459, 0
        %v3549 = vsel %vm469, %v3460, 0
        %v3552 = vsel %vm469, %v3461, 0
        %v3555 = vsel %vm469, %v3462, 0
        %v3558 = vsel %vm469, %v3463, 0
        %v3561 = vsel %vm469, %v3464, 0
        %v3564 = vsel %vm469, %v3465, 0
        %v3567 = vsel %vm469, %v3466, 0
        %v3570 = vsel %vm469, %v3467, 0
        %v3573 = vsel %vm469, %v3468, 0
        %v3576 = vsel %vm469, %v3469, 0
        %v3579 = vsel %vm469, %v3470, 0
        %v3582 = vsel %vm469, %v3471, 0
        %v3585 = vsel %vm469, %v3472, 0
        %v3588 = vsel %vm469, %v3473, 0
        %v3591 = vsel %vm469, %v3474, 0
        %v3594 = vsel %vm469, %v3475, 0
        %v3597 = vsel %vm469, %v3476, 0
        %v3600 = vsel %vm469, %v3477, 0
        %v3603 = vsel %vm469, %v3478, 0
        %v3606 = vsel %vm469, %v3479, 0
        %v3609 = vsel %vm469, %v3480, 0
        %v3612 = vsel %vm469, %v3481, 0
        %v3615 = vsel %vm469, %v3482, 0
        %v3618 = vsel %vm469, %v3483, 0
        %v3621 = vsel %vm469, %v3484, 0
        %v3624 = vsel %vm469, %v3485, 0
        %v3627 = vsel %vm469, %v3486, 0
        %v3630 = vsel %vm469, %v3487, 0
        %v3633 = vsel %vm469, %v3488, 0
        %v3636 = vsel %vm578, %v3526, 0
        %3638 = vmatpush.msra.mxu0 0.0
        %3639 = vmatpush.msra.mxu0 0.0
        %3640 = vmatpush.msra.mxu0 0.0
        %3641 = vmatpush.msra.mxu0 0.0
        %3642 = vmatpush.msra.mxu0 0.0
        %3643 = vmatpush.msra.mxu0 0.0
        %3644 = vmatpush.msra.mxu0 0.0
        %3645 = vmatpush.msra.mxu0 0.0
        %3646 = vmatpush.msra.mxu0 0.0
        %3647 = vmatpush.msra.mxu0 0.0
        %3648 = vmatpush.msra.mxu0 0.0
        %3649 = vmatpush.msra.mxu0 0.0
        %3650 = vmatpush.msra.mxu0 0.0
        %3651 = vmatpush.msra.mxu0 0.0
        %3652 = vmatpush.msra.mxu0 0.0
        %3653 = vmatpush.msra.mxu0 %v3636
        %3654 = vmatmul.f32.gmra.mxu0 %v3528
        %v3655 = vpop.f32.mrf.mxu0
        %v3656 = vadd.f32 0.0, %v3655
        %3657 = vmatmul.f32.gmra.mxu0 %v3531
        %v3658 = vpop.f32.mrf.mxu0
        %v3659 = vadd.f32 0.0, %v3658
        %3660 = vmatmul.f32.gmra.mxu0 %v3534
        %v3661 = vpop.f32.mrf.mxu0
        %v3662 = vadd.f32 0.0, %v3661
        %3663 = vmatmul.f32.gmra.mxu0 %v3537
        %v3664 = vpop.f32.mrf.mxu0
        %v3665 = vadd.f32 0.0, %v3664
        %3666 = vmatmul.f32.gmra.mxu0 %v3540
        %v3667 = vpop.f32.mrf.mxu0
        %v3668 = vadd.f32 0.0, %v3667
        %3669 = vmatmul.f32.gmra.mxu0 %v3543
        %v3670 = vpop.f32.mrf.mxu0
        %v3671 = vadd.f32 0.0, %v3670
        %3672 = vmatmul.f32.gmra.mxu0 %v3546
        %v3673 = vpop.f32.mrf.mxu0
        %v3674 = vadd.f32 0.0, %v3673
        %3675 = vmatmul.f32.gmra.mxu0 %v3549
        %v3676 = vpop.f32.mrf.mxu0
        %v3677 = vadd.f32 0.0, %v3676
        %3678 = vmatmul.f32.gmra.mxu0 %v3552
        %v3679 = vpop.f32.mrf.mxu0
        %v3680 = vadd.f32 0.0, %v3679
        %3681 = vmatmul.f32.gmra.mxu0 %v3555
        %v3682 = vpop.f32.mrf.mxu0
        %v3683 = vadd.f32 0.0, %v3682
        %3684 = vmatmul.f32.gmra.mxu0 %v3558
        %v3685 = vpop.f32.mrf.mxu0
        %v3686 = vadd.f32 0.0, %v3685
        %3687 = vmatmul.f32.gmra.mxu0 %v3561
        %v3688 = vpop.f32.mrf.mxu0
        %v3689 = vadd.f32 0.0, %v3688
        %3690 = vmatmul.f32.gmra.mxu0 %v3564
        %v3691 = vpop.f32.mrf.mxu0
        %v3692 = vadd.f32 0.0, %v3691
        %3693 = vmatmul.f32.gmra.mxu0 %v3567
        %v3694 = vpop.f32.mrf.mxu0
        %v3695 = vadd.f32 0.0, %v3694
        %3696 = vmatmul.f32.gmra.mxu0 %v3570
        %v3697 = vpop.f32.mrf.mxu0
        %v3698 = vadd.f32 0.0, %v3697
        %3699 = vmatmul.f32.gmra.mxu0 %v3573
        %v3700 = vpop.f32.mrf.mxu0
        %v3701 = vadd.f32 0.0, %v3700
        %3702 = vmatmul.f32.gmra.mxu0 %v3576
        %v3703 = vpop.f32.mrf.mxu0
        %v3704 = vadd.f32 0.0, %v3703
        %3705 = vmatmul.f32.gmra.mxu0 %v3579
        %v3706 = vpop.f32.mrf.mxu0
        %v3707 = vadd.f32 0.0, %v3706
        %3708 = vmatmul.f32.gmra.mxu0 %v3582
        %v3709 = vpop.f32.mrf.mxu0
        %v3710 = vadd.f32 0.0, %v3709
        %3711 = vmatmul.f32.gmra.mxu0 %v3585
        %v3712 = vpop.f32.mrf.mxu0
        %v3713 = vadd.f32 0.0, %v3712
        %3714 = vmatmul.f32.gmra.mxu0 %v3588
        %v3715 = vpop.f32.mrf.mxu0
        %v3716 = vadd.f32 0.0, %v3715
        %3717 = vmatmul.f32.gmra.mxu0 %v3591
        %v3718 = vpop.f32.mrf.mxu0
        %v3719 = vadd.f32 0.0, %v3718
        %3720 = vmatmul.f32.gmra.mxu0 %v3594
        %v3721 = vpop.f32.mrf.mxu0
        %v3722 = vadd.f32 0.0, %v3721
        %3723 = vmatmul.f32.gmra.mxu0 %v3597
        %v3724 = vpop.f32.mrf.mxu0
        %v3725 = vadd.f32 0.0, %v3724
        %3726 = vmatmul.f32.gmra.mxu0 %v3600
        %v3727 = vpop.f32.mrf.mxu0
        %v3728 = vadd.f32 0.0, %v3727
        %3729 = vmatmul.f32.gmra.mxu0 %v3603
        %v3730 = vpop.f32.mrf.mxu0
        %v3731 = vadd.f32 0.0, %v3730
        %3732 = vmatmul.f32.gmra.mxu0 %v3606
        %v3733 = vpop.f32.mrf.mxu0
        %v3734 = vadd.f32 0.0, %v3733
        %3735 = vmatmul.f32.gmra.mxu0 %v3609
        %v3736 = vpop.f32.mrf.mxu0
        %v3737 = vadd.f32 0.0, %v3736
        %3738 = vmatmul.f32.gmra.mxu0 %v3612
        %v3739 = vpop.f32.mrf.mxu0
        %v3740 = vadd.f32 0.0, %v3739
        %3741 = vmatmul.f32.gmra.mxu0 %v3615
        %v3742 = vpop.f32.mrf.mxu0
        %v3743 = vadd.f32 0.0, %v3742
        %3744 = vmatmul.f32.gmra.mxu0 %v3618
        %v3745 = vpop.f32.mrf.mxu0
        %v3746 = vadd.f32 0.0, %v3745
        %3747 = vmatmul.f32.gmra.mxu0 %v3621
        %v3748 = vpop.f32.mrf.mxu0
        %v3749 = vadd.f32 0.0, %v3748
        %3750 = vmatmul.f32.gmra.mxu0 %v3624
        %v3751 = vpop.f32.mrf.mxu0
        %v3752 = vadd.f32 0.0, %v3751
        %3753 = vmatmul.f32.gmra.mxu0 %v3627
        %v3754 = vpop.f32.mrf.mxu0
        %v3755 = vadd.f32 0.0, %v3754
        %3756 = vmatmul.f32.gmra.mxu0 %v3630
        %v3757 = vpop.f32.mrf.mxu0
        %v3758 = vadd.f32 0.0, %v3757
        %3759 = vmatmul.f32.gmra.mxu0 %v3633
        %v3760 = vpop.f32.mrf.mxu0
        %v3761 = vadd.f32 0.0, %v3760
        %3762 = vdwg.mxu0
        %v3763 = vadd.f32 %v3489, %v3656
        %v3764 = vadd.f32 %v3490, %v3659
        %v3765 = vadd.f32 %v3491, %v3662
        %v3766 = vadd.f32 %v3492, %v3665
        %v3767 = vadd.f32 %v3493, %v3668
        %v3768 = vadd.f32 %v3494, %v3671
        %v3769 = vadd.f32 %v3495, %v3674
        %v3770 = vadd.f32 %v3496, %v3677
        %v3771 = vadd.f32 %v3497, %v3680
        %v3772 = vadd.f32 %v3498, %v3683
        %v3773 = vadd.f32 %v3499, %v3686
        %v3774 = vadd.f32 %v3500, %v3689
        %v3775 = vadd.f32 %v3501, %v3692
        %v3776 = vadd.f32 %v3502, %v3695
        %v3777 = vadd.f32 %v3503, %v3698
        %v3778 = vadd.f32 %v3504, %v3701
        %v3779 = vadd.f32 %v3505, %v3704
        %v3780 = vadd.f32 %v3506, %v3707
        %v3781 = vadd.f32 %v3507, %v3710
        %v3782 = vadd.f32 %v3508, %v3713
        %v3783 = vadd.f32 %v3509, %v3716
        %v3784 = vadd.f32 %v3510, %v3719
        %v3785 = vadd.f32 %v3511, %v3722
        %v3786 = vadd.f32 %v3512, %v3725
        %v3787 = vadd.f32 %v3513, %v3728
        %v3788 = vadd.f32 %v3514, %v3731
        %v3789 = vadd.f32 %v3515, %v3734
        %v3790 = vadd.f32 %v3516, %v3737
        %v3791 = vadd.f32 %v3517, %v3740
        %v3792 = vadd.f32 %v3518, %v3743
        %v3793 = vadd.f32 %v3519, %v3746
        %v3794 = vadd.f32 %v3520, %v3749
        %v3795 = vadd.f32 %v3521, %v3752
        %v3796 = vadd.f32 %v3522, %v3755
        %v3797 = vadd.f32 %v3523, %v3758
        %v3798 = vadd.f32 %v3524, %v3761
        %3799 = vst.msk [vmem:[#allocation2] sm:$0xff] %vm359, %v3763
        %3800 = vst.msk [vmem:[#allocation2 + $0x8] sm:$0xff] %vm359, %v3764
        %3801 = vst.msk [vmem:[#allocation2 + $0x10] sm:$0xff] %vm359, %v3765
        %3802 = vst.msk [vmem:[#allocation2 + $0x18] sm:$0xff] %vm359, %v3766
        %3803 = vst.msk [vmem:[#allocation2 + $0x20] sm:$0xff] %vm359, %v3767
        %3804 = vst.msk [vmem:[#allocation2 + $0x28] sm:$0xff] %vm359, %v3768
        %3805 = vst.msk [vmem:[#allocation2 + $0x30] sm:$0xff] %vm359, %v3769
        %3806 = vst.msk [vmem:[#allocation2 + $0x38] sm:$0xff] %vm359, %v3770
        %3807 = vst.msk [vmem:[#allocation2 + $0x40] sm:$0xff] %vm359, %v3771
        %3808 = vst.msk [vmem:[#allocation2 + $0x48] sm:$0xff] %vm359, %v3772
        %3809 = vst.msk [vmem:[#allocation2 + $0x50] sm:$0xff] %vm359, %v3773
        %3810 = vst.msk [vmem:[#allocation2 + $0x58] sm:$0xff] %vm359, %v3774
        %3811 = vst.msk [vmem:[#allocation2 + $0x60] sm:$0xff] %vm359, %v3775
        %3812 = vst.msk [vmem:[#allocation2 + $0x68] sm:$0xff] %vm359, %v3776
        %3813 = vst.msk [vmem:[#allocation2 + $0x70] sm:$0xff] %vm359, %v3777
        %3814 = vst.msk [vmem:[#allocation2 + $0x78] sm:$0xff] %vm359, %v3778
        %3815 = vst.msk [vmem:[#allocation2 + $0x80] sm:$0xff] %vm359, %v3779
        %3816 = vst.msk [vmem:[#allocation2 + $0x88] sm:$0xff] %vm359, %v3780
        %3817 = vst.msk [vmem:[#allocation2 + $0x90] sm:$0xff] %vm359, %v3781
        %3818 = vst.msk [vmem:[#allocation2 + $0x98] sm:$0xff] %vm359, %v3782
        %3819 = vst.msk [vmem:[#allocation2 + $0xa0] sm:$0xff] %vm359, %v3783
        %3820 = vst.msk [vmem:[#allocation2 + $0xa8] sm:$0xff] %vm359, %v3784
        %3821 = vst.msk [vmem:[#allocation2 + $0xb0] sm:$0xff] %vm359, %v3785
        %3822 = vst.msk [vmem:[#allocation2 + $0xb8] sm:$0xff] %vm359, %v3786
        %3823 = vst.msk [vmem:[#allocation2 + $0xc0] sm:$0xff] %vm359, %v3787
        %3824 = vst.msk [vmem:[#allocation2 + $0xc8] sm:$0xff] %vm359, %v3788
        %3825 = vst.msk [vmem:[#allocation2 + $0xd0] sm:$0xff] %vm359, %v3789
        %3826 = vst.msk [vmem:[#allocation2 + $0xd8] sm:$0xff] %vm359, %v3790
        %3827 = vst.msk [vmem:[#allocation2 + $0xe0] sm:$0xff] %vm359, %v3791
        %3828 = vst.msk [vmem:[#allocation2 + $0xe8] sm:$0xff] %vm359, %v3792
        %3829 = vst.msk [vmem:[#allocation2 + $0xf0] sm:$0xff] %vm359, %v3793
        %3830 = vst.msk [vmem:[#allocation2 + $0xf8] sm:$0xff] %vm359, %v3794
        %3831 = vst.msk [vmem:[#allocation2 + $0x100] sm:$0xff] %vm359, %v3795
        %3832 = vst.msk [vmem:[#allocation2 + $0x108] sm:$0xff] %vm359, %v3796
        %3833 = vst.msk [vmem:[#allocation2 + $0x110] sm:$0xff] %vm359, %v3797
        %3834 = vst.msk [vmem:[#allocation2 + $0x118] sm:$0xff] %vm359, %v3798
        %v3835 = vld [vmem:[#allocation2] sm:$0xff]
        %v3836 = vld [vmem:[#allocation2 + $0x8] sm:$0xff]
        %v3837 = vld [vmem:[#allocation2 + $0x10] sm:$0xff]
        %v3838 = vld [vmem:[#allocation2 + $0x18] sm:$0xff]
        %v3839 = vld [vmem:[#allocation2 + $0x20] sm:$0xff]
        %v3840 = vld [vmem:[#allocation2 + $0x28] sm:$0xff]
        %v3841 = vld [vmem:[#allocation2 + $0x30] sm:$0xff]
        %v3842 = vld [vmem:[#allocation2 + $0x38] sm:$0xff]
        %v3843 = vld [vmem:[#allocation2 + $0x40] sm:$0xff]
        %v3844 = vld [vmem:[#allocation2 + $0x48] sm:$0xff]
        %v3845 = vld [vmem:[#allocation2 + $0x50] sm:$0xff]
        %v3846 = vld [vmem:[#allocation2 + $0x58] sm:$0xff]
        %v3847 = vld [vmem:[#allocation2 + $0x60] sm:$0xff]
        %v3848 = vld [vmem:[#allocation2 + $0x68] sm:$0xff]
        %v3849 = vld [vmem:[#allocation2 + $0x70] sm:$0xff]
        %v3850 = vld [vmem:[#allocation2 + $0x78] sm:$0xff]
        %v3851 = vld [vmem:[#allocation2 + $0x80] sm:$0xff]
        %v3852 = vld [vmem:[#allocation2 + $0x88] sm:$0xff]
        %v3853 = vld [vmem:[#allocation2 + $0x90] sm:$0xff]
        %v3854 = vld [vmem:[#allocation2 + $0x98] sm:$0xff]
        %v3855 = vld [vmem:[#allocation2 + $0xa0] sm:$0xff]
        %v3856 = vld [vmem:[#allocation2 + $0xa8] sm:$0xff]
        %v3857 = vld [vmem:[#allocation2 + $0xb0] sm:$0xff]
        %v3858 = vld [vmem:[#allocation2 + $0xb8] sm:$0xff]
        %v3859 = vld [vmem:[#allocation2 + $0xc0] sm:$0xff]
        %v3860 = vld [vmem:[#allocation2 + $0xc8] sm:$0xff]
        %v3861 = vld [vmem:[#allocation2 + $0xd0] sm:$0xff]
        %v3862 = vld [vmem:[#allocation2 + $0xd8] sm:$0xff]
        %v3863 = vld [vmem:[#allocation2 + $0xe0] sm:$0xff]
        %v3864 = vld [vmem:[#allocation2 + $0xe8] sm:$0xff]
        %v3865 = vld [vmem:[#allocation2 + $0xf0] sm:$0xff]
        %v3866 = vld [vmem:[#allocation2 + $0xf8] sm:$0xff]
        %v3867 = vld [vmem:[#allocation2 + $0x100] sm:$0xff]
        %v3868 = vld [vmem:[#allocation2 + $0x108] sm:$0xff]
        %v3869 = vld [vmem:[#allocation2 + $0x110] sm:$0xff]
        %v3870 = vld [vmem:[#allocation2 + $0x118] sm:$0xff]
        %v3871 = vld [vmem:[%s3] sm:$0x1]
        %v3873 = vperm.slane %v3871, 0
        %v3875 = vadd.f32 %v3835, %v3873
        %v3876 = vadd.f32 %v3836, %v3873
        %v3877 = vadd.f32 %v3837, %v3873
        %v3878 = vadd.f32 %v3838, %v3873
        %v3879 = vadd.f32 %v3839, %v3873
        %v3880 = vadd.f32 %v3840, %v3873
        %v3881 = vadd.f32 %v3841, %v3873
        %v3882 = vadd.f32 %v3842, %v3873
        %v3883 = vadd.f32 %v3843, %v3873
        %v3884 = vadd.f32 %v3844, %v3873
        %v3885 = vadd.f32 %v3845, %v3873
        %v3886 = vadd.f32 %v3846, %v3873
        %v3887 = vadd.f32 %v3847, %v3873
        %v3888 = vadd.f32 %v3848, %v3873
        %v3889 = vadd.f32 %v3849, %v3873
        %v3890 = vadd.f32 %v3850, %v3873
        %v3891 = vadd.f32 %v3851, %v3873
        %v3892 = vadd.f32 %v3852, %v3873
        %v3893 = vadd.f32 %v3853, %v3873
        %v3894 = vadd.f32 %v3854, %v3873
        %v3895 = vadd.f32 %v3855, %v3873
        %v3896 = vadd.f32 %v3856, %v3873
        %v3897 = vadd.f32 %v3857, %v3873
        %v3898 = vadd.f32 %v3858, %v3873
        %v3899 = vadd.f32 %v3859, %v3873
        %v3900 = vadd.f32 %v3860, %v3873
        %v3901 = vadd.f32 %v3861, %v3873
        %v3902 = vadd.f32 %v3862, %v3873
        %v3903 = vadd.f32 %v3863, %v3873
        %v3904 = vadd.f32 %v3864, %v3873
        %v3905 = vadd.f32 %v3865, %v3873
        %v3906 = vadd.f32 %v3866, %v3873
        %v3907 = vadd.f32 %v3867, %v3873
        %v3908 = vadd.f32 %v3868, %v3873
        %v3909 = vadd.f32 %v3869, %v3873
        %v3910 = vadd.f32 %v3870, %v3873
        %v3911 = vmax.f32 %v3875, 0.0
        %v3912 = vmax.f32 %v3876, 0.0
        %v3913 = vmax.f32 %v3877, 0.0
        %v3914 = vmax.f32 %v3878, 0.0
        %v3915 = vmax.f32 %v3879, 0.0
        %v3916 = vmax.f32 %v3880, 0.0
        %v3917 = vmax.f32 %v3881, 0.0
        %v3918 = vmax.f32 %v3882, 0.0
        %v3919 = vmax.f32 %v3883, 0.0
        %v3920 = vmax.f32 %v3884, 0.0
        %v3921 = vmax.f32 %v3885, 0.0
        %v3922 = vmax.f32 %v3886, 0.0
        %v3923 = vmax.f32 %v3887, 0.0
        %v3924 = vmax.f32 %v3888, 0.0
        %v3925 = vmax.f32 %v3889, 0.0
        %v3926 = vmax.f32 %v3890, 0.0
        %v3927 = vmax.f32 %v3891, 0.0
        %v3928 = vmax.f32 %v3892, 0.0
        %v3929 = vmax.f32 %v3893, 0.0
        %v3930 = vmax.f32 %v3894, 0.0
        %v3931 = vmax.f32 %v3895, 0.0
        %v3932 = vmax.f32 %v3896, 0.0
        %v3933 = vmax.f32 %v3897, 0.0
        %v3934 = vmax.f32 %v3898, 0.0
        %v3935 = vmax.f32 %v3899, 0.0
        %v3936 = vmax.f32 %v3900, 0.0
        %v3937 = vmax.f32 %v3901, 0.0
        %v3938 = vmax.f32 %v3902, 0.0
        %v3939 = vmax.f32 %v3903, 0.0
        %v3940 = vmax.f32 %v3904, 0.0
        %v3941 = vmax.f32 %v3905, 0.0
        %v3942 = vmax.f32 %v3906, 0.0
        %v3943 = vmax.f32 %v3907, 0.0
        %v3944 = vmax.f32 %v3908, 0.0
        %v3945 = vmax.f32 %v3909, 0.0
        %v3946 = vmax.f32 %v3910, 0.0
        %v3947 = vld [vmem:[%s1] sm:$0xff]
        %v3948 = vld [vmem:[%s1 + $0x8] sm:$0xff]
        %v3949 = vld [vmem:[%s1 + $0x10] sm:$0xff]
        %v3950 = vld [vmem:[%s1 + $0x18] sm:$0xff]
        %v3951 = vld [vmem:[%s1 + $0x20] sm:$0xff]
        %v3952 = vld [vmem:[%s1 + $0x28] sm:$0xff]
        %v3953 = vld [vmem:[%s1 + $0x30] sm:$0xff]
        %v3954 = vld [vmem:[%s1 + $0x38] sm:$0xff]
        %v3955 = vld [vmem:[%s1 + $0x40] sm:$0xff]
        %v3956 = vld [vmem:[%s1 + $0x48] sm:$0xff]
        %v3957 = vld [vmem:[%s1 + $0x50] sm:$0xff]
        %v3958 = vld [vmem:[%s1 + $0x58] sm:$0xff]
        %v3959 = vld [vmem:[%s1 + $0x60] sm:$0xff]
        %v3960 = vld [vmem:[%s1 + $0x68] sm:$0xff]
        %v3961 = vld [vmem:[%s1 + $0x70] sm:$0xff]
        %v3962 = vld [vmem:[%s1 + $0x78] sm:$0xff]
        %v3963 = vld [vmem:[%s1 + $0x80] sm:$0xff]
        %v3964 = vld [vmem:[%s1 + $0x88] sm:$0xff]
        %v3965 = vld [vmem:[%s1 + $0x90] sm:$0xff]
        %v3966 = vld [vmem:[%s1 + $0x98] sm:$0xff]
        %v3967 = vld [vmem:[%s1 + $0xa0] sm:$0xff]
        %v3968 = vld [vmem:[%s1 + $0xa8] sm:$0xff]
        %v3969 = vld [vmem:[%s1 + $0xb0] sm:$0xff]
        %v3970 = vld [vmem:[%s1 + $0xb8] sm:$0xff]
        %v3971 = vld [vmem:[%s1 + $0xc0] sm:$0xff]
        %v3972 = vld [vmem:[%s1 + $0xc8] sm:$0xff]
        %v3973 = vld [vmem:[%s1 + $0xd0] sm:$0xff]
        %v3974 = vld [vmem:[%s1 + $0xd8] sm:$0xff]
        %v3975 = vld [vmem:[%s1 + $0xe0] sm:$0xff]
        %v3976 = vld [vmem:[%s1 + $0xe8] sm:$0xff]
        %v3977 = vld [vmem:[%s1 + $0xf0] sm:$0xff]
        %v3978 = vld [vmem:[%s1 + $0xf8] sm:$0xff]
        %v3979 = vld [vmem:[%s1 + $0x100] sm:$0xff]
        %v3980 = vld [vmem:[%s1 + $0x108] sm:$0xff]
        %v3981 = vld [vmem:[%s1 + $0x110] sm:$0xff]
        %v3982 = vld [vmem:[%s1 + $0x118] sm:$0xff]
        %3984 = vset.pattern.permute.xlu0 0
        %3985 = vperm.xlu0 %3984, %v3947
        %v3986 = vpop.permute.xlu0 %3985
        %3989 = vset.pattern.permute.xlu0 0
        %3990 = vperm.xlu0 %3989, %v3948
        %v3991 = vpop.permute.xlu0 %3990
        %3994 = vset.pattern.permute.xlu0 0
        %3995 = vperm.xlu0 %3994, %v3949
        %v3996 = vpop.permute.xlu0 %3995
        %3999 = vset.pattern.permute.xlu0 0
        %4000 = vperm.xlu0 %3999, %v3950
        %v4001 = vpop.permute.xlu0 %4000
        %4004 = vset.pattern.permute.xlu0 0
        %4005 = vperm.xlu0 %4004, %v3951
        %v4006 = vpop.permute.xlu0 %4005
        %4009 = vset.pattern.permute.xlu0 0
        %4010 = vperm.xlu0 %4009, %v3952
        %v4011 = vpop.permute.xlu0 %4010
        %4014 = vset.pattern.permute.xlu0 0
        %4015 = vperm.xlu0 %4014, %v3953
        %v4016 = vpop.permute.xlu0 %4015
        %4019 = vset.pattern.permute.xlu0 0
        %4020 = vperm.xlu0 %4019, %v3954
        %v4021 = vpop.permute.xlu0 %4020
        %4024 = vset.pattern.permute.xlu0 0
        %4025 = vperm.xlu0 %4024, %v3955
        %v4026 = vpop.permute.xlu0 %4025
        %4029 = vset.pattern.permute.xlu0 0
        %4030 = vperm.xlu0 %4029, %v3956
        %v4031 = vpop.permute.xlu0 %4030
        %4034 = vset.pattern.permute.xlu0 0
        %4035 = vperm.xlu0 %4034, %v3957
        %v4036 = vpop.permute.xlu0 %4035
        %4039 = vset.pattern.permute.xlu0 0
        %4040 = vperm.xlu0 %4039, %v3958
        %v4041 = vpop.permute.xlu0 %4040
        %4044 = vset.pattern.permute.xlu0 0
        %4045 = vperm.xlu0 %4044, %v3959
        %v4046 = vpop.permute.xlu0 %4045
        %4049 = vset.pattern.permute.xlu0 0
        %4050 = vperm.xlu0 %4049, %v3960
        %v4051 = vpop.permute.xlu0 %4050
        %4054 = vset.pattern.permute.xlu0 0
        %4055 = vperm.xlu0 %4054, %v3961
        %v4056 = vpop.permute.xlu0 %4055
        %4059 = vset.pattern.permute.xlu0 0
        %4060 = vperm.xlu0 %4059, %v3962
        %v4061 = vpop.permute.xlu0 %4060
        %4064 = vset.pattern.permute.xlu0 0
        %4065 = vperm.xlu0 %4064, %v3963
        %v4066 = vpop.permute.xlu0 %4065
        %4069 = vset.pattern.permute.xlu0 0
        %4070 = vperm.xlu0 %4069, %v3964
        %v4071 = vpop.permute.xlu0 %4070
        %4074 = vset.pattern.permute.xlu0 0
        %4075 = vperm.xlu0 %4074, %v3965
        %v4076 = vpop.permute.xlu0 %4075
        %4079 = vset.pattern.permute.xlu0 0
        %4080 = vperm.xlu0 %4079, %v3966
        %v4081 = vpop.permute.xlu0 %4080
        %4084 = vset.pattern.permute.xlu0 0
        %4085 = vperm.xlu0 %4084, %v3967
        %v4086 = vpop.permute.xlu0 %4085
        %4089 = vset.pattern.permute.xlu0 0
        %4090 = vperm.xlu0 %4089, %v3968
        %v4091 = vpop.permute.xlu0 %4090
        %4094 = vset.pattern.permute.xlu0 0
        %4095 = vperm.xlu0 %4094, %v3969
        %v4096 = vpop.permute.xlu0 %4095
        %4099 = vset.pattern.permute.xlu0 0
        %4100 = vperm.xlu0 %4099, %v3970
        %v4101 = vpop.permute.xlu0 %4100
        %4104 = vset.pattern.permute.xlu0 0
        %4105 = vperm.xlu0 %4104, %v3971
        %v4106 = vpop.permute.xlu0 %4105
        %4109 = vset.pattern.permute.xlu0 0
        %4110 = vperm.xlu0 %4109, %v3972
        %v4111 = vpop.permute.xlu0 %4110
        %4114 = vset.pattern.permute.xlu0 0
        %4115 = vperm.xlu0 %4114, %v3973
        %v4116 = vpop.permute.xlu0 %4115
        %4119 = vset.pattern.permute.xlu0 0
        %4120 = vperm.xlu0 %4119, %v3974
        %v4121 = vpop.permute.xlu0 %4120
        %4124 = vset.pattern.permute.xlu0 0
        %4125 = vperm.xlu0 %4124, %v3975
        %v4126 = vpop.permute.xlu0 %4125
        %4129 = vset.pattern.permute.xlu0 0
        %4130 = vperm.xlu0 %4129, %v3976
        %v4131 = vpop.permute.xlu0 %4130
        %4134 = vset.pattern.permute.xlu0 0
        %4135 = vperm.xlu0 %4134, %v3977
        %v4136 = vpop.permute.xlu0 %4135
        %4139 = vset.pattern.permute.xlu0 0
        %4140 = vperm.xlu0 %4139, %v3978
        %v4141 = vpop.permute.xlu0 %4140
        %4144 = vset.pattern.permute.xlu0 0
        %4145 = vperm.xlu0 %4144, %v3979
        %v4146 = vpop.permute.xlu0 %4145
        %4149 = vset.pattern.permute.xlu0 0
        %4150 = vperm.xlu0 %4149, %v3980
        %v4151 = vpop.permute.xlu0 %4150
        %4154 = vset.pattern.permute.xlu0 0
        %4155 = vperm.xlu0 %4154, %v3981
        %v4156 = vpop.permute.xlu0 %4155
        %4159 = vset.pattern.permute.xlu0 0
        %4160 = vperm.xlu0 %4159, %v3982
        %v4161 = vpop.permute.xlu0 %4160
        %v4163 = vmul.f32 %v3911, %v3986
        %v4164 = vmul.f32 %v3912, %v3991
        %v4165 = vmul.f32 %v3913, %v3996
        %v4166 = vmul.f32 %v3914, %v4001
        %v4167 = vmul.f32 %v3915, %v4006
        %v4168 = vmul.f32 %v3916, %v4011
        %v4169 = vmul.f32 %v3917, %v4016
        %v4170 = vmul.f32 %v3918, %v4021
        %v4171 = vmul.f32 %v3919, %v4026
        %v4172 = vmul.f32 %v3920, %v4031
        %v4173 = vmul.f32 %v3921, %v4036
        %v4174 = vmul.f32 %v3922, %v4041
        %v4175 = vmul.f32 %v3923, %v4046
        %v4176 = vmul.f32 %v3924, %v4051
        %v4177 = vmul.f32 %v3925, %v4056
        %v4178 = vmul.f32 %v3926, %v4061
        %v4179 = vmul.f32 %v3927, %v4066
        %v4180 = vmul.f32 %v3928, %v4071
        %v4181 = vmul.f32 %v3929, %v4076
        %v4182 = vmul.f32 %v3930, %v4081
        %v4183 = vmul.f32 %v3931, %v4086
        %v4184 = vmul.f32 %v3932, %v4091
        %v4185 = vmul.f32 %v3933, %v4096
        %v4186 = vmul.f32 %v3934, %v4101
        %v4187 = vmul.f32 %v3935, %v4106
        %v4188 = vmul.f32 %v3936, %v4111
        %v4189 = vmul.f32 %v3937, %v4116
        %v4190 = vmul.f32 %v3938, %v4121
        %v4191 = vmul.f32 %v3939, %v4126
        %v4192 = vmul.f32 %v3940, %v4131
        %v4193 = vmul.f32 %v3941, %v4136
        %v4194 = vmul.f32 %v3942, %v4141
        %v4195 = vmul.f32 %v3943, %v4146
        %v4196 = vmul.f32 %v3944, %v4151
        %v4197 = vmul.f32 %v3945, %v4156
        %v4198 = vmul.f32 %v3946, %v4161
        %v4199 = vsel %vm359, %v4163, 0.0
        %v4200 = vsel %vm359, %v4164, 0.0
        %v4201 = vadd.f32 %v4199, %v4200
        %v4202 = vsel %vm359, %v4165, 0.0
        %v4203 = vadd.f32 %v4201, %v4202
        %v4204 = vsel %vm359, %v4166, 0.0
        %v4205 = vadd.f32 %v4203, %v4204
        %v4206 = vsel %vm359, %v4167, 0.0
        %v4207 = vadd.f32 %v4205, %v4206
        %v4208 = vsel %vm359, %v4168, 0.0
        %v4209 = vadd.f32 %v4207, %v4208
        %v4210 = vsel %vm359, %v4169, 0.0
        %v4211 = vadd.f32 %v4209, %v4210
        %v4212 = vsel %vm359, %v4170, 0.0
        %v4213 = vadd.f32 %v4211, %v4212
        %v4214 = vsel %vm359, %v4171, 0.0
        %v4215 = vadd.f32 %v4213, %v4214
        %v4216 = vsel %vm359, %v4172, 0.0
        %v4217 = vadd.f32 %v4215, %v4216
        %v4218 = vsel %vm359, %v4173, 0.0
        %v4219 = vadd.f32 %v4217, %v4218
        %v4220 = vsel %vm359, %v4174, 0.0
        %v4221 = vadd.f32 %v4219, %v4220
        %v4222 = vsel %vm359, %v4175, 0.0
        %v4223 = vadd.f32 %v4221, %v4222
        %v4224 = vsel %vm359, %v4176, 0.0
        %v4225 = vadd.f32 %v4223, %v4224
        %v4226 = vsel %vm359, %v4177, 0.0
        %v4227 = vadd.f32 %v4225, %v4226
        %v4228 = vsel %vm359, %v4178, 0.0
        %v4229 = vadd.f32 %v4227, %v4228
        %v4230 = vsel %vm359, %v4179, 0.0
        %v4231 = vadd.f32 %v4229, %v4230
        %v4232 = vsel %vm359, %v4180, 0.0
        %v4233 = vadd.f32 %v4231, %v4232
        %v4234 = vsel %vm359, %v4181, 0.0
        %v4235 = vadd.f32 %v4233, %v4234
        %v4236 = vsel %vm359, %v4182, 0.0
        %v4237 = vadd.f32 %v4235, %v4236
        %v4238 = vsel %vm359, %v4183, 0.0
        %v4239 = vadd.f32 %v4237, %v4238
        %v4240 = vsel %vm359, %v4184, 0.0
        %v4241 = vadd.f32 %v4239, %v4240
        %v4242 = vsel %vm359, %v4185, 0.0
        %v4243 = vadd.f32 %v4241, %v4242
        %v4244 = vsel %vm359, %v4186, 0.0
        %v4245 = vadd.f32 %v4243, %v4244
        %v4246 = vsel %vm359, %v4187, 0.0
        %v4247 = vadd.f32 %v4245, %v4246
        %v4248 = vsel %vm359, %v4188, 0.0
        %v4249 = vadd.f32 %v4247, %v4248
        %v4250 = vsel %vm359, %v4189, 0.0
        %v4251 = vadd.f32 %v4249, %v4250
        %v4252 = vsel %vm359, %v4190, 0.0
        %v4253 = vadd.f32 %v4251, %v4252
        %v4254 = vsel %vm359, %v4191, 0.0
        %v4255 = vadd.f32 %v4253, %v4254
        %v4256 = vsel %vm359, %v4192, 0.0
        %v4257 = vadd.f32 %v4255, %v4256
        %v4258 = vsel %vm359, %v4193, 0.0
        %v4259 = vadd.f32 %v4257, %v4258
        %v4260 = vsel %vm359, %v4194, 0.0
        %v4261 = vadd.f32 %v4259, %v4260
        %v4262 = vsel %vm359, %v4195, 0.0
        %v4263 = vadd.f32 %v4261, %v4262
        %v4264 = vsel %vm359, %v4196, 0.0
        %v4265 = vadd.f32 %v4263, %v4264
        %v4266 = vsel %vm359, %v4197, 0.0
        %v4267 = vadd.f32 %v4265, %v4266
        %v4268 = vsel %vm359, %v4198, 0.0
        %v4269 = vadd.f32 %v4267, %v4268
        %v4270 = vrot.slane %v4269, 4
        %v4271 = vadd.f32 %v4269, %v4270
        %v4272 = vrot.slane %v4271, 2
        %v4273 = vadd.f32 %v4271, %v4272
        %v4274 = vrot.slane %v4273, 1
        %v4275 = vadd.f32 %v4273, %v4274
        %v4276 = vld [vmem:[%s4] sm:$0xff]
        %v4277 = vld [vmem:[%s4 + $0x8] sm:$0xff]
        %v4278 = vld [vmem:[%s4 + $0x10] sm:$0xff]
        %v4279 = vld [vmem:[%s4 + $0x18] sm:$0xff]
        %v4280 = vld [vmem:[%s4 + $0x20] sm:$0xff]
        %v4281 = vld [vmem:[%s4 + $0x28] sm:$0xff]
        %v4282 = vld [vmem:[%s4 + $0x30] sm:$0xff]
        %v4283 = vld [vmem:[%s4 + $0x38] sm:$0xff]
        %v4284 = vld [vmem:[%s4 + $0x40] sm:$0xff]
        %v4285 = vld [vmem:[%s4 + $0x48] sm:$0xff]
        %v4286 = vld [vmem:[%s4 + $0x50] sm:$0xff]
        %v4287 = vld [vmem:[%s4 + $0x58] sm:$0xff]
        %v4288 = vld [vmem:[%s4 + $0x60] sm:$0xff]
        %v4289 = vld [vmem:[%s4 + $0x68] sm:$0xff]
        %v4290 = vld [vmem:[%s4 + $0x70] sm:$0xff]
        %v4291 = vld [vmem:[%s4 + $0x78] sm:$0xff]
        %v4292 = vld [vmem:[%s5] sm:$0xf]
        %v4294 = vperm.slane %v4292, 0
        %v4295 = vperm.slane %v4292, 1
        %v4296 = vperm.slane %v4292, 2
        %v4297 = vperm.slane %v4292, 3
        %v4303 = vsel %vm359, %v4275, 0
        %4305 = vmatpush.msra.mxu0 0.0
        %4306 = vmatpush.msra.mxu0 0.0
        %4307 = vmatpush.msra.mxu0 0.0
        %4308 = vmatpush.msra.mxu0 0.0
        %4309 = vmatpush.msra.mxu0 0.0
        %4310 = vmatpush.msra.mxu0 0.0
        %4311 = vmatpush.msra.mxu0 0.0
        %4312 = vmatpush.msra.mxu0 0.0
        %4313 = vmatpush.msra.mxu0 0.0
        %4314 = vmatpush.msra.mxu0 0.0
        %4315 = vmatpush.msra.mxu0 0.0
        %4316 = vmatpush.msra.mxu0 0.0
        %4317 = vmatpush.msra.mxu0 %v4288
        %4318 = vmatpush.msra.mxu0 %v4284
        %4319 = vmatpush.msra.mxu0 %v4280
        %4320 = vmatpush.msra.mxu0 %v4276
        %4321 = vmatmul.f32.gmra.mxu0 %v4303
        %v4322 = vpop.f32.mrf.mxu0
        %v4323 = vadd.f32 %v4294, %v4322
        %4324 = vdwg.mxu0
        %4325 = vmatpush.msra.mxu0 0.0
        %4326 = vmatpush.msra.mxu0 0.0
        %4327 = vmatpush.msra.mxu0 0.0
        %4328 = vmatpush.msra.mxu0 0.0
        %4329 = vmatpush.msra.mxu0 0.0
        %4330 = vmatpush.msra.mxu0 0.0
        %4331 = vmatpush.msra.mxu0 0.0
        %4332 = vmatpush.msra.mxu0 0.0
        %4333 = vmatpush.msra.mxu0 0.0
        %4334 = vmatpush.msra.mxu0 0.0
        %4335 = vmatpush.msra.mxu0 0.0
        %4336 = vmatpush.msra.mxu0 0.0
        %4337 = vmatpush.msra.mxu0 %v4289
        %4338 = vmatpush.msra.mxu0 %v4285
        %4339 = vmatpush.msra.mxu0 %v4281
        %4340 = vmatpush.msra.mxu0 %v4277
        %4341 = vmatmul.f32.gmra.mxu0 %v4303
        %v4342 = vpop.f32.mrf.mxu0
        %v4343 = vadd.f32 %v4295, %v4342
        %4344 = vdwg.mxu0
        %4345 = vmatpush.msra.mxu0 0.0
        %4346 = vmatpush.msra.mxu0 0.0
        %4347 = vmatpush.msra.mxu0 0.0
        %4348 = vmatpush.msra.mxu0 0.0
        %4349 = vmatpush.msra.mxu0 0.0
        %4350 = vmatpush.msra.mxu0 0.0
        %4351 = vmatpush.msra.mxu0 0.0
        %4352 = vmatpush.msra.mxu0 0.0
        %4353 = vmatpush.msra.mxu0 0.0
        %4354 = vmatpush.msra.mxu0 0.0
        %4355 = vmatpush.msra.mxu0 0.0
        %4356 = vmatpush.msra.mxu0 0.0
        %4357 = vmatpush.msra.mxu0 %v4290
        %4358 = vmatpush.msra.mxu0 %v4286
        %4359 = vmatpush.msra.mxu0 %v4282
        %4360 = vmatpush.msra.mxu0 %v4278
        %4361 = vmatmul.f32.gmra.mxu0 %v4303
        %v4362 = vpop.f32.mrf.mxu0
        %v4363 = vadd.f32 %v4296, %v4362
        %4364 = vdwg.mxu0
        %4365 = vmatpush.msra.mxu0 0.0
        %4366 = vmatpush.msra.mxu0 0.0
        %4367 = vmatpush.msra.mxu0 0.0
        %4368 = vmatpush.msra.mxu0 0.0
        %4369 = vmatpush.msra.mxu0 0.0
        %4370 = vmatpush.msra.mxu0 0.0
        %4371 = vmatpush.msra.mxu0 0.0
        %4372 = vmatpush.msra.mxu0 0.0
        %4373 = vmatpush.msra.mxu0 0.0
        %4374 = vmatpush.msra.mxu0 0.0
        %4375 = vmatpush.msra.mxu0 0.0
        %4376 = vmatpush.msra.mxu0 0.0
        %4377 = vmatpush.msra.mxu0 %v4291
        %4378 = vmatpush.msra.mxu0 %v4287
        %4379 = vmatpush.msra.mxu0 %v4283
        %4380 = vmatpush.msra.mxu0 %v4279
        %4381 = vmatmul.f32.gmra.mxu0 %v4303
        %v4382 = vpop.f32.mrf.mxu0
        %v4383 = vadd.f32 %v4297, %v4382
        %4384 = vdwg.mxu0
        %v4385 = vmul.f32 %v4323, %v4323
        %v4386 = vmul.f32 %v4343, %v4343
        %v4387 = vmul.f32 %v4363, %v4363
        %v4388 = vmul.f32 %v4383, %v4383
        %vm4389 = vcmask 1040384
        %v4390 = vsel %vm4389, %v4385, 0.0
        %v4391 = vsel %vm4389, %v4386, 0.0
        %v4392 = vadd.f32 %v4390, %v4391
        %v4393 = vsel %vm4389, %v4387, 0.0
        %v4394 = vadd.f32 %v4392, %v4393
        %v4395 = vsel %vm4389, %v4388, 0.0
        %v4396 = vadd.f32 %v4394, %v4395
        %4397 = vadd.xlane.f32.xlu0 %v4396
        %v4398 = vpop.xlane.xlu0 %4397
        %v4399 = vmax.f32 %v4398, 1e-24
        %v4400 = vrsqrt.pop %v4399
        %v4401 = vmul.f32 %v4400, %v4399
        %v4402 = vmul.f32 %v4401, %v4400
        %v4403 = vmul.f32 0.5, %v4402
        %v4404 = vsub.f32 1.5, %v4403
        %v4405 = vmul.f32 %v4400, %v4404
        %vm4406 = vweird.f32 %v4399
        %vm4407 = vweird.f32 %v4400
        %vm4408 = vmor %vm4406, %vm4407
        %v4409 = vsel %vm4408, %v4400, %v4405
        %v4410 = vmul.f32 %v4323, %v4409
        %v4411 = vmul.f32 %v4343, %v4409
        %v4412 = vmul.f32 %v4363, %v4409
        %v4413 = vmul.f32 %v4383, %v4409
        %v4418 = vrot.slane %v4411, 7
        %v4419 = vrot.slane %v4412, 6
        %v4420 = vrot.slane %v4413, 5
        %v4421 = vsel %vm4389, %v4410, %v4418
        %vm4422 = vcmask 1042434
        %v4423 = vsel %vm4422, %v4419, %v4420
        %vm4424 = vcmask 1041408
        %v4425 = vsel %vm4424, %v4421, %v4423
        %v4427 = vlaneseq
        %vm4428 = vcmp.ge.s32.totalorder %v4427, 0
        %vm4429 = vcmp.lt.s32.totalorder %v4427, 512
        %vm4430 = vmand %vm4428, %vm4429
        %4431 = vst.msk [vmem:[%s346] sm:$0xf] %vm4430, %v4425
        %v4432 = vld [vmem:[#allocation3] sm:$0xff]
        %v4433 = vld [vmem:[#allocation3 + $0x8] sm:$0xff]
        %v4434 = vld [vmem:[#allocation3 + $0x10] sm:$0xff]
        %v4435 = vld [vmem:[#allocation3 + $0x18] sm:$0xff]
        %v4436 = vld [vmem:[#allocation3 + $0x20] sm:$0xff]
        %v4437 = vld [vmem:[#allocation3 + $0x28] sm:$0xff]
        %v4438 = vld [vmem:[#allocation3 + $0x30] sm:$0xff]
        %v4439 = vld [vmem:[#allocation3 + $0x38] sm:$0xff]
        %v4440 = vld [vmem:[#allocation3 + $0x40] sm:$0xff]
        %v4441 = vld [vmem:[#allocation3 + $0x48] sm:$0xff]
        %v4442 = vld [vmem:[#allocation3 + $0x50] sm:$0xff]
        %v4443 = vld [vmem:[#allocation3 + $0x58] sm:$0xff]
        %v4444 = vld [vmem:[#allocation3 + $0x60] sm:$0xff]
        %v4445 = vld [vmem:[#allocation3 + $0x68] sm:$0xff]
        %v4446 = vld [vmem:[#allocation3 + $0x70] sm:$0xff]
        %v4447 = vld [vmem:[#allocation3 + $0x78] sm:$0xff]
        %v4448 = vld [vmem:[#allocation3 + $0x80] sm:$0xff]
        %v4449 = vld [vmem:[#allocation3 + $0x88] sm:$0xff]
        %v4450 = vld [vmem:[#allocation3 + $0x90] sm:$0xff]
        %v4451 = vld [vmem:[#allocation3 + $0x98] sm:$0xff]
        %v4452 = vld [vmem:[#allocation3 + $0xa0] sm:$0xff]
        %v4453 = vld [vmem:[#allocation3 + $0xa8] sm:$0xff]
        %v4454 = vld [vmem:[#allocation3 + $0xb0] sm:$0xff]
        %v4455 = vld [vmem:[#allocation3 + $0xb8] sm:$0xff]
        %v4456 = vld [vmem:[#allocation3 + $0xc0] sm:$0xff]
        %v4457 = vld [vmem:[#allocation3 + $0xc8] sm:$0xff]
        %v4458 = vld [vmem:[#allocation3 + $0xd0] sm:$0xff]
        %v4459 = vld [vmem:[#allocation3 + $0xd8] sm:$0xff]
        %v4460 = vld [vmem:[#allocation3 + $0xe0] sm:$0xff]
        %v4461 = vld [vmem:[#allocation3 + $0xe8] sm:$0xff]
        %v4462 = vld [vmem:[#allocation3 + $0xf0] sm:$0xff]
        %v4463 = vld [vmem:[#allocation3 + $0xf8] sm:$0xff]
        %v4464 = vld [vmem:[#allocation3 + $0x100] sm:$0xff]
        %v4465 = vld [vmem:[#allocation3 + $0x108] sm:$0xff]
        %v4466 = vld [vmem:[#allocation3 + $0x110] sm:$0xff]
        %v4467 = vld [vmem:[#allocation3 + $0x118] sm:$0xff]
        %v4468 = vld [vmem:[#allocation3 + $0x120] sm:$0xff]
        %v4469 = vld [vmem:[#allocation3 + $0x128] sm:$0xff]
        %v4470 = vld [vmem:[#allocation3 + $0x130] sm:$0xff]
        %v4471 = vld [vmem:[#allocation3 + $0x138] sm:$0xff]
        %v4472 = vld [vmem:[#allocation3 + $0x140] sm:$0xff]
        %v4473 = vld [vmem:[#allocation3 + $0x148] sm:$0xff]
        %v4474 = vld [vmem:[#allocation3 + $0x150] sm:$0xff]
        %v4475 = vld [vmem:[#allocation3 + $0x158] sm:$0xff]
        %v4476 = vld [vmem:[#allocation3 + $0x160] sm:$0xff]
        %v4477 = vld [vmem:[#allocation3 + $0x168] sm:$0xff]
        %v4478 = vld [vmem:[#allocation3 + $0x170] sm:$0xff]
        %v4479 = vld [vmem:[#allocation3 + $0x178] sm:$0xff]
        %v4480 = vld [vmem:[#allocation3 + $0x180] sm:$0xff]
        %v4481 = vld [vmem:[#allocation3 + $0x188] sm:$0xff]
        %v4482 = vld [vmem:[#allocation3 + $0x190] sm:$0xff]
        %v4483 = vld [vmem:[#allocation3 + $0x198] sm:$0xff]
        %v4484 = vld [vmem:[#allocation3 + $0x1a0] sm:$0xff]
        %v4485 = vld [vmem:[#allocation3 + $0x1a8] sm:$0xff]
        %v4486 = vld [vmem:[#allocation3 + $0x1b0] sm:$0xff]
        %v4487 = vld [vmem:[#allocation3 + $0x1b8] sm:$0xff]
        %v4488 = vld [vmem:[#allocation3 + $0x1c0] sm:$0xff]
        %v4489 = vld [vmem:[#allocation3 + $0x1c8] sm:$0xff]
        %v4490 = vld [vmem:[#allocation3 + $0x1d0] sm:$0xff]
        %v4491 = vld [vmem:[#allocation3 + $0x1d8] sm:$0xff]
        %v4492 = vld [vmem:[#allocation3 + $0x1e0] sm:$0xff]
        %v4493 = vld [vmem:[#allocation3 + $0x1e8] sm:$0xff]
        %v4494 = vld [vmem:[#allocation3 + $0x1f0] sm:$0xff]
        %v4495 = vld [vmem:[#allocation3 + $0x1f8] sm:$0xff]
        %v4496 = vld [vmem:[#allocation3 + $0x200] sm:$0xff]
        %v4497 = vld [vmem:[#allocation3 + $0x208] sm:$0xff]
        %v4498 = vld [vmem:[#allocation3 + $0x210] sm:$0xff]
        %v4499 = vld [vmem:[#allocation3 + $0x218] sm:$0xff]
        %v4500 = vld [vmem:[#allocation3 + $0x220] sm:$0xff]
        %v4501 = vld [vmem:[#allocation3 + $0x228] sm:$0xff]
        %v4502 = vld [vmem:[#allocation3 + $0x230] sm:$0xff]
        %v4503 = vld [vmem:[#allocation3 + $0x238] sm:$0xff]
        %v4504 = vld [vmem:[#allocation3 + $0x240] sm:$0xff]
        %v4505 = vld [vmem:[#allocation3 + $0x248] sm:$0xff]
        %v4506 = vld [vmem:[#allocation3 + $0x250] sm:$0xff]
        %v4507 = vld [vmem:[#allocation3 + $0x258] sm:$0xff]
        %v4508 = vld [vmem:[#allocation3 + $0x260] sm:$0xff]
        %v4509 = vld [vmem:[#allocation3 + $0x268] sm:$0xff]
        %v4510 = vld [vmem:[#allocation3 + $0x270] sm:$0xff]
        %v4511 = vld [vmem:[#allocation3 + $0x278] sm:$0xff]
        %v4512 = vld [vmem:[#allocation3 + $0x280] sm:$0xff]
        %v4513 = vld [vmem:[#allocation3 + $0x288] sm:$0xff]
        %v4514 = vld [vmem:[#allocation3 + $0x290] sm:$0xff]
        %v4515 = vld [vmem:[#allocation3 + $0x298] sm:$0xff]
        %v4516 = vld [vmem:[#allocation3 + $0x2a0] sm:$0xff]
        %v4517 = vld [vmem:[#allocation3 + $0x2a8] sm:$0xff]
        %v4518 = vld [vmem:[#allocation3 + $0x2b0] sm:$0xff]
        %v4519 = vld [vmem:[#allocation3 + $0x2b8] sm:$0xff]
        %v4520 = vld [vmem:[#allocation3 + $0x2c0] sm:$0xff]
        %v4521 = vld [vmem:[#allocation3 + $0x2c8] sm:$0xff]
        %v4522 = vld [vmem:[#allocation3 + $0x2d0] sm:$0xff]
        %v4523 = vld [vmem:[#allocation3 + $0x2d8] sm:$0xff]
        %v4524 = vld [vmem:[#allocation3 + $0x2e0] sm:$0xff]
        %v4525 = vld [vmem:[#allocation3 + $0x2e8] sm:$0xff]
        %v4526 = vld [vmem:[#allocation3 + $0x2f0] sm:$0xff]
        %v4527 = vld [vmem:[#allocation3 + $0x2f8] sm:$0xff]
        %v4528 = vld [vmem:[#allocation3 + $0x300] sm:$0xff]
        %v4529 = vld [vmem:[#allocation3 + $0x308] sm:$0xff]
        %v4530 = vld [vmem:[#allocation3 + $0x310] sm:$0xff]
        %v4531 = vld [vmem:[#allocation3 + $0x318] sm:$0xff]
        %v4532 = vld [vmem:[#allocation3 + $0x320] sm:$0xff]
        %v4533 = vld [vmem:[#allocation3 + $0x328] sm:$0xff]
        %v4534 = vld [vmem:[#allocation3 + $0x330] sm:$0xff]
        %v4535 = vld [vmem:[#allocation3 + $0x338] sm:$0xff]
        %v4536 = vld [vmem:[#allocation3 + $0x340] sm:$0xff]
        %v4537 = vld [vmem:[#allocation3 + $0x348] sm:$0xff]
        %v4538 = vld [vmem:[#allocation3 + $0x350] sm:$0xff]
        %v4539 = vld [vmem:[#allocation3 + $0x358] sm:$0xff]
        %v4540 = vld [vmem:[#allocation3 + $0x360] sm:$0xff]
        %v4541 = vld [vmem:[#allocation3 + $0x368] sm:$0xff]
        %v4542 = vld [vmem:[#allocation3 + $0x370] sm:$0xff]
        %v4543 = vld [vmem:[#allocation3 + $0x378] sm:$0xff]
        %v4544 = vld [vmem:[#allocation3 + $0x380] sm:$0xff]
        %v4545 = vld [vmem:[#allocation3 + $0x388] sm:$0xff]
        %v4546 = vld [vmem:[#allocation3 + $0x390] sm:$0xff]
        %v4547 = vld [vmem:[#allocation3 + $0x398] sm:$0xff]
        %v4548 = vld [vmem:[#allocation3 + $0x3a0] sm:$0xff]
        %v4549 = vld [vmem:[#allocation3 + $0x3a8] sm:$0xff]
        %v4550 = vld [vmem:[#allocation3 + $0x3b0] sm:$0xff]
        %v4551 = vld [vmem:[#allocation3 + $0x3b8] sm:$0xff]
        %v4552 = vld [vmem:[#allocation3 + $0x3c0] sm:$0xff]
        %v4553 = vld [vmem:[#allocation3 + $0x3c8] sm:$0xff]
        %v4554 = vld [vmem:[#allocation3 + $0x3d0] sm:$0xff]
        %v4555 = vld [vmem:[#allocation3 + $0x3d8] sm:$0xff]
        %v4556 = vld [vmem:[#allocation3 + $0x3e0] sm:$0xff]
        %v4557 = vld [vmem:[#allocation3 + $0x3e8] sm:$0xff]
        %v4558 = vld [vmem:[#allocation3 + $0x3f0] sm:$0xff]
        %v4559 = vld [vmem:[#allocation3 + $0x3f8] sm:$0xff]
        %v4560 = vld [vmem:[%s7] sm:$0x3]
        %v4562 = vperm.slane %v4560, 0
        %v4563 = vperm.slane %v4560, 1
        %4566 = vmatpush.msra.mxu0 %v4462
        %4567 = vmatpush.msra.mxu0 %v4460
        %4568 = vmatpush.msra.mxu0 %v4458
        %4569 = vmatpush.msra.mxu0 %v4456
        %4570 = vmatpush.msra.mxu0 %v4454
        %4571 = vmatpush.msra.mxu0 %v4452
        %4572 = vmatpush.msra.mxu0 %v4450
        %4573 = vmatpush.msra.mxu0 %v4448
        %4574 = vmatpush.msra.mxu0 %v4446
        %4575 = vmatpush.msra.mxu0 %v4444
        %4576 = vmatpush.msra.mxu0 %v4442
        %4577 = vmatpush.msra.mxu0 %v4440
        %4578 = vmatpush.msra.mxu0 %v4438
        %4579 = vmatpush.msra.mxu0 %v4436
        %4580 = vmatpush.msra.mxu0 %v4434
        %4581 = vmatpush.msra.mxu0 %v4432
        %4582 = vmatmul.f32.gmra.mxu0 %v4410
        %v4583 = vpop.f32.mrf.mxu0
        %v4584 = vadd.f32 %v4562, %v4583
        %4585 = vdwg.mxu0
        %4586 = vmatpush.msra.mxu0 %v4494
        %4587 = vmatpush.msra.mxu0 %v4492
        %4588 = vmatpush.msra.mxu0 %v4490
        %4589 = vmatpush.msra.mxu0 %v4488
        %4590 = vmatpush.msra.mxu0 %v4486
        %4591 = vmatpush.msra.mxu0 %v4484
        %4592 = vmatpush.msra.mxu0 %v4482
        %4593 = vmatpush.msra.mxu0 %v4480
        %4594 = vmatpush.msra.mxu0 %v4478
        %4595 = vmatpush.msra.mxu0 %v4476
        %4596 = vmatpush.msra.mxu0 %v4474
        %4597 = vmatpush.msra.mxu0 %v4472
        %4598 = vmatpush.msra.mxu0 %v4470
        %4599 = vmatpush.msra.mxu0 %v4468
        %4600 = vmatpush.msra.mxu0 %v4466
        %4601 = vmatpush.msra.mxu0 %v4464
        %4602 = vmatmul.f32.gmra.mxu0 %v4411
        %v4603 = vpop.f32.mrf.mxu0
        %v4604 = vadd.f32 %v4584, %v4603
        %4605 = vdwg.mxu0
        %4606 = vmatpush.msra.mxu0 %v4526
        %4607 = vmatpush.msra.mxu0 %v4524
        %4608 = vmatpush.msra.mxu0 %v4522
        %4609 = vmatpush.msra.mxu0 %v4520
        %4610 = vmatpush.msra.mxu0 %v4518
        %4611 = vmatpush.msra.mxu0 %v4516
        %4612 = vmatpush.msra.mxu0 %v4514
        %4613 = vmatpush.msra.mxu0 %v4512
        %4614 = vmatpush.msra.mxu0 %v4510
        %4615 = vmatpush.msra.mxu0 %v4508
        %4616 = vmatpush.msra.mxu0 %v4506
        %4617 = vmatpush.msra.mxu0 %v4504
        %4618 = vmatpush.msra.mxu0 %v4502
        %4619 = vmatpush.msra.mxu0 %v4500
        %4620 = vmatpush.msra.mxu0 %v4498
        %4621 = vmatpush.msra.mxu0 %v4496
        %4622 = vmatmul.f32.gmra.mxu0 %v4412
        %v4623 = vpop.f32.mrf.mxu0
        %v4624 = vadd.f32 %v4604, %v4623
        %4625 = vdwg.mxu0
        %4626 = vmatpush.msra.mxu0 %v4558
        %4627 = vmatpush.msra.mxu0 %v4556
        %4628 = vmatpush.msra.mxu0 %v4554
        %4629 = vmatpush.msra.mxu0 %v4552
        %4630 = vmatpush.msra.mxu0 %v4550
        %4631 = vmatpush.msra.mxu0 %v4548
        %4632 = vmatpush.msra.mxu0 %v4546
        %4633 = vmatpush.msra.mxu0 %v4544
        %4634 = vmatpush.msra.mxu0 %v4542
        %4635 = vmatpush.msra.mxu0 %v4540
        %4636 = vmatpush.msra.mxu0 %v4538
        %4637 = vmatpush.msra.mxu0 %v4536
        %4638 = vmatpush.msra.mxu0 %v4534
        %4639 = vmatpush.msra.mxu0 %v4532
        %4640 = vmatpush.msra.mxu0 %v4530
        %4641 = vmatpush.msra.mxu0 %v4528
        %4642 = vmatmul.f32.gmra.mxu0 %v4413
        %v4643 = vpop.f32.mrf.mxu0
        %v4644 = vadd.f32 %v4624, %v4643
        %4645 = vdwg.mxu0
        %4646 = vmatpush.msra.mxu0 %v4463
        %4647 = vmatpush.msra.mxu0 %v4461
        %4648 = vmatpush.msra.mxu0 %v4459
        %4649 = vmatpush.msra.mxu0 %v4457
        %4650 = vmatpush.msra.mxu0 %v4455
        %4651 = vmatpush.msra.mxu0 %v4453
        %4652 = vmatpush.msra.mxu0 %v4451
        %4653 = vmatpush.msra.mxu0 %v4449
        %4654 = vmatpush.msra.mxu0 %v4447
        %4655 = vmatpush.msra.mxu0 %v4445
        %4656 = vmatpush.msra.mxu0 %v4443
        %4657 = vmatpush.msra.mxu0 %v4441
        %4658 = vmatpush.msra.mxu0 %v4439
        %4659 = vmatpush.msra.mxu0 %v4437
        %4660 = vmatpush.msra.mxu0 %v4435
        %4661 = vmatpush.msra.mxu0 %v4433
        %4662 = vmatmul.f32.gmra.mxu0 %v4410
        %v4663 = vpop.f32.mrf.mxu0
        %v4664 = vadd.f32 %v4563, %v4663
        %4665 = vdwg.mxu0
        %4666 = vmatpush.msra.mxu0 %v4495
        %4667 = vmatpush.msra.mxu0 %v4493
        %4668 = vmatpush.msra.mxu0 %v4491
        %4669 = vmatpush.msra.mxu0 %v4489
        %4670 = vmatpush.msra.mxu0 %v4487
        %4671 = vmatpush.msra.mxu0 %v4485
        %4672 = vmatpush.msra.mxu0 %v4483
        %4673 = vmatpush.msra.mxu0 %v4481
        %4674 = vmatpush.msra.mxu0 %v4479
        %4675 = vmatpush.msra.mxu0 %v4477
        %4676 = vmatpush.msra.mxu0 %v4475
        %4677 = vmatpush.msra.mxu0 %v4473
        %4678 = vmatpush.msra.mxu0 %v4471
        %4679 = vmatpush.msra.mxu0 %v4469
        %4680 = vmatpush.msra.mxu0 %v4467
        %4681 = vmatpush.msra.mxu0 %v4465
        %4682 = vmatmul.f32.gmra.mxu0 %v4411
        %v4683 = vpop.f32.mrf.mxu0
        %v4684 = vadd.f32 %v4664, %v4683
        %4685 = vdwg.mxu0
        %4686 = vmatpush.msra.mxu0 %v4527
        %4687 = vmatpush.msra.mxu0 %v4525
        %4688 = vmatpush.msra.mxu0 %v4523
        %4689 = vmatpush.msra.mxu0 %v4521
        %4690 = vmatpush.msra.mxu0 %v4519
        %4691 = vmatpush.msra.mxu0 %v4517
        %4692 = vmatpush.msra.mxu0 %v4515
        %4693 = vmatpush.msra.mxu0 %v4513
        %4694 = vmatpush.msra.mxu0 %v4511
        %4695 = vmatpush.msra.mxu0 %v4509
        %4696 = vmatpush.msra.mxu0 %v4507
        %4697 = vmatpush.msra.mxu0 %v4505
        %4698 = vmatpush.msra.mxu0 %v4503
        %4699 = vmatpush.msra.mxu0 %v4501
        %4700 = vmatpush.msra.mxu0 %v4499
        %4701 = vmatpush.msra.mxu0 %v4497
        %4702 = vmatmul.f32.gmra.mxu0 %v4412
        %v4703 = vpop.f32.mrf.mxu0
        %v4704 = vadd.f32 %v4684, %v4703
        %4705 = vdwg.mxu0
        %4706 = vmatpush.msra.mxu0 %v4559
        %4707 = vmatpush.msra.mxu0 %v4557
        %4708 = vmatpush.msra.mxu0 %v4555
        %4709 = vmatpush.msra.mxu0 %v4553
        %4710 = vmatpush.msra.mxu0 %v4551
        %4711 = vmatpush.msra.mxu0 %v4549
        %4712 = vmatpush.msra.mxu0 %v4547
        %4713 = vmatpush.msra.mxu0 %v4545
        %4714 = vmatpush.msra.mxu0 %v4543
        %4715 = vmatpush.msra.mxu0 %v4541
        %4716 = vmatpush.msra.mxu0 %v4539
        %4717 = vmatpush.msra.mxu0 %v4537
        %4718 = vmatpush.msra.mxu0 %v4535
        %4719 = vmatpush.msra.mxu0 %v4533
        %4720 = vmatpush.msra.mxu0 %v4531
        %4721 = vmatpush.msra.mxu0 %v4529
        %4722 = vmatmul.f32.gmra.mxu0 %v4413
        %v4723 = vpop.f32.mrf.mxu0
        %v4724 = vadd.f32 %v4704, %v4723
        %4725 = vdwg.mxu0
        %v4728 = vrot.slane %v4724, 7
        %v4729 = vsel %vm4389, %v4644, %v4728
        %vm4731 = vcmp.lt.s32.totalorder %v4427, 256
        %vm4732 = vmand %vm4428, %vm4731
        %4733 = vst.msk [vmem:[%s353] sm:$0x3] %vm4732, %v4729
        %s4734 = sand.u32 %s209, 1
        %s4735 = scalar_lea.sflag [#allocation5], %s4734
        %s4736 = sand.u32 %s209, 1
        %s4737 = smul.addr %s4736, 4
        %s4738 = scalar_lea.vmem [#allocation6], %s4737
        %s4739 = sand.u32 %s235, 1
        %s4740 = scalar_lea.sflag [#allocation8], %s4739
        %s4741 = sand.u32 %s235, 1
        %s4742 = smul.addr %s4741, 2
        %s4743 = scalar_lea.vmem [#allocation7], %s4742
        // Predicated region
        $region57: #{tpu_custom_call.1} parent=51 // pred_check
          %p4744 = pneg %p219
        $region58: #{tpu_custom_call.1} parent=51 // pred_check_branch
          %4746 = sbr.rel (%p4744) target = $region60
        $region59: #{tpu_custom_call.1} parent=51 // pred_region
          %4748 = vsyncadd %s4735, 0
          %s4749 = smul.addr %s28, 4
          %s4750 = scalar_lea.hbm %s8, %s4749
          %s4752 = sshll.u32 %s4738, 4
          %s4753 = int_to_ptr.vmem [resolvable:$true] %s4752
          %s4754 = sshll.u32 %s4750, 4
          %s4755 = int_to_ptr.hbm [resolvable:$true] %s4754
          %4757 = dma.vmem_to_hbm [thread:$0]  %s4753, 64, %s4755, %s4735
        $region60: #{tpu_custom_call.1} parent=51 // pred_fallthru
          _
        // Predicated region
        $region61: #{tpu_custom_call.1} parent=51 // pred_check
          %p4758 = pneg %p245
        $region62: #{tpu_custom_call.1} parent=51 // pred_check_branch
          %4760 = sbr.rel (%p4758) target = $region64
        $region63: #{tpu_custom_call.1} parent=51 // pred_region
          %4762 = vsyncadd %s4740, 0
          %s4763 = smul.addr %s28, 2
          %s4764 = scalar_lea.hbm %s9, %s4763
          %s4766 = sshll.u32 %s4743, 4
          %s4767 = int_to_ptr.vmem [resolvable:$true] %s4766
          %s4768 = sshll.u32 %s4764, 4
          %s4769 = int_to_ptr.hbm [resolvable:$true] %s4768
          %4771 = dma.vmem_to_hbm [thread:$0]  %s4767, 32, %s4769, %s4740
        $region64: #{tpu_custom_call.1} parent=51 // pred_fallthru
          _
      $region52: #{tpu_custom_call.1} parent=5 // pred_fallthru
        _
      %p4772 = scmp.le.s32.totalorder 2, %s23
      // Predicated region
      $region65: #{tpu_custom_call.1} parent=5 // pred_check
        %p4773 = pneg %p4772
      $region66: #{tpu_custom_call.1} parent=5 // pred_check_branch
        %4775 = sbr.rel (%p4773) target = $region68
      $region67: #{tpu_custom_call.1} parent=5 // pred_region
        %s4776 = ssub.s32 %s23, 2
        // Predicated region
        $region69: #{tpu_custom_call.1} parent=67 // pred_check
          %p4777 = pneg %p225
        $region70: #{tpu_custom_call.1} parent=67 // pred_check_branch
          %4779 = sbr.rel (%p4777) target = $region72
        $region71: #{tpu_custom_call.1} parent=67 // pred_region
          %s4780 = sand.u32 %s210, 1
          %s4781 = scalar_lea.sflag [#allocation5], %s4780
          %s4782 = sand.u32 %s210, 1
          %s4783 = smul.addr %s4782, 4
          %s4784 = scalar_lea.vmem [#allocation6], %s4783
          %4786 = dma.done %s4781, 64
        $region72: #{tpu_custom_call.1} parent=67 // pred_fallthru
          _
        // Predicated region
        $region73: #{tpu_custom_call.1} parent=67 // pred_check
          %p4787 = pneg %p251
        $region74: #{tpu_custom_call.1} parent=67 // pred_check_branch
          %4789 = sbr.rel (%p4787) target = $region76
        $region75: #{tpu_custom_call.1} parent=67 // pred_region
          %s4790 = sand.u32 %s236, 1
          %s4791 = scalar_lea.sflag [#allocation8], %s4790
          %s4792 = sand.u32 %s236, 1
          %s4793 = smul.addr %s4792, 2
          %s4794 = scalar_lea.vmem [#allocation7], %s4793
          %4796 = dma.done %s4791, 32
        $region76: #{tpu_custom_call.1} parent=67 // pred_fallthru
          _
      $region68: #{tpu_custom_call.1} parent=5 // pred_fallthru
        _
    $region6: #{tpu_custom_call.1} parent=1 // loop_footer
      %s27 = sadd.s32 1, %s23
    $region7: #{tpu_custom_call.1} parent=1 // loop_footer_branch
      %22 = sbr.rel target = $region3
    $region8: #{tpu_custom_call.1} parent=1 // loop_exit
      _
    %4797 = vsyncpa [#allocation4], 1
    %s4798 = scalar_lea.sflag [#allocation4], 1
    %4799 = vsyncpa %s4798, 1
    %4800 = vsyncpa [#allocation5], 1
    %s4801 = scalar_lea.sflag [#allocation5], 1
    %4802 = vsyncpa %s4801, 1
    %4803 = vsyncpa [#allocation8], 1
    %s4804 = scalar_lea.sflag [#allocation8], 1
    %4805 = vsyncpa %s4804, 1

</llo_original>
